<compile_context>
chip_gen: v5e
topology: v5e:2x2
jax: 0.10.0
libtpu: 0.0.40
codegen_flags: <defaults>
</compile_context>

<pallas_src>
import jax
import jax.numpy as jnp
from jax.experimental import pallas as pl
from jax.experimental.pallas import tpu as pltpu


def _double_dropout_kernel(seed_ref, x_ref, o_ref):
    """dropout(p=0) -> dropout(p=0.5) -> dropout(p=0.5) on one (bm, N) tile."""
    x = x_ref[...]
    rows, cols = x.shape

    # Unique element index across the whole (tiled) array. program_id enters
    # through the global row offset so each grid step gets a distinct stream.
    row_ids = jax.lax.broadcasted_iota(jnp.int32, (rows, cols), 0)
    col_ids = jax.lax.broadcasted_iota(jnp.int32, (rows, cols), 1)
    global_rows = row_ids + pl.program_id(0) * rows
    idx = (global_rows * cols + col_ids).astype(jnp.uint32)

    # Stateless lowbias32/splitmix-style hash -> 32 uniform bits per element.
    h = idx + seed_ref[0].astype(jnp.uint32) * jnp.uint32(0x9E3779B9)
    h = (h ^ (h >> 16)) * jnp.uint32(0x7FEB352D)
    h = (h ^ (h >> 15)) * jnp.uint32(0x846CA68B)
    h = h ^ (h >> 16)

    # Survive both independent p=0.5 dropouts: two bits both set -> prob 0.25.
    keep = (h & jnp.uint32(3)) == jnp.uint32(3)
    scale = jnp.asarray(4.0, dtype=x.dtype)          # 1/(1-p) applied twice
    o_ref[...] = jnp.where(keep, x * scale, jnp.zeros_like(x))


def _pick_block_rows(m, n, itemsize, max_tile_bytes=4 * 1024 * 1024,
                     max_tile_rows=1024):
    """Largest power-of-two row block (multiple of 8) dividing m within budget."""
    if m < 8 or m % 8 != 0:
        return m  # fall back to a single full-array block (allowed by Pallas)
    bm = 8
    while (bm * 2 <= min(m, max_tile_rows)
           and m % (bm * 2) == 0
           and (bm * 2) * n * itemsize <= max_tile_bytes):
        bm *= 2
    return bm


def double_dropout(x: jax.Array, seed: int = 0, *, max_tile_rows: int = 1024) -> jax.Array:
    """Applies dropout(p=0) -> dropout(0.5) -> dropout(0.5) via a Pallas TPU kernel."""
    orig_shape = x.shape
    x2 = x.reshape(-1, x.shape[-1]) if x.ndim > 1 else x.reshape(1, -1)
    m, n = x2.shape
    bm = _pick_block_rows(m, n, x2.dtype.itemsize, max_tile_rows=max_tile_rows)
    grid = (m // bm,)
    seed_arr = jnp.array([seed], dtype=jnp.int32)

    out = pl.pallas_call(
        _double_dropout_kernel,
        out_shape=jax.ShapeDtypeStruct((m, n), x2.dtype),
        grid_spec=pltpu.PrefetchScalarGridSpec(
            num_scalar_prefetch=1,            # seed lands in SMEM
            grid=grid,
            in_specs=[pl.BlockSpec((bm, n), lambda i, seed_ref: (i, 0))],
            out_specs=pl.BlockSpec((bm, n), lambda i, seed_ref: (i, 0)),
        ),
        compiler_params=pltpu.CompilerParams(
            dimension_semantics=("parallel",),    # shard grid across TCs on v7x
            vmem_limit_bytes=32 * 1024 * 1024,    # safe on v7x's 64 MiB VMEM
        ),
    )(seed_arr, x2)
    return out.reshape(orig_shape)


if __name__ == "__main__":
    key = jax.random.PRNGKey(0)
    # 2-D input like the module's (1, 2), sized to exercise the tiled pipeline:
    # 2048 x 256 f32 (2 MiB) -> two lane-dense (1024, 256) tiles on the grid.
    x1 = jax.random.normal(key, (2048, 256), dtype=jnp.float32)

    out = jax.block_until_ready(double_dropout(x1, seed=0))

    assert out.shape == x1.shape and out.dtype == x1.dtype
    # Every output element is either dropped (0) or exactly 4 * input.
    zeroed = out == 0.0
    scaled = jnp.isclose(out, 4.0 * x1, rtol=1e-6, atol=1e-6)
    assert bool(jnp.all(zeroed | scaled)), "dropout semantics violated"
    # Survive-both probability should be ~0.25.
    keep_frac = float(jnp.mean((out != 0.0).astype(jnp.float32)))
    assert 0.22 < keep_frac < 0.28, f"keep fraction {keep_frac} far from 0.25"

    print("KERNEL_OK")
</pallas_src>

<mosaic_0001>
module attributes {stable_mosaic.version = 11 : i64} {
  func.func @_double_dropout_kernel(%arg0: i32, %arg1: memref<1xi32, #tpu.memory_space<smem>>, %arg2: memref<1024x256xf32, #tpu.memory_space<vmem>>, %arg3: memref<1024x256xf32, #tpu.memory_space<vmem>>) attributes {dimension_semantics = [#tpu.dimension_semantics<parallel>], iteration_bounds = array<i64: 2>, scalar_prefetch = 1 : i64, scratch_operands = 0 : i64, tpu.core_type = #tpu.core_type<tc>, window_params = [{transform_indices = @transform_0, window_bounds = array<i64: 1024, 256>}, {transform_indices = @transform_1, window_bounds = array<i64: 1024, 256>}]} {
    %c0 = arith.constant 0 : index
    %c0_0 = arith.constant 0 : index
    %0 = vector.load %arg2[%c0, %c0_0] : memref<1024x256xf32, #tpu.memory_space<vmem>>, vector<1024x256xf32>
    %1 = tpu.iota {dimensions = array<i32: 0>} : vector<1024x256xi32>
    %2 = tpu.iota {dimensions = array<i32: 1>} : vector<1024x256xi32>
    %c1024_i32 = arith.constant 1024 : i32
    %3 = arith.muli %arg0, %c1024_i32 : i32
    %4 = vector.broadcast %3 : i32 to vector<1024x256xi32>
    %5 = arith.addi %1, %4 : vector<1024x256xi32>
    %c256_i32 = arith.constant 256 : i32
    %6 = vector.broadcast %c256_i32 : i32 to vector<1024x256xi32>
    %7 = arith.muli %5, %6 : vector<1024x256xi32>
    %8 = arith.addi %7, %2 : vector<1024x256xi32>
    %c0_1 = arith.constant 0 : index
    %9 = memref.load %arg1[%c0_1] : memref<1xi32, #tpu.memory_space<smem>>
    %c-1640531527_i32 = arith.constant -1640531527 : i32
    %10 = arith.muli %9, %c-1640531527_i32 : i32
    %11 = vector.broadcast %10 : i32 to vector<1024x256xi32>
    %12 = arith.addi %8, %11 : vector<1024x256xi32>
    %c16_i32 = arith.constant 16 : i32
    %13 = vector.broadcast %c16_i32 : i32 to vector<1024x256xi32>
    %14 = arith.shrui %12, %13 : vector<1024x256xi32>
    %15 = arith.xori %12, %14 : vector<1024x256xi32>
    %c2146121005_i32 = arith.constant 2146121005 : i32
    %16 = vector.broadcast %c2146121005_i32 : i32 to vector<1024x256xi32>
    %17 = arith.muli %15, %16 : vector<1024x256xi32>
    %c15_i32 = arith.constant 15 : i32
    %18 = vector.broadcast %c15_i32 : i32 to vector<1024x256xi32>
    %19 = arith.shrui %17, %18 : vector<1024x256xi32>
    %20 = arith.xori %17, %19 : vector<1024x256xi32>
    %c-2073254261_i32 = arith.constant -2073254261 : i32
    %21 = vector.broadcast %c-2073254261_i32 : i32 to vector<1024x256xi32>
    %22 = arith.muli %20, %21 : vector<1024x256xi32>
    %c16_i32_2 = arith.constant 16 : i32
    %23 = vector.broadcast %c16_i32_2 : i32 to vector<1024x256xi32>
    %24 = arith.shrui %22, %23 : vector<1024x256xi32>
    %25 = arith.xori %22, %24 : vector<1024x256xi32>
    %c3_i32 = arith.constant 3 : i32
    %26 = vector.broadcast %c3_i32 : i32 to vector<1024x256xi32>
    %27 = arith.andi %25, %26 : vector<1024x256xi32>
    %c3_i32_3 = arith.constant 3 : i32
    %28 = vector.broadcast %c3_i32_3 : i32 to vector<1024x256xi32>
    %29 = arith.cmpi eq, %27, %28 : vector<1024x256xi32>
    %cst = arith.constant 4.000000e+00 : f32
    %30 = vector.broadcast %cst : f32 to vector<1024x256xf32>
    %31 = arith.mulf %0, %30 : vector<1024x256xf32>
    %cst_4 = arith.constant 0.000000e+00 : f32
    %32 = vector.broadcast %cst_4 : f32 to vector<1024x256xf32>
    %33 = arith.select %29, %31, %32 : vector<1024x256xi1>, vector<1024x256xf32>
    %c0_5 = arith.constant 0 : index
    %c0_6 = arith.constant 0 : index
    %34 = vector.load %arg3[%c0_5, %c0_6] : memref<1024x256xf32, #tpu.memory_space<vmem>>, vector<1024x256xf32>
    tpu.vector_store %arg3[%c0_5, %c0_6], %33 {strides = array<i32>} : memref<1024x256xf32, #tpu.memory_space<vmem>>, vector<1024x256xf32>,
    return
  }
  func.func @transform_0(%arg0: i32, %arg1: memref<1xi32, #tpu.memory_space<smem>>) -> (i32, i32) {
    %c0_i32 = arith.constant 0 : i32
    %c0_i32_0 = arith.constant 0 : i32
    return %arg0, %c0_i32 : i32, i32
  }
  func.func @transform_1(%arg0: i32, %arg1: memref<1xi32, #tpu.memory_space<smem>>) -> (i32, i32) {
    %c0_i32 = arith.constant 0 : i32
    %c0_i32_0 = arith.constant 0 : i32
    return %arg0, %c0_i32 : i32, i32
  }
}

</mosaic_0001>

<llo_original>
// kernel: tpu_custom_call.1
$region0: #{tpu_custom_call.1}
  #allocation0 [shape = 'u32[]', space=smem, size = 0x4, offset = 0x4, fixed_abs, tag = 'smem constant byte address 0x4 - core index']
  #allocation1 [shape = 'u32[72,128]{1,0:T(1,128)}', space=vmem, size = 0x9000, scoped, tag = 'internal scratch']
  #allocation2 [shape = 's32[1]{0}', space=sflag, size = 0x4, scoped, tag = 'scoped memory for tpu_custom_call.1']
  #allocation3 [shape = 's32[1]{0:T(128)S(6)}', space=smem, size = 0x200, scoped, tag = 'prefetched SMEM operand 0']
  %s0 = inlined_call_operand.<no memory space> [shape: s32[1], index: 0, kind: input, shape index: {}]
  %s1 = inlined_call_operand.hbm [shape: f32[2048,256], index: 1, kind: input, shape index: {}]
  %s2 = inlined_call_operand.hbm [shape: f32[2048,256], index: 2, kind: output, shape index: {}]
  %s3 = sld [smem:[#allocation0]]
  $region41: #{tpu_custom_call.1} parent=0
    _
  %s5 = ssub.s32 1, %s3
  %s6 = scalar_select 0, %s5, %s3
  %7 = sst [smem:[#allocation3]] %s0
  $region1: #{tpu_custom_call.1} parent=0
    #allocation4 [shape = 'u8[2097152]{0}', space=vmem, size = 0x200000, scoped, tag = 'input window, operand 1']
    #allocation5 [shape = 's32[2]{0}', space=sflag, size = 0x8, scoped, tag = 'scoped memory for tpu_custom_call.1']
    #allocation6 [shape = 's32[2]{0}', space=sflag, size = 0x8, scoped, tag = 'scoped memory for tpu_custom_call.1']
    #allocation7 [shape = 'u8[2097152]{0}', space=vmem, size = 0x200000, scoped, tag = 'output window, operand 0']
    %8 = vsyncpa [#allocation5], 0
    %s9 = scalar_lea.sflag [#allocation5], 1
    %10 = vsyncpa %s9, 0
    %11 = vsyncpa [#allocation6], 0
    %s12 = scalar_lea.sflag [#allocation6], 1
    %13 = vsyncpa %s12, 0
    loop: start=0, step=1, limit=4
    $region2: #{tpu_custom_call.1} parent=1 // loop_pre_header
      _
    $region3: #{tpu_custom_call.1} parent=1 // loop_header
      %s15 = sphi 0, %s19
      %p16 = scmp.ge.s32.totalorder %s15, 4
      %s25 = sphi 0, %s27
      %s28 = sphi 0, %s25
      %s29 = sphi 0, %s28
      %s45 = sphi 0, %s29
      %s51 = sphi 0, %s53
      %s54 = sphi 0, %s51
      %s55 = sphi 0, %s54
      %s71 = sphi 0, %s55
    $region4: #{tpu_custom_call.1} parent=1 // loop_header_branch
      %18 = sbr.rel (%p16) target = $region8
    $region5: #{tpu_custom_call.1} parent=1 // loop_body
      %s20 = ssub.s32 %s15, 1
      %s21 = ssub.s32 %s15, 2
      %s22 = sadd.s32 %s15, 1
      %s23 = ssub.s32 %s15, %s22
      %p24 = scmp.eq.s32.totalorder %s23, 0
      %s26 = sadd.s32 %s25, 1
      %s27 = scalar_select %p24, %s25, %s26
      %p30 = pneg %p24
      %p31 = scmp.eq.s32.totalorder %s15, 1
      %p32 = por %p30, %p31
      %p33 = scmp.ne.s32.totalorder %s25, %s28
      %p34 = scmp.eq.s32.totalorder %s15, 0
      %p35 = por %p33, %p34
      %p36 = scmp.ne.s32.totalorder %s25, %s28
      %p37 = scmp.eq.s32.totalorder %s20, 1
      %p38 = por %p36, %p37
      %p39 = scmp.ne.s32.totalorder %s28, %s29
      %p40 = scmp.eq.s32.totalorder %s20, 0
      %p41 = por %p39, %p40
      %p42 = scmp.ne.s32.totalorder %s28, %s29
      %p43 = scmp.eq.s32.totalorder %s21, 1
      %p44 = por %p42, %p43
      %p46 = scmp.ne.s32.totalorder %s29, %s45
      %p47 = scmp.eq.s32.totalorder %s21, 0
      %p48 = por %p46, %p47
      %s49 = ssub.s32 %s15, %s22
      %p50 = scmp.eq.s32.totalorder %s49, 0
      %s52 = sadd.s32 %s51, 1
      %s53 = scalar_select %p50, %s51, %s52
      %p56 = pneg %p50
      %p57 = scmp.eq.s32.totalorder %s15, 1
      %p58 = por %p56, %p57
      %p59 = scmp.ne.s32.totalorder %s51, %s54
      %p60 = scmp.eq.s32.totalorder %s15, 0
      %p61 = por %p59, %p60
      %p62 = scmp.ne.s32.totalorder %s51, %s54
      %p63 = scmp.eq.s32.totalorder %s20, 1
      %p64 = por %p62, %p63
      %p65 = scmp.ne.s32.totalorder %s54, %s55
      %p66 = scmp.eq.s32.totalorder %s20, 0
      %p67 = por %p65, %p66
      %p68 = scmp.ne.s32.totalorder %s54, %s55
      %p69 = scmp.eq.s32.totalorder %s21, 1
      %p70 = por %p68, %p69
      %p72 = scmp.ne.s32.totalorder %s55, %s71
      %p73 = scmp.eq.s32.totalorder %s21, 0
      %p74 = por %p72, %p73
      %p75 = scmp.le.s32.totalorder 1, %s15
      %p76 = scmp.lt.s32.totalorder %s15, 3
      %p77 = pnand %p75, %p76
      %p78 = pneg %p77
      // Predicated region
      $region9: #{tpu_custom_call.1} parent=5 // pred_check
        _
      $region10: #{tpu_custom_call.1} parent=5 // pred_check_branch
        %80 = sbr.rel (%p77) target = $region12
      $region11: #{tpu_custom_call.1} parent=5 // pred_region
        %s81 = ssub.s32 %s15, 1
      $region12: #{tpu_custom_call.1} parent=5 // pred_fallthru
        _
      %p82 = scmp.lt.s32.totalorder %s15, 2
      // Predicated region
      $region13: #{tpu_custom_call.1} parent=5 // pred_check
        %p83 = pneg %p82
      $region14: #{tpu_custom_call.1} parent=5 // pred_check_branch
        %85 = sbr.rel (%p83) target = $region16
      $region15: #{tpu_custom_call.1} parent=5 // pred_region
        // Predicated region
        $region17: #{tpu_custom_call.1} parent=15 // pred_check
          %p86 = pneg %p35
        $region18: #{tpu_custom_call.1} parent=15 // pred_check_branch
          %88 = sbr.rel (%p86) target = $region20
        $region19: #{tpu_custom_call.1} parent=15 // pred_region
          %s89 = sand.u32 %s25, 1
          %s90 = scalar_lea.sflag [#allocation5], %s89
          %s91 = sand.u32 %s25, 1
          %s92 = smul.addr %s91, 2048
          %s93 = scalar_lea.vmem [#allocation4], %s92
          %s94 = smul.u32 128, %s15
          %96 = vsyncadd %s90, 0
          %s97 = smul.addr %s94, 2
          %s98 = smul.addr %s97, 8
          %s99 = scalar_lea.hbm %s1, %s98
          %s100 = sshll.u32 %s99, 4
          %s101 = int_to_ptr.hbm [resolvable:$true] %s100
          %s102 = sshll.u32 %s93, 4
          %s103 = int_to_ptr.vmem [resolvable:$true] %s102
          %108 = dma.hbm_to_vmem [thread:$0]  %s101, 32768, %s103, %s90, 256, 256, 16
        $region20: #{tpu_custom_call.1} parent=15 // pred_fallthru
          _
      $region16: #{tpu_custom_call.1} parent=5 // pred_fallthru
        _
      %p109 = scmp.le.s32.totalorder 1, %s15
      %p110 = scmp.lt.s32.totalorder %s15, 3
      %p111 = pnand %p109, %p110
      %p112 = pneg %p111
      // Predicated region
      $region21: #{tpu_custom_call.1} parent=5 // pred_check
        _
      $region22: #{tpu_custom_call.1} parent=5 // pred_check_branch
        %114 = sbr.rel (%p111) target = $region24
      $region23: #{tpu_custom_call.1} parent=5 // pred_region
        %s115 = ssub.s32 %s15, 1
        %s116 = sand.u32 %s28, 1
        %s117 = scalar_lea.sflag [#allocation5], %s116
        %s118 = sand.u32 %s28, 1
        %s119 = smul.addr %s118, 2048
        %s120 = scalar_lea.vmem [#allocation4], %s119
        // Predicated region
        $region25: #{tpu_custom_call.1} parent=23 // pred_check
          %p121 = pneg %p41
        $region26: #{tpu_custom_call.1} parent=23 // pred_check_branch
          %123 = sbr.rel (%p121) target = $region28
        $region27: #{tpu_custom_call.1} parent=23 // pred_region
          %125 = dma.done %s117, 32768
        $region28: #{tpu_custom_call.1} parent=23 // pred_fallthru
          _
        %s126 = sand.u32 %s28, 1
        %s127 = scalar_lea.sflag [#allocation5], %s126
        %s128 = sand.u32 %s28, 1
        %s129 = smul.addr %s128, 2048
        %s130 = scalar_lea.vmem [#allocation4], %s129
        %p131 = pneg %p41
        %p132 = pneg %p38
        %p133 = pneg %p67
        %p134 = pneg %p64
        %s135 = sand.u32 %s54, 1
        %s136 = scalar_lea.sflag [#allocation6], %s135
        %s137 = sand.u32 %s54, 1
        %s138 = smul.addr %s137, 2048
        %s139 = scalar_lea.vmem [#allocation7], %s138
        %s140 = smul.u32 128, %s20
        %s141 = smul.u32 128, %s20
        %v142 = vld [vmem:[%s120] sm:$0xff]
        %v143 = vld [vmem:[%s120 + $0x8] sm:$0xff]
        %v144 = vld [vmem:[%s120 + $0x10] sm:$0xff]
        %v145 = vld [vmem:[%s120 + $0x18] sm:$0xff]
        %v146 = vld [vmem:[%s120 + $0x20] sm:$0xff]
        %v147 = vld [vmem:[%s120 + $0x28] sm:$0xff]
        %v148 = vld [vmem:[%s120 + $0x30] sm:$0xff]
        %v149 = vld [vmem:[%s120 + $0x38] sm:$0xff]
        %v150 = vld [vmem:[%s120 + $0x40] sm:$0xff]
        %v151 = vld [vmem:[%s120 + $0x48] sm:$0xff]
        %v152 = vld [vmem:[%s120 + $0x50] sm:$0xff]
        %v153 = vld [vmem:[%s120 + $0x58] sm:$0xff]
        %v154 = vld [vmem:[%s120 + $0x60] sm:$0xff]
        %v155 = vld [vmem:[%s120 + $0x68] sm:$0xff]
        %v156 = vld [vmem:[%s120 + $0x70] sm:$0xff]
        %v157 = vld [vmem:[%s120 + $0x78] sm:$0xff]
        %v158 = vld [vmem:[%s120 + $0x80] sm:$0xff]
        %v159 = vld [vmem:[%s120 + $0x88] sm:$0xff]
        %v160 = vld [vmem:[%s120 + $0x90] sm:$0xff]
        %v161 = vld [vmem:[%s120 + $0x98] sm:$0xff]
        %v162 = vld [vmem:[%s120 + $0xa0] sm:$0xff]
        %v163 = vld [vmem:[%s120 + $0xa8] sm:$0xff]
        %v164 = vld [vmem:[%s120 + $0xb0] sm:$0xff]
        %v165 = vld [vmem:[%s120 + $0xb8] sm:$0xff]
        %v166 = vld [vmem:[%s120 + $0xc0] sm:$0xff]
        %v167 = vld [vmem:[%s120 + $0xc8] sm:$0xff]
        %v168 = vld [vmem:[%s120 + $0xd0] sm:$0xff]
        %v169 = vld [vmem:[%s120 + $0xd8] sm:$0xff]
        %v170 = vld [vmem:[%s120 + $0xe0] sm:$0xff]
        %v171 = vld [vmem:[%s120 + $0xe8] sm:$0xff]
        %v172 = vld [vmem:[%s120 + $0xf0] sm:$0xff]
        %v173 = vld [vmem:[%s120 + $0xf8] sm:$0xff]
        %v174 = vld [vmem:[%s120 + $0x100] sm:$0xff]
        %v175 = vld [vmem:[%s120 + $0x108] sm:$0xff]
        %v176 = vld [vmem:[%s120 + $0x110] sm:$0xff]
        %v177 = vld [vmem:[%s120 + $0x118] sm:$0xff]
        %v178 = vld [vmem:[%s120 + $0x120] sm:$0xff]
        %v179 = vld [vmem:[%s120 + $0x128] sm:$0xff]
        %v180 = vld [vmem:[%s120 + $0x130] sm:$0xff]
        %v181 = vld [vmem:[%s120 + $0x138] sm:$0xff]
        %v182 = vld [vmem:[%s120 + $0x140] sm:$0xff]
        %v183 = vld [vmem:[%s120 + $0x148] sm:$0xff]
        %v184 = vld [vmem:[%s120 + $0x150] sm:$0xff]
        %v185 = vld [vmem:[%s120 + $0x158] sm:$0xff]
        %v186 = vld [vmem:[%s120 + $0x160] sm:$0xff]
        %v187 = vld [vmem:[%s120 + $0x168] sm:$0xff]
        %v188 = vld [vmem:[%s120 + $0x170] sm:$0xff]
        %v189 = vld [vmem:[%s120 + $0x178] sm:$0xff]
        %v190 = vld [vmem:[%s120 + $0x180] sm:$0xff]
        %v191 = vld [vmem:[%s120 + $0x188] sm:$0xff]
        %v192 = vld [vmem:[%s120 + $0x190] sm:$0xff]
        %v193 = vld [vmem:[%s120 + $0x198] sm:$0xff]
        %v194 = vld [vmem:[%s120 + $0x1a0] sm:$0xff]
        %v195 = vld [vmem:[%s120 + $0x1a8] sm:$0xff]
        %v196 = vld [vmem:[%s120 + $0x1b0] sm:$0xff]
        %v197 = vld [vmem:[%s120 + $0x1b8] sm:$0xff]
        %v198 = vld [vmem:[%s120 + $0x1c0] sm:$0xff]
        %v199 = vld [vmem:[%s120 + $0x1c8] sm:$0xff]
        %v200 = vld [vmem:[%s120 + $0x1d0] sm:$0xff]
        %v201 = vld [vmem:[%s120 + $0x1d8] sm:$0xff]
        %v202 = vld [vmem:[%s120 + $0x1e0] sm:$0xff]
        %v203 = vld [vmem:[%s120 + $0x1e8] sm:$0xff]
        %v204 = vld [vmem:[%s120 + $0x1f0] sm:$0xff]
        %v205 = vld [vmem:[%s120 + $0x1f8] sm:$0xff]
        %v206 = vld [vmem:[%s120 + $0x200] sm:$0xff]
        %v207 = vld [vmem:[%s120 + $0x208] sm:$0xff]
        %v208 = vld [vmem:[%s120 + $0x210] sm:$0xff]
        %v209 = vld [vmem:[%s120 + $0x218] sm:$0xff]
        %v210 = vld [vmem:[%s120 + $0x220] sm:$0xff]
        %v211 = vld [vmem:[%s120 + $0x228] sm:$0xff]
        %v212 = vld [vmem:[%s120 + $0x230] sm:$0xff]
        %v213 = vld [vmem:[%s120 + $0x238] sm:$0xff]
        %v214 = vld [vmem:[%s120 + $0x240] sm:$0xff]
        %v215 = vld [vmem:[%s120 + $0x248] sm:$0xff]
        %v216 = vld [vmem:[%s120 + $0x250] sm:$0xff]
        %v217 = vld [vmem:[%s120 + $0x258] sm:$0xff]
        %v218 = vld [vmem:[%s120 + $0x260] sm:$0xff]
        %v219 = vld [vmem:[%s120 + $0x268] sm:$0xff]
        %v220 = vld [vmem:[%s120 + $0x270] sm:$0xff]
        %v221 = vld [vmem:[%s120 + $0x278] sm:$0xff]
        %v222 = vld [vmem:[%s120 + $0x280] sm:$0xff]
        %v223 = vld [vmem:[%s120 + $0x288] sm:$0xff]
        %v224 = vld [vmem:[%s120 + $0x290] sm:$0xff]
        %v225 = vld [vmem:[%s120 + $0x298] sm:$0xff]
        %v226 = vld [vmem:[%s120 + $0x2a0] sm:$0xff]
        %v227 = vld [vmem:[%s120 + $0x2a8] sm:$0xff]
        %v228 = vld [vmem:[%s120 + $0x2b0] sm:$0xff]
        %v229 = vld [vmem:[%s120 + $0x2b8] sm:$0xff]
        %v230 = vld [vmem:[%s120 + $0x2c0] sm:$0xff]
        %v231 = vld [vmem:[%s120 + $0x2c8] sm:$0xff]
        %v232 = vld [vmem:[%s120 + $0x2d0] sm:$0xff]
        %v233 = vld [vmem:[%s120 + $0x2d8] sm:$0xff]
        %v234 = vld [vmem:[%s120 + $0x2e0] sm:$0xff]
        %v235 = vld [vmem:[%s120 + $0x2e8] sm:$0xff]
        %v236 = vld [vmem:[%s120 + $0x2f0] sm:$0xff]
        %v237 = vld [vmem:[%s120 + $0x2f8] sm:$0xff]
        %v238 = vld [vmem:[%s120 + $0x300] sm:$0xff]
        %v239 = vld [vmem:[%s120 + $0x308] sm:$0xff]
        %v240 = vld [vmem:[%s120 + $0x310] sm:$0xff]
        %v241 = vld [vmem:[%s120 + $0x318] sm:$0xff]
        %v242 = vld [vmem:[%s120 + $0x320] sm:$0xff]
        %v243 = vld [vmem:[%s120 + $0x328] sm:$0xff]
        %v244 = vld [vmem:[%s120 + $0x330] sm:$0xff]
        %v245 = vld [vmem:[%s120 + $0x338] sm:$0xff]
        %v246 = vld [vmem:[%s120 + $0x340] sm:$0xff]
        %v247 = vld [vmem:[%s120 + $0x348] sm:$0xff]
        %v248 = vld [vmem:[%s120 + $0x350] sm:$0xff]
        %v249 = vld [vmem:[%s120 + $0x358] sm:$0xff]
        %v250 = vld [vmem:[%s120 + $0x360] sm:$0xff]
        %v251 = vld [vmem:[%s120 + $0x368] sm:$0xff]
        %v252 = vld [vmem:[%s120 + $0x370] sm:$0xff]
        %v253 = vld [vmem:[%s120 + $0x378] sm:$0xff]
        %v254 = vld [vmem:[%s120 + $0x380] sm:$0xff]
        %v255 = vld [vmem:[%s120 + $0x388] sm:$0xff]
        %v256 = vld [vmem:[%s120 + $0x390] sm:$0xff]
        %v257 = vld [vmem:[%s120 + $0x398] sm:$0xff]
        %v258 = vld [vmem:[%s120 + $0x3a0] sm:$0xff]
        %v259 = vld [vmem:[%s120 + $0x3a8] sm:$0xff]
        %v260 = vld [vmem:[%s120 + $0x3b0] sm:$0xff]
        %v261 = vld [vmem:[%s120 + $0x3b8] sm:$0xff]
        %v262 = vld [vmem:[%s120 + $0x3c0] sm:$0xff]
        %v263 = vld [vmem:[%s120 + $0x3c8] sm:$0xff]
        %v264 = vld [vmem:[%s120 + $0x3d0] sm:$0xff]
        %v265 = vld [vmem:[%s120 + $0x3d8] sm:$0xff]
        %v266 = vld [vmem:[%s120 + $0x3e0] sm:$0xff]
        %v267 = vld [vmem:[%s120 + $0x3e8] sm:$0xff]
        %v268 = vld [vmem:[%s120 + $0x3f0] sm:$0xff]
        %v269 = vld [vmem:[%s120 + $0x3f8] sm:$0xff]
        %v270 = vld [vmem:[%s120 + $0x400] sm:$0xff]
        %v271 = vld [vmem:[%s120 + $0x408] sm:$0xff]
        %v272 = vld [vmem:[%s120 + $0x410] sm:$0xff]
        %v273 = vld [vmem:[%s120 + $0x418] sm:$0xff]
        %v274 = vld [vmem:[%s120 + $0x420] sm:$0xff]
        %v275 = vld [vmem:[%s120 + $0x428] sm:$0xff]
        %v276 = vld [vmem:[%s120 + $0x430] sm:$0xff]
        %v277 = vld [vmem:[%s120 + $0x438] sm:$0xff]
        %v278 = vld [vmem:[%s120 + $0x440] sm:$0xff]
        %v279 = vld [vmem:[%s120 + $0x448] sm:$0xff]
        %v280 = vld [vmem:[%s120 + $0x450] sm:$0xff]
        %v281 = vld [vmem:[%s120 + $0x458] sm:$0xff]
        %v282 = vld [vmem:[%s120 + $0x460] sm:$0xff]
        %v283 = vld [vmem:[%s120 + $0x468] sm:$0xff]
        %v284 = vld [vmem:[%s120 + $0x470] sm:$0xff]
        %v285 = vld [vmem:[%s120 + $0x478] sm:$0xff]
        %v286 = vld [vmem:[%s120 + $0x480] sm:$0xff]
        %v287 = vld [vmem:[%s120 + $0x488] sm:$0xff]
        %v288 = vld [vmem:[%s120 + $0x490] sm:$0xff]
        %v289 = vld [vmem:[%s120 + $0x498] sm:$0xff]
        %v290 = vld [vmem:[%s120 + $0x4a0] sm:$0xff]
        %v291 = vld [vmem:[%s120 + $0x4a8] sm:$0xff]
        %v292 = vld [vmem:[%s120 + $0x4b0] sm:$0xff]
        %v293 = vld [vmem:[%s120 + $0x4b8] sm:$0xff]
        %v294 = vld [vmem:[%s120 + $0x4c0] sm:$0xff]
        %v295 = vld [vmem:[%s120 + $0x4c8] sm:$0xff]
        %v296 = vld [vmem:[%s120 + $0x4d0] sm:$0xff]
        %v297 = vld [vmem:[%s120 + $0x4d8] sm:$0xff]
        %v298 = vld [vmem:[%s120 + $0x4e0] sm:$0xff]
        %v299 = vld [vmem:[%s120 + $0x4e8] sm:$0xff]
        %v300 = vld [vmem:[%s120 + $0x4f0] sm:$0xff]
        %v301 = vld [vmem:[%s120 + $0x4f8] sm:$0xff]
        %v302 = vld [vmem:[%s120 + $0x500] sm:$0xff]
        %v303 = vld [vmem:[%s120 + $0x508] sm:$0xff]
        %v304 = vld [vmem:[%s120 + $0x510] sm:$0xff]
        %v305 = vld [vmem:[%s120 + $0x518] sm:$0xff]
        %v306 = vld [vmem:[%s120 + $0x520] sm:$0xff]
        %v307 = vld [vmem:[%s120 + $0x528] sm:$0xff]
        %v308 = vld [vmem:[%s120 + $0x530] sm:$0xff]
        %v309 = vld [vmem:[%s120 + $0x538] sm:$0xff]
        %v310 = vld [vmem:[%s120 + $0x540] sm:$0xff]
        %v311 = vld [vmem:[%s120 + $0x548] sm:$0xff]
        %v312 = vld [vmem:[%s120 + $0x550] sm:$0xff]
        %v313 = vld [vmem:[%s120 + $0x558] sm:$0xff]
        %v314 = vld [vmem:[%s120 + $0x560] sm:$0xff]
        %v315 = vld [vmem:[%s120 + $0x568] sm:$0xff]
        %v316 = vld [vmem:[%s120 + $0x570] sm:$0xff]
        %v317 = vld [vmem:[%s120 + $0x578] sm:$0xff]
        %v318 = vld [vmem:[%s120 + $0x580] sm:$0xff]
        %v319 = vld [vmem:[%s120 + $0x588] sm:$0xff]
        %v320 = vld [vmem:[%s120 + $0x590] sm:$0xff]
        %v321 = vld [vmem:[%s120 + $0x598] sm:$0xff]
        %v322 = vld [vmem:[%s120 + $0x5a0] sm:$0xff]
        %v323 = vld [vmem:[%s120 + $0x5a8] sm:$0xff]
        %v324 = vld [vmem:[%s120 + $0x5b0] sm:$0xff]
        %v325 = vld [vmem:[%s120 + $0x5b8] sm:$0xff]
        %v326 = vld [vmem:[%s120 + $0x5c0] sm:$0xff]
        %v327 = vld [vmem:[%s120 + $0x5c8] sm:$0xff]
        %v328 = vld [vmem:[%s120 + $0x5d0] sm:$0xff]
        %v329 = vld [vmem:[%s120 + $0x5d8] sm:$0xff]
        %v330 = vld [vmem:[%s120 + $0x5e0] sm:$0xff]
        %v331 = vld [vmem:[%s120 + $0x5e8] sm:$0xff]
        %v332 = vld [vmem:[%s120 + $0x5f0] sm:$0xff]
        %v333 = vld [vmem:[%s120 + $0x5f8] sm:$0xff]
        %v334 = vld [vmem:[%s120 + $0x600] sm:$0xff]
        %v335 = vld [vmem:[%s120 + $0x608] sm:$0xff]
        %v336 = vld [vmem:[%s120 + $0x610] sm:$0xff]
        %v337 = vld [vmem:[%s120 + $0x618] sm:$0xff]
        %v338 = vld [vmem:[%s120 + $0x620] sm:$0xff]
        %v339 = vld [vmem:[%s120 + $0x628] sm:$0xff]
        %v340 = vld [vmem:[%s120 + $0x630] sm:$0xff]
        %v341 = vld [vmem:[%s120 + $0x638] sm:$0xff]
        %v342 = vld [vmem:[%s120 + $0x640] sm:$0xff]
        %v343 = vld [vmem:[%s120 + $0x648] sm:$0xff]
        %v344 = vld [vmem:[%s120 + $0x650] sm:$0xff]
        %v345 = vld [vmem:[%s120 + $0x658] sm:$0xff]
        %v346 = vld [vmem:[%s120 + $0x660] sm:$0xff]
        %v347 = vld [vmem:[%s120 + $0x668] sm:$0xff]
        %v348 = vld [vmem:[%s120 + $0x670] sm:$0xff]
        %v349 = vld [vmem:[%s120 + $0x678] sm:$0xff]
        %v350 = vld [vmem:[%s120 + $0x680] sm:$0xff]
        %v351 = vld [vmem:[%s120 + $0x688] sm:$0xff]
        %v352 = vld [vmem:[%s120 + $0x690] sm:$0xff]
        %v353 = vld [vmem:[%s120 + $0x698] sm:$0xff]
        %v354 = vld [vmem:[%s120 + $0x6a0] sm:$0xff]
        %v355 = vld [vmem:[%s120 + $0x6a8] sm:$0xff]
        %v356 = vld [vmem:[%s120 + $0x6b0] sm:$0xff]
        %v357 = vld [vmem:[%s120 + $0x6b8] sm:$0xff]
        %v358 = vld [vmem:[%s120 + $0x6c0] sm:$0xff]
        %v359 = vld [vmem:[%s120 + $0x6c8] sm:$0xff]
        %v360 = vld [vmem:[%s120 + $0x6d0] sm:$0xff]
        %v361 = vld [vmem:[%s120 + $0x6d8] sm:$0xff]
        %v362 = vld [vmem:[%s120 + $0x6e0] sm:$0xff]
        %v363 = vld [vmem:[%s120 + $0x6e8] sm:$0xff]
        %v364 = vld [vmem:[%s120 + $0x6f0] sm:$0xff]
        %v365 = vld [vmem:[%s120 + $0x6f8] sm:$0xff]
        %v366 = vld [vmem:[%s120 + $0x700] sm:$0xff]
        %v367 = vld [vmem:[%s120 + $0x708] sm:$0xff]
        %v368 = vld [vmem:[%s120 + $0x710] sm:$0xff]
        %v369 = vld [vmem:[%s120 + $0x718] sm:$0xff]
        %v370 = vld [vmem:[%s120 + $0x720] sm:$0xff]
        %v371 = vld [vmem:[%s120 + $0x728] sm:$0xff]
        %v372 = vld [vmem:[%s120 + $0x730] sm:$0xff]
        %v373 = vld [vmem:[%s120 + $0x738] sm:$0xff]
        %v374 = vld [vmem:[%s120 + $0x740] sm:$0xff]
        %v375 = vld [vmem:[%s120 + $0x748] sm:$0xff]
        %v376 = vld [vmem:[%s120 + $0x750] sm:$0xff]
        %v377 = vld [vmem:[%s120 + $0x758] sm:$0xff]
        %v378 = vld [vmem:[%s120 + $0x760] sm:$0xff]
        %v379 = vld [vmem:[%s120 + $0x768] sm:$0xff]
        %v380 = vld [vmem:[%s120 + $0x770] sm:$0xff]
        %v381 = vld [vmem:[%s120 + $0x778] sm:$0xff]
        %v382 = vld [vmem:[%s120 + $0x780] sm:$0xff]
        %v383 = vld [vmem:[%s120 + $0x788] sm:$0xff]
        %v384 = vld [vmem:[%s120 + $0x790] sm:$0xff]
        %v385 = vld [vmem:[%s120 + $0x798] sm:$0xff]
        %v386 = vld [vmem:[%s120 + $0x7a0] sm:$0xff]
        %v387 = vld [vmem:[%s120 + $0x7a8] sm:$0xff]
        %v388 = vld [vmem:[%s120 + $0x7b0] sm:$0xff]
        %v389 = vld [vmem:[%s120 + $0x7b8] sm:$0xff]
        %v390 = vld [vmem:[%s120 + $0x7c0] sm:$0xff]
        %v391 = vld [vmem:[%s120 + $0x7c8] sm:$0xff]
        %v392 = vld [vmem:[%s120 + $0x7d0] sm:$0xff]
        %v393 = vld [vmem:[%s120 + $0x7d8] sm:$0xff]
        %v394 = vld [vmem:[%s120 + $0x7e0] sm:$0xff]
        %v395 = vld [vmem:[%s120 + $0x7e8] sm:$0xff]
        %v396 = vld [vmem:[%s120 + $0x7f0] sm:$0xff]
        %v397 = vld [vmem:[%s120 + $0x7f8] sm:$0xff]
        %v398 = vlaneseq
        %v399 = vshrl.u32 %v398, 7
        %v400 = vadd.s32 %v399, 8
        %v401 = vadd.s32 %v399, 16
        %v402 = vadd.s32 %v399, 24
        %v403 = vadd.s32 %v399, 32
        %v404 = vadd.s32 %v399, 40
        %v405 = vadd.s32 %v399, 48
        %v406 = vadd.s32 %v399, 56
        %v407 = vadd.s32 %v399, 64
        %v408 = vadd.s32 %v399, 72
        %v409 = vadd.s32 %v399, 80
        %v410 = vadd.s32 %v399, 88
        %v411 = vadd.s32 %v399, 96
        %v412 = vadd.s32 %v399, 104
        %v413 = vadd.s32 %v399, 112
        %v414 = vadd.s32 %v399, 120
        %v415 = vadd.s32 %v399, 128
        %v416 = vadd.s32 %v399, 136
        %v417 = vadd.s32 %v399, 144
        %v418 = vadd.s32 %v399, 152
        %v419 = vadd.s32 %v399, 160
        %v420 = vadd.s32 %v399, 168
        %v421 = vadd.s32 %v399, 176
        %v422 = vadd.s32 %v399, 184
        %v423 = vadd.s32 %v399, 192
        %v424 = vadd.s32 %v399, 200
        %v425 = vadd.s32 %v399, 208
        %v426 = vadd.s32 %v399, 216
        %v427 = vadd.s32 %v399, 224
        %v428 = vadd.s32 %v399, 232
        %v429 = vadd.s32 %v399, 240
        %v430 = vadd.s32 %v399, 248
        %v431 = vadd.s32 %v399, 256
        %v432 = vadd.s32 %v399, 264
        %v433 = vadd.s32 %v399, 272
        %v434 = vadd.s32 %v399, 280
        %v435 = vadd.s32 %v399, 288
        %v436 = vadd.s32 %v399, 296
        %v437 = vadd.s32 %v399, 304
        %v438 = vadd.s32 %v399, 312
        %v439 = vadd.s32 %v399, 320
        %v440 = vadd.s32 %v399, 328
        %v441 = vadd.s32 %v399, 336
        %v442 = vadd.s32 %v399, 344
        %v443 = vadd.s32 %v399, 352
        %v444 = vadd.s32 %v399, 360
        %v445 = vadd.s32 %v399, 368
        %v446 = vadd.s32 %v399, 376
        %v447 = vadd.s32 %v399, 384
        %v448 = vadd.s32 %v399, 392
        %v449 = vadd.s32 %v399, 400
        %v450 = vadd.s32 %v399, 408
        %v451 = vadd.s32 %v399, 416
        %v452 = vadd.s32 %v399, 424
        %v453 = vadd.s32 %v399, 432
        %v454 = vadd.s32 %v399, 440
        %v455 = vadd.s32 %v399, 448
        %v456 = vadd.s32 %v399, 456
        %v457 = vadd.s32 %v399, 464
        %v458 = vadd.s32 %v399, 472
        %v459 = vadd.s32 %v399, 480
        %v460 = vadd.s32 %v399, 488
        %v461 = vadd.s32 %v399, 496
        %v462 = vadd.s32 %v399, 504
        %v463 = vadd.s32 %v399, 512
        %v464 = vadd.s32 %v399, 520
        %v465 = vadd.s32 %v399, 528
        %v466 = vadd.s32 %v399, 536
        %v467 = vadd.s32 %v399, 544
        %v468 = vadd.s32 %v399, 552
        %v469 = vadd.s32 %v399, 560
        %v470 = vadd.s32 %v399, 568
        %v471 = vadd.s32 %v399, 576
        %v472 = vadd.s32 %v399, 584
        %v473 = vadd.s32 %v399, 592
        %v474 = vadd.s32 %v399, 600
        %v475 = vadd.s32 %v399, 608
        %v476 = vadd.s32 %v399, 616
        %v477 = vadd.s32 %v399, 624
        %v478 = vadd.s32 %v399, 632
        %v479 = vadd.s32 %v399, 640
        %v480 = vadd.s32 %v399, 648
        %v481 = vadd.s32 %v399, 656
        %v482 = vadd.s32 %v399, 664
        %v483 = vadd.s32 %v399, 672
        %v484 = vadd.s32 %v399, 680
        %v485 = vadd.s32 %v399, 688
        %v486 = vadd.s32 %v399, 696
        %v487 = vadd.s32 %v399, 704
        %v488 = vadd.s32 %v399, 712
        %v489 = vadd.s32 %v399, 720
        %v490 = vadd.s32 %v399, 728
        %v491 = vadd.s32 %v399, 736
        %v492 = vadd.s32 %v399, 744
        %v493 = vadd.s32 %v399, 752
        %v494 = vadd.s32 %v399, 760
        %v495 = vadd.s32 %v399, 768
        %v496 = vadd.s32 %v399, 776
        %v497 = vadd.s32 %v399, 784
        %v498 = vadd.s32 %v399, 792
        %v499 = vadd.s32 %v399, 800
        %v500 = vadd.s32 %v399, 808
        %v501 = vadd.s32 %v399, 816
        %v502 = vadd.s32 %v399, 824
        %v503 = vadd.s32 %v399, 832
        %v504 = vadd.s32 %v399, 840
        %v505 = vadd.s32 %v399, 848
        %v506 = vadd.s32 %v399, 856
        %v507 = vadd.s32 %v399, 864
        %v508 = vadd.s32 %v399, 872
        %v509 = vadd.s32 %v399, 880
        %v510 = vadd.s32 %v399, 888
        %v511 = vadd.s32 %v399, 896
        %v512 = vadd.s32 %v399, 904
        %v513 = vadd.s32 %v399, 912
        %v514 = vadd.s32 %v399, 920
        %v515 = vadd.s32 %v399, 928
        %v516 = vadd.s32 %v399, 936
        %v517 = vadd.s32 %v399, 944
        %v518 = vadd.s32 %v399, 952
        %v519 = vadd.s32 %v399, 960
        %v520 = vadd.s32 %v399, 968
        %v521 = vadd.s32 %v399, 976
        %v522 = vadd.s32 %v399, 984
        %v523 = vadd.s32 %v399, 992
        %v524 = vadd.s32 %v399, 1000
        %v525 = vadd.s32 %v399, 1008
        %v526 = vadd.s32 %v399, 1016
        %v527 = vlaneseq
        %v528 = vand.u32 %v527, 127
        %v529 = vadd.s32 %v528, 128
        %s530 = smul.u32 %s20, 1024
        %v531 = vstv %s530
        %v532 = vadd.s32 %v399, %v531
        %v533 = vadd.s32 %v400, %v531
        %v534 = vadd.s32 %v401, %v531
        %v535 = vadd.s32 %v402, %v531
        %v536 = vadd.s32 %v403, %v531
        %v537 = vadd.s32 %v404, %v531
        %v538 = vadd.s32 %v405, %v531
        %v539 = vadd.s32 %v406, %v531
        %v540 = vadd.s32 %v407, %v531
        %v541 = vadd.s32 %v408, %v531
        %v542 = vadd.s32 %v409, %v531
        %v543 = vadd.s32 %v410, %v531
        %v544 = vadd.s32 %v411, %v531
        %v545 = vadd.s32 %v412, %v531
        %v546 = vadd.s32 %v413, %v531
        %v547 = vadd.s32 %v414, %v531
        %v548 = vadd.s32 %v415, %v531
        %v549 = vadd.s32 %v416, %v531
        %v550 = vadd.s32 %v417, %v531
        %v551 = vadd.s32 %v418, %v531
        %v552 = vadd.s32 %v419, %v531
        %v553 = vadd.s32 %v420, %v531
        %v554 = vadd.s32 %v421, %v531
        %v555 = vadd.s32 %v422, %v531
        %v556 = vadd.s32 %v423, %v531
        %v557 = vadd.s32 %v424, %v531
        %v558 = vadd.s32 %v425, %v531
        %v559 = vadd.s32 %v426, %v531
        %v560 = vadd.s32 %v427, %v531
        %v561 = vadd.s32 %v428, %v531
        %v562 = vadd.s32 %v429, %v531
        %v563 = vadd.s32 %v430, %v531
        %v564 = vadd.s32 %v431, %v531
        %v565 = vadd.s32 %v432, %v531
        %v566 = vadd.s32 %v433, %v531
        %v567 = vadd.s32 %v434, %v531
        %v568 = vadd.s32 %v435, %v531
        %v569 = vadd.s32 %v436, %v531
        %v570 = vadd.s32 %v437, %v531
        %v571 = vadd.s32 %v438, %v531
        %v572 = vadd.s32 %v439, %v531
        %v573 = vadd.s32 %v440, %v531
        %v574 = vadd.s32 %v441, %v531
        %v575 = vadd.s32 %v442, %v531
        %v576 = vadd.s32 %v443, %v531
        %v577 = vadd.s32 %v444, %v531
        %v578 = vadd.s32 %v445, %v531
        %v579 = vadd.s32 %v446, %v531
        %v580 = vadd.s32 %v447, %v531
        %v581 = vadd.s32 %v448, %v531
        %v582 = vadd.s32 %v449, %v531
        %v583 = vadd.s32 %v450, %v531
        %v584 = vadd.s32 %v451, %v531
        %v585 = vadd.s32 %v452, %v531
        %v586 = vadd.s32 %v453, %v531
        %v587 = vadd.s32 %v454, %v531
        %v588 = vadd.s32 %v455, %v531
        %v589 = vadd.s32 %v456, %v531
        %v590 = vadd.s32 %v457, %v531
        %v591 = vadd.s32 %v458, %v531
        %v592 = vadd.s32 %v459, %v531
        %v593 = vadd.s32 %v460, %v531
        %v594 = vadd.s32 %v461, %v531
        %v595 = vadd.s32 %v462, %v531
        %v596 = vadd.s32 %v463, %v531
        %v597 = vadd.s32 %v464, %v531
        %v598 = vadd.s32 %v465, %v531
        %v599 = vadd.s32 %v466, %v531
        %v600 = vadd.s32 %v467, %v531
        %v601 = vadd.s32 %v468, %v531
        %v602 = vadd.s32 %v469, %v531
        %v603 = vadd.s32 %v470, %v531
        %v604 = vadd.s32 %v471, %v531
        %v605 = vadd.s32 %v472, %v531
        %v606 = vadd.s32 %v473, %v531
        %v607 = vadd.s32 %v474, %v531
        %v608 = vadd.s32 %v475, %v531
        %v609 = vadd.s32 %v476, %v531
        %v610 = vadd.s32 %v477, %v531
        %v611 = vadd.s32 %v478, %v531
        %v612 = vadd.s32 %v479, %v531
        %v613 = vadd.s32 %v480, %v531
        %v614 = vadd.s32 %v481, %v531
        %v615 = vadd.s32 %v482, %v531
        %v616 = vadd.s32 %v483, %v531
        %v617 = vadd.s32 %v484, %v531
        %v618 = vadd.s32 %v485, %v531
        %v619 = vadd.s32 %v486, %v531
        %v620 = vadd.s32 %v487, %v531
        %v621 = vadd.s32 %v488, %v531
        %v622 = vadd.s32 %v489, %v531
        %v623 = vadd.s32 %v490, %v531
        %v624 = vadd.s32 %v491, %v531
        %v625 = vadd.s32 %v492, %v531
        %v626 = vadd.s32 %v493, %v531
        %v627 = vadd.s32 %v494, %v531
        %v628 = vadd.s32 %v495, %v531
        %v629 = vadd.s32 %v496, %v531
        %v630 = vadd.s32 %v497, %v531
        %v631 = vadd.s32 %v498, %v531
        %v632 = vadd.s32 %v499, %v531
        %v633 = vadd.s32 %v500, %v531
        %v634 = vadd.s32 %v501, %v531
        %v635 = vadd.s32 %v502, %v531
        %v636 = vadd.s32 %v503, %v531
        %v637 = vadd.s32 %v504, %v531
        %v638 = vadd.s32 %v505, %v531
        %v639 = vadd.s32 %v506, %v531
        %v640 = vadd.s32 %v507, %v531
        %v641 = vadd.s32 %v508, %v531
        %v642 = vadd.s32 %v509, %v531
        %v643 = vadd.s32 %v510, %v531
        %v644 = vadd.s32 %v511, %v531
        %v645 = vadd.s32 %v512, %v531
        %v646 = vadd.s32 %v513, %v531
        %v647 = vadd.s32 %v514, %v531
        %v648 = vadd.s32 %v515, %v531
        %v649 = vadd.s32 %v516, %v531
        %v650 = vadd.s32 %v517, %v531
        %v651 = vadd.s32 %v518, %v531
        %v652 = vadd.s32 %v519, %v531
        %v653 = vadd.s32 %v520, %v531
        %v654 = vadd.s32 %v521, %v531
        %v655 = vadd.s32 %v522, %v531
        %v656 = vadd.s32 %v523, %v531
        %v657 = vadd.s32 %v524, %v531
        %v658 = vadd.s32 %v525, %v531
        %v659 = vadd.s32 %v526, %v531
        %v660 = vmul.u32 %v532, 256
        %v661 = vmul.u32 %v533, 256
        %v662 = vmul.u32 %v534, 256
        %v663 = vmul.u32 %v535, 256
        %v664 = vmul.u32 %v536, 256
        %v665 = vmul.u32 %v537, 256
        %v666 = vmul.u32 %v538, 256
        %v667 = vmul.u32 %v539, 256
        %v668 = vmul.u32 %v540, 256
        %v669 = vmul.u32 %v541, 256
        %v670 = vmul.u32 %v542, 256
        %v671 = vmul.u32 %v543, 256
        %v672 = vmul.u32 %v544, 256
        %v673 = vmul.u32 %v545, 256
        %v674 = vmul.u32 %v546, 256
        %v675 = vmul.u32 %v547, 256
        %v676 = vmul.u32 %v548, 256
        %v677 = vmul.u32 %v549, 256
        %v678 = vmul.u32 %v550, 256
        %v679 = vmul.u32 %v551, 256
        %v680 = vmul.u32 %v552, 256
        %v681 = vmul.u32 %v553, 256
        %v682 = vmul.u32 %v554, 256
        %v683 = vmul.u32 %v555, 256
        %v684 = vmul.u32 %v556, 256
        %v685 = vmul.u32 %v557, 256
        %v686 = vmul.u32 %v558, 256
        %v687 = vmul.u32 %v559, 256
        %v688 = vmul.u32 %v560, 256
        %v689 = vmul.u32 %v561, 256
        %v690 = vmul.u32 %v562, 256
        %v691 = vmul.u32 %v563, 256
        %v692 = vmul.u32 %v564, 256
        %v693 = vmul.u32 %v565, 256
        %v694 = vmul.u32 %v566, 256
        %v695 = vmul.u32 %v567, 256
        %v696 = vmul.u32 %v568, 256
        %v697 = vmul.u32 %v569, 256
        %v698 = vmul.u32 %v570, 256
        %v699 = vmul.u32 %v571, 256
        %v700 = vmul.u32 %v572, 256
        %v701 = vmul.u32 %v573, 256
        %v702 = vmul.u32 %v574, 256
        %v703 = vmul.u32 %v575, 256
        %v704 = vmul.u32 %v576, 256
        %v705 = vmul.u32 %v577, 256
        %v706 = vmul.u32 %v578, 256
        %v707 = vmul.u32 %v579, 256
        %v708 = vmul.u32 %v580, 256
        %v709 = vmul.u32 %v581, 256
        %v710 = vmul.u32 %v582, 256
        %v711 = vmul.u32 %v583, 256
        %v712 = vmul.u32 %v584, 256
        %v713 = vmul.u32 %v585, 256
        %v714 = vmul.u32 %v586, 256
        %v715 = vmul.u32 %v587, 256
        %v716 = vmul.u32 %v588, 256
        %v717 = vmul.u32 %v589, 256
        %v718 = vmul.u32 %v590, 256
        %v719 = vmul.u32 %v591, 256
        %v720 = vmul.u32 %v592, 256
        %v721 = vmul.u32 %v593, 256
        %v722 = vmul.u32 %v594, 256
        %v723 = vmul.u32 %v595, 256
        %v724 = vmul.u32 %v596, 256
        %v725 = vmul.u32 %v597, 256
        %v726 = vmul.u32 %v598, 256
        %v727 = vmul.u32 %v599, 256
        %v728 = vmul.u32 %v600, 256
        %v729 = vmul.u32 %v601, 256
        %v730 = vmul.u32 %v602, 256
        %v731 = vmul.u32 %v603, 256
        %v732 = vmul.u32 %v604, 256
        %v733 = vmul.u32 %v605, 256
        %v734 = vmul.u32 %v606, 256
        %v735 = vmul.u32 %v607, 256
        %v736 = vmul.u32 %v608, 256
        %v737 = vmul.u32 %v609, 256
        %v738 = vmul.u32 %v610, 256
        %v739 = vmul.u32 %v611, 256
        %v740 = vmul.u32 %v612, 256
        %v741 = vmul.u32 %v613, 256
        %v742 = vmul.u32 %v614, 256
        %v743 = vmul.u32 %v615, 256
        %v744 = vmul.u32 %v616, 256
        %v745 = vmul.u32 %v617, 256
        %v746 = vmul.u32 %v618, 256
        %v747 = vmul.u32 %v619, 256
        %v748 = vmul.u32 %v620, 256
        %v749 = vmul.u32 %v621, 256
        %v750 = vmul.u32 %v622, 256
        %v751 = vmul.u32 %v623, 256
        %v752 = vmul.u32 %v624, 256
        %v753 = vmul.u32 %v625, 256
        %v754 = vmul.u32 %v626, 256
        %v755 = vmul.u32 %v627, 256
        %v756 = vmul.u32 %v628, 256
        %v757 = vmul.u32 %v629, 256
        %v758 = vmul.u32 %v630, 256
        %v759 = vmul.u32 %v631, 256
        %v760 = vmul.u32 %v632, 256
        %v761 = vmul.u32 %v633, 256
        %v762 = vmul.u32 %v634, 256
        %v763 = vmul.u32 %v635, 256
        %v764 = vmul.u32 %v636, 256
        %v765 = vmul.u32 %v637, 256
        %v766 = vmul.u32 %v638, 256
        %v767 = vmul.u32 %v639, 256
        %v768 = vmul.u32 %v640, 256
        %v769 = vmul.u32 %v641, 256
        %v770 = vmul.u32 %v642, 256
        %v771 = vmul.u32 %v643, 256
        %v772 = vmul.u32 %v644, 256
        %v773 = vmul.u32 %v645, 256
        %v774 = vmul.u32 %v646, 256
        %v775 = vmul.u32 %v647, 256
        %v776 = vmul.u32 %v648, 256
        %v777 = vmul.u32 %v649, 256
        %v778 = vmul.u32 %v650, 256
        %v779 = vmul.u32 %v651, 256
        %v780 = vmul.u32 %v652, 256
        %v781 = vmul.u32 %v653, 256
        %v782 = vmul.u32 %v654, 256
        %v783 = vmul.u32 %v655, 256
        %v784 = vmul.u32 %v656, 256
        %v785 = vmul.u32 %v657, 256
        %v786 = vmul.u32 %v658, 256
        %v787 = vmul.u32 %v659, 256
        %v788 = vadd.s32 %v660, %v528
        %v789 = vadd.s32 %v660, %v529
        %v790 = vadd.s32 %v661, %v528
        %v791 = vadd.s32 %v661, %v529
        %v792 = vadd.s32 %v662, %v528
        %v793 = vadd.s32 %v662, %v529
        %v794 = vadd.s32 %v663, %v528
        %v795 = vadd.s32 %v663, %v529
        %v796 = vadd.s32 %v664, %v528
        %v797 = vadd.s32 %v664, %v529
        %v798 = vadd.s32 %v665, %v528
        %v799 = vadd.s32 %v665, %v529
        %v800 = vadd.s32 %v666, %v528
        %v801 = vadd.s32 %v666, %v529
        %v802 = vadd.s32 %v667, %v528
        %v803 = vadd.s32 %v667, %v529
        %v804 = vadd.s32 %v668, %v528
        %v805 = vadd.s32 %v668, %v529
        %v806 = vadd.s32 %v669, %v528
        %v807 = vadd.s32 %v669, %v529
        %v808 = vadd.s32 %v670, %v528
        %v809 = vadd.s32 %v670, %v529
        %v810 = vadd.s32 %v671, %v528
        %v811 = vadd.s32 %v671, %v529
        %v812 = vadd.s32 %v672, %v528
        %v813 = vadd.s32 %v672, %v529
        %v814 = vadd.s32 %v673, %v528
        %v815 = vadd.s32 %v673, %v529
        %v816 = vadd.s32 %v674, %v528
        %v817 = vadd.s32 %v674, %v529
        %v818 = vadd.s32 %v675, %v528
        %v819 = vadd.s32 %v675, %v529
        %v820 = vadd.s32 %v676, %v528
        %v821 = vadd.s32 %v676, %v529
        %v822 = vadd.s32 %v677, %v528
        %v823 = vadd.s32 %v677, %v529
        %v824 = vadd.s32 %v678, %v528
        %v825 = vadd.s32 %v678, %v529
        %v826 = vadd.s32 %v679, %v528
        %v827 = vadd.s32 %v679, %v529
        %v828 = vadd.s32 %v680, %v528
        %v829 = vadd.s32 %v680, %v529
        %v830 = vadd.s32 %v681, %v528
        %v831 = vadd.s32 %v681, %v529
        %v832 = vadd.s32 %v682, %v528
        %v833 = vadd.s32 %v682, %v529
        %v834 = vadd.s32 %v683, %v528
        %v835 = vadd.s32 %v683, %v529
        %v836 = vadd.s32 %v684, %v528
        %v837 = vadd.s32 %v684, %v529
        %v838 = vadd.s32 %v685, %v528
        %v839 = vadd.s32 %v685, %v529
        %v840 = vadd.s32 %v686, %v528
        %v841 = vadd.s32 %v686, %v529
        %v842 = vadd.s32 %v687, %v528
        %v843 = vadd.s32 %v687, %v529
        %v844 = vadd.s32 %v688, %v528
        %v845 = vadd.s32 %v688, %v529
        %v846 = vadd.s32 %v689, %v528
        %v847 = vadd.s32 %v689, %v529
        %v848 = vadd.s32 %v690, %v528
        %v849 = vadd.s32 %v690, %v529
        %v850 = vadd.s32 %v691, %v528
        %v851 = vadd.s32 %v691, %v529
        %v852 = vadd.s32 %v692, %v528
        %v853 = vadd.s32 %v692, %v529
        %v854 = vadd.s32 %v693, %v528
        %v855 = vadd.s32 %v693, %v529
        %v856 = vadd.s32 %v694, %v528
        %v857 = vadd.s32 %v694, %v529
        %v858 = vadd.s32 %v695, %v528
        %v859 = vadd.s32 %v695, %v529
        %v860 = vadd.s32 %v696, %v528
        %v861 = vadd.s32 %v696, %v529
        %v862 = vadd.s32 %v697, %v528
        %v863 = vadd.s32 %v697, %v529
        %v864 = vadd.s32 %v698, %v528
        %v865 = vadd.s32 %v698, %v529
        %v866 = vadd.s32 %v699, %v528
        %v867 = vadd.s32 %v699, %v529
        %v868 = vadd.s32 %v700, %v528
        %v869 = vadd.s32 %v700, %v529
        %v870 = vadd.s32 %v701, %v528
        %v871 = vadd.s32 %v701, %v529
        %v872 = vadd.s32 %v702, %v528
        %v873 = vadd.s32 %v702, %v529
        %v874 = vadd.s32 %v703, %v528
        %v875 = vadd.s32 %v703, %v529
        %v876 = vadd.s32 %v704, %v528
        %v877 = vadd.s32 %v704, %v529
        %v878 = vadd.s32 %v705, %v528
        %v879 = vadd.s32 %v705, %v529
        %v880 = vadd.s32 %v706, %v528
        %v881 = vadd.s32 %v706, %v529
        %v882 = vadd.s32 %v707, %v528
        %v883 = vadd.s32 %v707, %v529
        %v884 = vadd.s32 %v708, %v528
        %v885 = vadd.s32 %v708, %v529
        %v886 = vadd.s32 %v709, %v528
        %v887 = vadd.s32 %v709, %v529
        %v888 = vadd.s32 %v710, %v528
        %v889 = vadd.s32 %v710, %v529
        %v890 = vadd.s32 %v711, %v528
        %v891 = vadd.s32 %v711, %v529
        %v892 = vadd.s32 %v712, %v528
        %v893 = vadd.s32 %v712, %v529
        %v894 = vadd.s32 %v713, %v528
        %v895 = vadd.s32 %v713, %v529
        %v896 = vadd.s32 %v714, %v528
        %v897 = vadd.s32 %v714, %v529
        %v898 = vadd.s32 %v715, %v528
        %v899 = vadd.s32 %v715, %v529
        %v900 = vadd.s32 %v716, %v528
        %v901 = vadd.s32 %v716, %v529
        %v902 = vadd.s32 %v717, %v528
        %v903 = vadd.s32 %v717, %v529
        %v904 = vadd.s32 %v718, %v528
        %v905 = vadd.s32 %v718, %v529
        %v906 = vadd.s32 %v719, %v528
        %v907 = vadd.s32 %v719, %v529
        %v908 = vadd.s32 %v720, %v528
        %v909 = vadd.s32 %v720, %v529
        %v910 = vadd.s32 %v721, %v528
        %v911 = vadd.s32 %v721, %v529
        %v912 = vadd.s32 %v722, %v528
        %v913 = vadd.s32 %v722, %v529
        %v914 = vadd.s32 %v723, %v528
        %v915 = vadd.s32 %v723, %v529
        %v916 = vadd.s32 %v724, %v528
        %v917 = vadd.s32 %v724, %v529
        %v918 = vadd.s32 %v725, %v528
        %v919 = vadd.s32 %v725, %v529
        %v920 = vadd.s32 %v726, %v528
        %v921 = vadd.s32 %v726, %v529
        %v922 = vadd.s32 %v727, %v528
        %v923 = vadd.s32 %v727, %v529
        %v924 = vadd.s32 %v728, %v528
        %v925 = vadd.s32 %v728, %v529
        %v926 = vadd.s32 %v729, %v528
        %v927 = vadd.s32 %v729, %v529
        %v928 = vadd.s32 %v730, %v528
        %v929 = vadd.s32 %v730, %v529
        %v930 = vadd.s32 %v731, %v528
        %v931 = vadd.s32 %v731, %v529
        %v932 = vadd.s32 %v732, %v528
        %v933 = vadd.s32 %v732, %v529
        %v934 = vadd.s32 %v733, %v528
        %v935 = vadd.s32 %v733, %v529
        %v936 = vadd.s32 %v734, %v528
        %v937 = vadd.s32 %v734, %v529
        %v938 = vadd.s32 %v735, %v528
        %v939 = vadd.s32 %v735, %v529
        %v940 = vadd.s32 %v736, %v528
        %v941 = vadd.s32 %v736, %v529
        %v942 = vadd.s32 %v737, %v528
        %v943 = vadd.s32 %v737, %v529
        %v944 = vadd.s32 %v738, %v528
        %v945 = vadd.s32 %v738, %v529
        %v946 = vadd.s32 %v739, %v528
        %v947 = vadd.s32 %v739, %v529
        %v948 = vadd.s32 %v740, %v528
        %v949 = vadd.s32 %v740, %v529
        %v950 = vadd.s32 %v741, %v528
        %v951 = vadd.s32 %v741, %v529
        %v952 = vadd.s32 %v742, %v528
        %v953 = vadd.s32 %v742, %v529
        %v954 = vadd.s32 %v743, %v528
        %v955 = vadd.s32 %v743, %v529
        %v956 = vadd.s32 %v744, %v528
        %v957 = vadd.s32 %v744, %v529
        %v958 = vadd.s32 %v745, %v528
        %v959 = vadd.s32 %v745, %v529
        %v960 = vadd.s32 %v746, %v528
        %v961 = vadd.s32 %v746, %v529
        %v962 = vadd.s32 %v747, %v528
        %v963 = vadd.s32 %v747, %v529
        %v964 = vadd.s32 %v748, %v528
        %v965 = vadd.s32 %v748, %v529
        %v966 = vadd.s32 %v749, %v528
        %v967 = vadd.s32 %v749, %v529
        %v968 = vadd.s32 %v750, %v528
        %v969 = vadd.s32 %v750, %v529
        %v970 = vadd.s32 %v751, %v528
        %v971 = vadd.s32 %v751, %v529
        %v972 = vadd.s32 %v752, %v528
        %v973 = vadd.s32 %v752, %v529
        %v974 = vadd.s32 %v753, %v528
        %v975 = vadd.s32 %v753, %v529
        %v976 = vadd.s32 %v754, %v528
        %v977 = vadd.s32 %v754, %v529
        %v978 = vadd.s32 %v755, %v528
        %v979 = vadd.s32 %v755, %v529
        %v980 = vadd.s32 %v756, %v528
        %v981 = vadd.s32 %v756, %v529
        %v982 = vadd.s32 %v757, %v528
        %v983 = vadd.s32 %v757, %v529
        %v984 = vadd.s32 %v758, %v528
        %v985 = vadd.s32 %v758, %v529
        %v986 = vadd.s32 %v759, %v528
        %v987 = vadd.s32 %v759, %v529
        %v988 = vadd.s32 %v760, %v528
        %v989 = vadd.s32 %v760, %v529
        %v990 = vadd.s32 %v761, %v528
        %v991 = vadd.s32 %v761, %v529
        %v992 = vadd.s32 %v762, %v528
        %v993 = vadd.s32 %v762, %v529
        %v994 = vadd.s32 %v763, %v528
        %v995 = vadd.s32 %v763, %v529
        %v996 = vadd.s32 %v764, %v528
        %v997 = vadd.s32 %v764, %v529
        %v998 = vadd.s32 %v765, %v528
        %v999 = vadd.s32 %v765, %v529
        %v1000 = vadd.s32 %v766, %v528
        %v1001 = vadd.s32 %v766, %v529
        %v1002 = vadd.s32 %v767, %v528
        %v1003 = vadd.s32 %v767, %v529
        %v1004 = vadd.s32 %v768, %v528
        %v1005 = vadd.s32 %v768, %v529
        %v1006 = vadd.s32 %v769, %v528
        %v1007 = vadd.s32 %v769, %v529
        %v1008 = vadd.s32 %v770, %v528
        %v1009 = vadd.s32 %v770, %v529
        %v1010 = vadd.s32 %v771, %v528
        %v1011 = vadd.s32 %v771, %v529
        %v1012 = vadd.s32 %v772, %v528
        %v1013 = vadd.s32 %v772, %v529
        %v1014 = vadd.s32 %v773, %v528
        %v1015 = vadd.s32 %v773, %v529
        %v1016 = vadd.s32 %v774, %v528
        %v1017 = vadd.s32 %v774, %v529
        %v1018 = vadd.s32 %v775, %v528
        %v1019 = vadd.s32 %v775, %v529
        %v1020 = vadd.s32 %v776, %v528
        %v1021 = vadd.s32 %v776, %v529
        %v1022 = vadd.s32 %v777, %v528
        %v1023 = vadd.s32 %v777, %v529
        %v1024 = vadd.s32 %v778, %v528
        %v1025 = vadd.s32 %v778, %v529
        %v1026 = vadd.s32 %v779, %v528
        %v1027 = vadd.s32 %v779, %v529
        %v1028 = vadd.s32 %v780, %v528
        %v1029 = vadd.s32 %v780, %v529
        %v1030 = vadd.s32 %v781, %v528
        %v1031 = vadd.s32 %v781, %v529
        %v1032 = vadd.s32 %v782, %v528
        %v1033 = vadd.s32 %v782, %v529
        %v1034 = vadd.s32 %v783, %v528
        %v1035 = vadd.s32 %v783, %v529
        %v1036 = vadd.s32 %v784, %v528
        %v1037 = vadd.s32 %v784, %v529
        %v1038 = vadd.s32 %v785, %v528
        %v1039 = vadd.s32 %v785, %v529
        %v1040 = vadd.s32 %v786, %v528
        %v1041 = vadd.s32 %v786, %v529
        %v1042 = vadd.s32 %v787, %v528
        %v1043 = vadd.s32 %v787, %v529
        %s1044 = sld [smem:[#allocation3]]
        %s1045 = smul.u32 %s1044, 2654435769
        %v1046 = vstv %s1045
        %v1047 = vadd.s32 %v788, %v1046
        %v1048 = vadd.s32 %v789, %v1046
        %v1049 = vadd.s32 %v790, %v1046
        %v1050 = vadd.s32 %v791, %v1046
        %v1051 = vadd.s32 %v792, %v1046
        %v1052 = vadd.s32 %v793, %v1046
        %v1053 = vadd.s32 %v794, %v1046
        %v1054 = vadd.s32 %v795, %v1046
        %v1055 = vadd.s32 %v796, %v1046
        %v1056 = vadd.s32 %v797, %v1046
        %v1057 = vadd.s32 %v798, %v1046
        %v1058 = vadd.s32 %v799, %v1046
        %v1059 = vadd.s32 %v800, %v1046
        %v1060 = vadd.s32 %v801, %v1046
        %v1061 = vadd.s32 %v802, %v1046
        %v1062 = vadd.s32 %v803, %v1046
        %v1063 = vadd.s32 %v804, %v1046
        %v1064 = vadd.s32 %v805, %v1046
        %v1065 = vadd.s32 %v806, %v1046
        %v1066 = vadd.s32 %v807, %v1046
        %v1067 = vadd.s32 %v808, %v1046
        %v1068 = vadd.s32 %v809, %v1046
        %v1069 = vadd.s32 %v810, %v1046
        %v1070 = vadd.s32 %v811, %v1046
        %v1071 = vadd.s32 %v812, %v1046
        %v1072 = vadd.s32 %v813, %v1046
        %v1073 = vadd.s32 %v814, %v1046
        %v1074 = vadd.s32 %v815, %v1046
        %v1075 = vadd.s32 %v816, %v1046
        %v1076 = vadd.s32 %v817, %v1046
        %v1077 = vadd.s32 %v818, %v1046
        %v1078 = vadd.s32 %v819, %v1046
        %v1079 = vadd.s32 %v820, %v1046
        %v1080 = vadd.s32 %v821, %v1046
        %v1081 = vadd.s32 %v822, %v1046
        %v1082 = vadd.s32 %v823, %v1046
        %v1083 = vadd.s32 %v824, %v1046
        %v1084 = vadd.s32 %v825, %v1046
        %v1085 = vadd.s32 %v826, %v1046
        %v1086 = vadd.s32 %v827, %v1046
        %v1087 = vadd.s32 %v828, %v1046
        %v1088 = vadd.s32 %v829, %v1046
        %v1089 = vadd.s32 %v830, %v1046
        %v1090 = vadd.s32 %v831, %v1046
        %v1091 = vadd.s32 %v832, %v1046
        %v1092 = vadd.s32 %v833, %v1046
        %v1093 = vadd.s32 %v834, %v1046
        %v1094 = vadd.s32 %v835, %v1046
        %v1095 = vadd.s32 %v836, %v1046
        %v1096 = vadd.s32 %v837, %v1046
        %v1097 = vadd.s32 %v838, %v1046
        %v1098 = vadd.s32 %v839, %v1046
        %v1099 = vadd.s32 %v840, %v1046
        %v1100 = vadd.s32 %v841, %v1046
        %v1101 = vadd.s32 %v842, %v1046
        %v1102 = vadd.s32 %v843, %v1046
        %v1103 = vadd.s32 %v844, %v1046
        %v1104 = vadd.s32 %v845, %v1046
        %v1105 = vadd.s32 %v846, %v1046
        %v1106 = vadd.s32 %v847, %v1046
        %v1107 = vadd.s32 %v848, %v1046
        %v1108 = vadd.s32 %v849, %v1046
        %v1109 = vadd.s32 %v850, %v1046
        %v1110 = vadd.s32 %v851, %v1046
        %v1111 = vadd.s32 %v852, %v1046
        %v1112 = vadd.s32 %v853, %v1046
        %v1113 = vadd.s32 %v854, %v1046
        %v1114 = vadd.s32 %v855, %v1046
        %v1115 = vadd.s32 %v856, %v1046
        %v1116 = vadd.s32 %v857, %v1046
        %v1117 = vadd.s32 %v858, %v1046
        %v1118 = vadd.s32 %v859, %v1046
        %v1119 = vadd.s32 %v860, %v1046
        %v1120 = vadd.s32 %v861, %v1046
        %v1121 = vadd.s32 %v862, %v1046
        %v1122 = vadd.s32 %v863, %v1046
        %v1123 = vadd.s32 %v864, %v1046
        %v1124 = vadd.s32 %v865, %v1046
        %v1125 = vadd.s32 %v866, %v1046
        %v1126 = vadd.s32 %v867, %v1046
        %v1127 = vadd.s32 %v868, %v1046
        %v1128 = vadd.s32 %v869, %v1046
        %v1129 = vadd.s32 %v870, %v1046
        %v1130 = vadd.s32 %v871, %v1046
        %v1131 = vadd.s32 %v872, %v1046
        %v1132 = vadd.s32 %v873, %v1046
        %v1133 = vadd.s32 %v874, %v1046
        %v1134 = vadd.s32 %v875, %v1046
        %v1135 = vadd.s32 %v876, %v1046
        %v1136 = vadd.s32 %v877, %v1046
        %v1137 = vadd.s32 %v878, %v1046
        %v1138 = vadd.s32 %v879, %v1046
        %v1139 = vadd.s32 %v880, %v1046
        %v1140 = vadd.s32 %v881, %v1046
        %v1141 = vadd.s32 %v882, %v1046
        %v1142 = vadd.s32 %v883, %v1046
        %v1143 = vadd.s32 %v884, %v1046
        %v1144 = vadd.s32 %v885, %v1046
        %v1145 = vadd.s32 %v886, %v1046
        %v1146 = vadd.s32 %v887, %v1046
        %v1147 = vadd.s32 %v888, %v1046
        %v1148 = vadd.s32 %v889, %v1046
        %v1149 = vadd.s32 %v890, %v1046
        %v1150 = vadd.s32 %v891, %v1046
        %v1151 = vadd.s32 %v892, %v1046
        %v1152 = vadd.s32 %v893, %v1046
        %v1153 = vadd.s32 %v894, %v1046
        %v1154 = vadd.s32 %v895, %v1046
        %v1155 = vadd.s32 %v896, %v1046
        %v1156 = vadd.s32 %v897, %v1046
        %v1157 = vadd.s32 %v898, %v1046
        %v1158 = vadd.s32 %v899, %v1046
        %v1159 = vadd.s32 %v900, %v1046
        %v1160 = vadd.s32 %v901, %v1046
        %v1161 = vadd.s32 %v902, %v1046
        %v1162 = vadd.s32 %v903, %v1046
        %v1163 = vadd.s32 %v904, %v1046
        %v1164 = vadd.s32 %v905, %v1046
        %v1165 = vadd.s32 %v906, %v1046
        %v1166 = vadd.s32 %v907, %v1046
        %v1167 = vadd.s32 %v908, %v1046
        %v1168 = vadd.s32 %v909, %v1046
        %v1169 = vadd.s32 %v910, %v1046
        %v1170 = vadd.s32 %v911, %v1046
        %v1171 = vadd.s32 %v912, %v1046
        %v1172 = vadd.s32 %v913, %v1046
        %v1173 = vadd.s32 %v914, %v1046
        %v1174 = vadd.s32 %v915, %v1046
        %v1175 = vadd.s32 %v916, %v1046
        %v1176 = vadd.s32 %v917, %v1046
        %v1177 = vadd.s32 %v918, %v1046
        %v1178 = vadd.s32 %v919, %v1046
        %v1179 = vadd.s32 %v920, %v1046
        %v1180 = vadd.s32 %v921, %v1046
        %v1181 = vadd.s32 %v922, %v1046
        %v1182 = vadd.s32 %v923, %v1046
        %v1183 = vadd.s32 %v924, %v1046
        %v1184 = vadd.s32 %v925, %v1046
        %v1185 = vadd.s32 %v926, %v1046
        %v1186 = vadd.s32 %v927, %v1046
        %v1187 = vadd.s32 %v928, %v1046
        %v1188 = vadd.s32 %v929, %v1046
        %v1189 = vadd.s32 %v930, %v1046
        %v1190 = vadd.s32 %v931, %v1046
        %v1191 = vadd.s32 %v932, %v1046
        %v1192 = vadd.s32 %v933, %v1046
        %v1193 = vadd.s32 %v934, %v1046
        %v1194 = vadd.s32 %v935, %v1046
        %v1195 = vadd.s32 %v936, %v1046
        %v1196 = vadd.s32 %v937, %v1046
        %v1197 = vadd.s32 %v938, %v1046
        %v1198 = vadd.s32 %v939, %v1046
        %v1199 = vadd.s32 %v940, %v1046
        %v1200 = vadd.s32 %v941, %v1046
        %v1201 = vadd.s32 %v942, %v1046
        %v1202 = vadd.s32 %v943, %v1046
        %v1203 = vadd.s32 %v944, %v1046
        %v1204 = vadd.s32 %v945, %v1046
        %v1205 = vadd.s32 %v946, %v1046
        %v1206 = vadd.s32 %v947, %v1046
        %v1207 = vadd.s32 %v948, %v1046
        %v1208 = vadd.s32 %v949, %v1046
        %v1209 = vadd.s32 %v950, %v1046
        %v1210 = vadd.s32 %v951, %v1046
        %v1211 = vadd.s32 %v952, %v1046
        %v1212 = vadd.s32 %v953, %v1046
        %v1213 = vadd.s32 %v954, %v1046
        %v1214 = vadd.s32 %v955, %v1046
        %v1215 = vadd.s32 %v956, %v1046
        %v1216 = vadd.s32 %v957, %v1046
        %v1217 = vadd.s32 %v958, %v1046
        %v1218 = vadd.s32 %v959, %v1046
        %v1219 = vadd.s32 %v960, %v1046
        %v1220 = vadd.s32 %v961, %v1046
        %v1221 = vadd.s32 %v962, %v1046
        %v1222 = vadd.s32 %v963, %v1046
        %v1223 = vadd.s32 %v964, %v1046
        %v1224 = vadd.s32 %v965, %v1046
        %v1225 = vadd.s32 %v966, %v1046
        %v1226 = vadd.s32 %v967, %v1046
        %v1227 = vadd.s32 %v968, %v1046
        %v1228 = vadd.s32 %v969, %v1046
        %v1229 = vadd.s32 %v970, %v1046
        %v1230 = vadd.s32 %v971, %v1046
        %v1231 = vadd.s32 %v972, %v1046
        %v1232 = vadd.s32 %v973, %v1046
        %v1233 = vadd.s32 %v974, %v1046
        %v1234 = vadd.s32 %v975, %v1046
        %v1235 = vadd.s32 %v976, %v1046
        %v1236 = vadd.s32 %v977, %v1046
        %v1237 = vadd.s32 %v978, %v1046
        %v1238 = vadd.s32 %v979, %v1046
        %v1239 = vadd.s32 %v980, %v1046
        %v1240 = vadd.s32 %v981, %v1046
        %v1241 = vadd.s32 %v982, %v1046
        %v1242 = vadd.s32 %v983, %v1046
        %v1243 = vadd.s32 %v984, %v1046
        %v1244 = vadd.s32 %v985, %v1046
        %v1245 = vadd.s32 %v986, %v1046
        %v1246 = vadd.s32 %v987, %v1046
        %v1247 = vadd.s32 %v988, %v1046
        %v1248 = vadd.s32 %v989, %v1046
        %v1249 = vadd.s32 %v990, %v1046
        %v1250 = vadd.s32 %v991, %v1046
        %v1251 = vadd.s32 %v992, %v1046
        %v1252 = vadd.s32 %v993, %v1046
        %v1253 = vadd.s32 %v994, %v1046
        %v1254 = vadd.s32 %v995, %v1046
        %v1255 = vadd.s32 %v996, %v1046
        %v1256 = vadd.s32 %v997, %v1046
        %v1257 = vadd.s32 %v998, %v1046
        %v1258 = vadd.s32 %v999, %v1046
        %v1259 = vadd.s32 %v1000, %v1046
        %v1260 = vadd.s32 %v1001, %v1046
        %v1261 = vadd.s32 %v1002, %v1046
        %v1262 = vadd.s32 %v1003, %v1046
        %v1263 = vadd.s32 %v1004, %v1046
        %v1264 = vadd.s32 %v1005, %v1046
        %v1265 = vadd.s32 %v1006, %v1046
        %v1266 = vadd.s32 %v1007, %v1046
        %v1267 = vadd.s32 %v1008, %v1046
        %v1268 = vadd.s32 %v1009, %v1046
        %v1269 = vadd.s32 %v1010, %v1046
        %v1270 = vadd.s32 %v1011, %v1046
        %v1271 = vadd.s32 %v1012, %v1046
        %v1272 = vadd.s32 %v1013, %v1046
        %v1273 = vadd.s32 %v1014, %v1046
        %v1274 = vadd.s32 %v1015, %v1046
        %v1275 = vadd.s32 %v1016, %v1046
        %v1276 = vadd.s32 %v1017, %v1046
        %v1277 = vadd.s32 %v1018, %v1046
        %v1278 = vadd.s32 %v1019, %v1046
        %v1279 = vadd.s32 %v1020, %v1046
        %v1280 = vadd.s32 %v1021, %v1046
        %v1281 = vadd.s32 %v1022, %v1046
        %v1282 = vadd.s32 %v1023, %v1046
        %v1283 = vadd.s32 %v1024, %v1046
        %v1284 = vadd.s32 %v1025, %v1046
        %v1285 = vadd.s32 %v1026, %v1046
        %v1286 = vadd.s32 %v1027, %v1046
        %v1287 = vadd.s32 %v1028, %v1046
        %v1288 = vadd.s32 %v1029, %v1046
        %v1289 = vadd.s32 %v1030, %v1046
        %v1290 = vadd.s32 %v1031, %v1046
        %v1291 = vadd.s32 %v1032, %v1046
        %v1292 = vadd.s32 %v1033, %v1046
        %v1293 = vadd.s32 %v1034, %v1046
        %v1294 = vadd.s32 %v1035, %v1046
        %v1295 = vadd.s32 %v1036, %v1046
        %v1296 = vadd.s32 %v1037, %v1046
        %v1297 = vadd.s32 %v1038, %v1046
        %v1298 = vadd.s32 %v1039, %v1046
        %v1299 = vadd.s32 %v1040, %v1046
        %v1300 = vadd.s32 %v1041, %v1046
        %v1301 = vadd.s32 %v1042, %v1046
        %v1302 = vadd.s32 %v1043, %v1046
        %v1303 = vshrl.u32 %v1047, 16
        %v1304 = vshrl.u32 %v1048, 16
        %v1305 = vshrl.u32 %v1049, 16
        %v1306 = vshrl.u32 %v1050, 16
        %v1307 = vshrl.u32 %v1051, 16
        %v1308 = vshrl.u32 %v1052, 16
        %v1309 = vshrl.u32 %v1053, 16
        %v1310 = vshrl.u32 %v1054, 16
        %v1311 = vshrl.u32 %v1055, 16
        %v1312 = vshrl.u32 %v1056, 16
        %v1313 = vshrl.u32 %v1057, 16
        %v1314 = vshrl.u32 %v1058, 16
        %v1315 = vshrl.u32 %v1059, 16
        %v1316 = vshrl.u32 %v1060, 16
        %v1317 = vshrl.u32 %v1061, 16
        %v1318 = vshrl.u32 %v1062, 16
        %v1319 = vshrl.u32 %v1063, 16
        %v1320 = vshrl.u32 %v1064, 16
        %v1321 = vshrl.u32 %v1065, 16
        %v1322 = vshrl.u32 %v1066, 16
        %v1323 = vshrl.u32 %v1067, 16
        %v1324 = vshrl.u32 %v1068, 16
        %v1325 = vshrl.u32 %v1069, 16
        %v1326 = vshrl.u32 %v1070, 16
        %v1327 = vshrl.u32 %v1071, 16
        %v1328 = vshrl.u32 %v1072, 16
        %v1329 = vshrl.u32 %v1073, 16
        %v1330 = vshrl.u32 %v1074, 16
        %v1331 = vshrl.u32 %v1075, 16
        %v1332 = vshrl.u32 %v1076, 16
        %v1333 = vshrl.u32 %v1077, 16
        %v1334 = vshrl.u32 %v1078, 16
        %v1335 = vshrl.u32 %v1079, 16
        %v1336 = vshrl.u32 %v1080, 16
        %v1337 = vshrl.u32 %v1081, 16
        %v1338 = vshrl.u32 %v1082, 16
        %v1339 = vshrl.u32 %v1083, 16
        %v1340 = vshrl.u32 %v1084, 16
        %v1341 = vshrl.u32 %v1085, 16
        %v1342 = vshrl.u32 %v1086, 16
        %v1343 = vshrl.u32 %v1087, 16
        %v1344 = vshrl.u32 %v1088, 16
        %v1345 = vshrl.u32 %v1089, 16
        %v1346 = vshrl.u32 %v1090, 16
        %v1347 = vshrl.u32 %v1091, 16
        %v1348 = vshrl.u32 %v1092, 16
        %v1349 = vshrl.u32 %v1093, 16
        %v1350 = vshrl.u32 %v1094, 16
        %v1351 = vshrl.u32 %v1095, 16
        %v1352 = vshrl.u32 %v1096, 16
        %v1353 = vshrl.u32 %v1097, 16
        %v1354 = vshrl.u32 %v1098, 16
        %v1355 = vshrl.u32 %v1099, 16
        %v1356 = vshrl.u32 %v1100, 16
        %v1357 = vshrl.u32 %v1101, 16
        %v1358 = vshrl.u32 %v1102, 16
        %v1359 = vshrl.u32 %v1103, 16
        %v1360 = vshrl.u32 %v1104, 16
        %v1361 = vshrl.u32 %v1105, 16
        %v1362 = vshrl.u32 %v1106, 16
        %v1363 = vshrl.u32 %v1107, 16
        %v1364 = vshrl.u32 %v1108, 16
        %v1365 = vshrl.u32 %v1109, 16
        %v1366 = vshrl.u32 %v1110, 16
        %v1367 = vshrl.u32 %v1111, 16
        %v1368 = vshrl.u32 %v1112, 16
        %v1369 = vshrl.u32 %v1113, 16
        %v1370 = vshrl.u32 %v1114, 16
        %v1371 = vshrl.u32 %v1115, 16
        %v1372 = vshrl.u32 %v1116, 16
        %v1373 = vshrl.u32 %v1117, 16
        %v1374 = vshrl.u32 %v1118, 16
        %v1375 = vshrl.u32 %v1119, 16
        %v1376 = vshrl.u32 %v1120, 16
        %v1377 = vshrl.u32 %v1121, 16
        %v1378 = vshrl.u32 %v1122, 16
        %v1379 = vshrl.u32 %v1123, 16
        %v1380 = vshrl.u32 %v1124, 16
        %v1381 = vshrl.u32 %v1125, 16
        %v1382 = vshrl.u32 %v1126, 16
        %v1383 = vshrl.u32 %v1127, 16
        %v1384 = vshrl.u32 %v1128, 16
        %v1385 = vshrl.u32 %v1129, 16
        %v1386 = vshrl.u32 %v1130, 16
        %v1387 = vshrl.u32 %v1131, 16
        %v1388 = vshrl.u32 %v1132, 16
        %v1389 = vshrl.u32 %v1133, 16
        %v1390 = vshrl.u32 %v1134, 16
        %v1391 = vshrl.u32 %v1135, 16
        %v1392 = vshrl.u32 %v1136, 16
        %v1393 = vshrl.u32 %v1137, 16
        %v1394 = vshrl.u32 %v1138, 16
        %v1395 = vshrl.u32 %v1139, 16
        %v1396 = vshrl.u32 %v1140, 16
        %v1397 = vshrl.u32 %v1141, 16
        %v1398 = vshrl.u32 %v1142, 16
        %v1399 = vshrl.u32 %v1143, 16
        %v1400 = vshrl.u32 %v1144, 16
        %v1401 = vshrl.u32 %v1145, 16
        %v1402 = vshrl.u32 %v1146, 16
        %v1403 = vshrl.u32 %v1147, 16
        %v1404 = vshrl.u32 %v1148, 16
        %v1405 = vshrl.u32 %v1149, 16
        %v1406 = vshrl.u32 %v1150, 16
        %v1407 = vshrl.u32 %v1151, 16
        %v1408 = vshrl.u32 %v1152, 16
        %v1409 = vshrl.u32 %v1153, 16
        %v1410 = vshrl.u32 %v1154, 16
        %v1411 = vshrl.u32 %v1155, 16
        %v1412 = vshrl.u32 %v1156, 16
        %v1413 = vshrl.u32 %v1157, 16
        %v1414 = vshrl.u32 %v1158, 16
        %v1415 = vshrl.u32 %v1159, 16
        %v1416 = vshrl.u32 %v1160, 16
        %v1417 = vshrl.u32 %v1161, 16
        %v1418 = vshrl.u32 %v1162, 16
        %v1419 = vshrl.u32 %v1163, 16
        %v1420 = vshrl.u32 %v1164, 16
        %v1421 = vshrl.u32 %v1165, 16
        %v1422 = vshrl.u32 %v1166, 16
        %v1423 = vshrl.u32 %v1167, 16
        %v1424 = vshrl.u32 %v1168, 16
        %v1425 = vshrl.u32 %v1169, 16
        %v1426 = vshrl.u32 %v1170, 16
        %v1427 = vshrl.u32 %v1171, 16
        %v1428 = vshrl.u32 %v1172, 16
        %v1429 = vshrl.u32 %v1173, 16
        %v1430 = vshrl.u32 %v1174, 16
        %v1431 = vshrl.u32 %v1175, 16
        %v1432 = vshrl.u32 %v1176, 16
        %v1433 = vshrl.u32 %v1177, 16
        %v1434 = vshrl.u32 %v1178, 16
        %v1435 = vshrl.u32 %v1179, 16
        %v1436 = vshrl.u32 %v1180, 16
        %v1437 = vshrl.u32 %v1181, 16
        %v1438 = vshrl.u32 %v1182, 16
        %v1439 = vshrl.u32 %v1183, 16
        %v1440 = vshrl.u32 %v1184, 16
        %v1441 = vshrl.u32 %v1185, 16
        %v1442 = vshrl.u32 %v1186, 16
        %v1443 = vshrl.u32 %v1187, 16
        %v1444 = vshrl.u32 %v1188, 16
        %v1445 = vshrl.u32 %v1189, 16
        %v1446 = vshrl.u32 %v1190, 16
        %v1447 = vshrl.u32 %v1191, 16
        %v1448 = vshrl.u32 %v1192, 16
        %v1449 = vshrl.u32 %v1193, 16
        %v1450 = vshrl.u32 %v1194, 16
        %v1451 = vshrl.u32 %v1195, 16
        %v1452 = vshrl.u32 %v1196, 16
        %v1453 = vshrl.u32 %v1197, 16
        %v1454 = vshrl.u32 %v1198, 16
        %v1455 = vshrl.u32 %v1199, 16
        %v1456 = vshrl.u32 %v1200, 16
        %v1457 = vshrl.u32 %v1201, 16
        %v1458 = vshrl.u32 %v1202, 16
        %v1459 = vshrl.u32 %v1203, 16
        %v1460 = vshrl.u32 %v1204, 16
        %v1461 = vshrl.u32 %v1205, 16
        %v1462 = vshrl.u32 %v1206, 16
        %v1463 = vshrl.u32 %v1207, 16
        %v1464 = vshrl.u32 %v1208, 16
        %v1465 = vshrl.u32 %v1209, 16
        %v1466 = vshrl.u32 %v1210, 16
        %v1467 = vshrl.u32 %v1211, 16
        %v1468 = vshrl.u32 %v1212, 16
        %v1469 = vshrl.u32 %v1213, 16
        %v1470 = vshrl.u32 %v1214, 16
        %v1471 = vshrl.u32 %v1215, 16
        %v1472 = vshrl.u32 %v1216, 16
        %v1473 = vshrl.u32 %v1217, 16
        %v1474 = vshrl.u32 %v1218, 16
        %v1475 = vshrl.u32 %v1219, 16
        %v1476 = vshrl.u32 %v1220, 16
        %v1477 = vshrl.u32 %v1221, 16
        %v1478 = vshrl.u32 %v1222, 16
        %v1479 = vshrl.u32 %v1223, 16
        %v1480 = vshrl.u32 %v1224, 16
        %v1481 = vshrl.u32 %v1225, 16
        %v1482 = vshrl.u32 %v1226, 16
        %v1483 = vshrl.u32 %v1227, 16
        %v1484 = vshrl.u32 %v1228, 16
        %v1485 = vshrl.u32 %v1229, 16
        %v1486 = vshrl.u32 %v1230, 16
        %v1487 = vshrl.u32 %v1231, 16
        %v1488 = vshrl.u32 %v1232, 16
        %v1489 = vshrl.u32 %v1233, 16
        %v1490 = vshrl.u32 %v1234, 16
        %v1491 = vshrl.u32 %v1235, 16
        %v1492 = vshrl.u32 %v1236, 16
        %v1493 = vshrl.u32 %v1237, 16
        %v1494 = vshrl.u32 %v1238, 16
        %v1495 = vshrl.u32 %v1239, 16
        %v1496 = vshrl.u32 %v1240, 16
        %v1497 = vshrl.u32 %v1241, 16
        %v1498 = vshrl.u32 %v1242, 16
        %v1499 = vshrl.u32 %v1243, 16
        %v1500 = vshrl.u32 %v1244, 16
        %v1501 = vshrl.u32 %v1245, 16
        %v1502 = vshrl.u32 %v1246, 16
        %v1503 = vshrl.u32 %v1247, 16
        %v1504 = vshrl.u32 %v1248, 16
        %v1505 = vshrl.u32 %v1249, 16
        %v1506 = vshrl.u32 %v1250, 16
        %v1507 = vshrl.u32 %v1251, 16
        %v1508 = vshrl.u32 %v1252, 16
        %v1509 = vshrl.u32 %v1253, 16
        %v1510 = vshrl.u32 %v1254, 16
        %v1511 = vshrl.u32 %v1255, 16
        %v1512 = vshrl.u32 %v1256, 16
        %v1513 = vshrl.u32 %v1257, 16
        %v1514 = vshrl.u32 %v1258, 16
        %v1515 = vshrl.u32 %v1259, 16
        %v1516 = vshrl.u32 %v1260, 16
        %v1517 = vshrl.u32 %v1261, 16
        %v1518 = vshrl.u32 %v1262, 16
        %v1519 = vshrl.u32 %v1263, 16
        %v1520 = vshrl.u32 %v1264, 16
        %v1521 = vshrl.u32 %v1265, 16
        %v1522 = vshrl.u32 %v1266, 16
        %v1523 = vshrl.u32 %v1267, 16
        %v1524 = vshrl.u32 %v1268, 16
        %v1525 = vshrl.u32 %v1269, 16
        %v1526 = vshrl.u32 %v1270, 16
        %v1527 = vshrl.u32 %v1271, 16
        %v1528 = vshrl.u32 %v1272, 16
        %v1529 = vshrl.u32 %v1273, 16
        %v1530 = vshrl.u32 %v1274, 16
        %v1531 = vshrl.u32 %v1275, 16
        %v1532 = vshrl.u32 %v1276, 16
        %v1533 = vshrl.u32 %v1277, 16
        %v1534 = vshrl.u32 %v1278, 16
        %v1535 = vshrl.u32 %v1279, 16
        %v1536 = vshrl.u32 %v1280, 16
        %v1537 = vshrl.u32 %v1281, 16
        %v1538 = vshrl.u32 %v1282, 16
        %v1539 = vshrl.u32 %v1283, 16
        %v1540 = vshrl.u32 %v1284, 16
        %v1541 = vshrl.u32 %v1285, 16
        %v1542 = vshrl.u32 %v1286, 16
        %v1543 = vshrl.u32 %v1287, 16
        %v1544 = vshrl.u32 %v1288, 16
        %v1545 = vshrl.u32 %v1289, 16
        %v1546 = vshrl.u32 %v1290, 16
        %v1547 = vshrl.u32 %v1291, 16
        %v1548 = vshrl.u32 %v1292, 16
        %v1549 = vshrl.u32 %v1293, 16
        %v1550 = vshrl.u32 %v1294, 16
        %v1551 = vshrl.u32 %v1295, 16
        %v1552 = vshrl.u32 %v1296, 16
        %v1553 = vshrl.u32 %v1297, 16
        %v1554 = vshrl.u32 %v1298, 16
        %v1555 = vshrl.u32 %v1299, 16
        %v1556 = vshrl.u32 %v1300, 16
        %v1557 = vshrl.u32 %v1301, 16
        %v1558 = vshrl.u32 %v1302, 16
        %v1559 = vxor.u32 %v1047, %v1303
        %v1560 = vxor.u32 %v1048, %v1304
        %v1561 = vxor.u32 %v1049, %v1305
        %v1562 = vxor.u32 %v1050, %v1306
        %v1563 = vxor.u32 %v1051, %v1307
        %v1564 = vxor.u32 %v1052, %v1308
        %v1565 = vxor.u32 %v1053, %v1309
        %v1566 = vxor.u32 %v1054, %v1310
        %v1567 = vxor.u32 %v1055, %v1311
        %v1568 = vxor.u32 %v1056, %v1312
        %v1569 = vxor.u32 %v1057, %v1313
        %v1570 = vxor.u32 %v1058, %v1314
        %v1571 = vxor.u32 %v1059, %v1315
        %v1572 = vxor.u32 %v1060, %v1316
        %v1573 = vxor.u32 %v1061, %v1317
        %v1574 = vxor.u32 %v1062, %v1318
        %v1575 = vxor.u32 %v1063, %v1319
        %v1576 = vxor.u32 %v1064, %v1320
        %v1577 = vxor.u32 %v1065, %v1321
        %v1578 = vxor.u32 %v1066, %v1322
        %v1579 = vxor.u32 %v1067, %v1323
        %v1580 = vxor.u32 %v1068, %v1324
        %v1581 = vxor.u32 %v1069, %v1325
        %v1582 = vxor.u32 %v1070, %v1326
        %v1583 = vxor.u32 %v1071, %v1327
        %v1584 = vxor.u32 %v1072, %v1328
        %v1585 = vxor.u32 %v1073, %v1329
        %v1586 = vxor.u32 %v1074, %v1330
        %v1587 = vxor.u32 %v1075, %v1331
        %v1588 = vxor.u32 %v1076, %v1332
        %v1589 = vxor.u32 %v1077, %v1333
        %v1590 = vxor.u32 %v1078, %v1334
        %v1591 = vxor.u32 %v1079, %v1335
        %v1592 = vxor.u32 %v1080, %v1336
        %v1593 = vxor.u32 %v1081, %v1337
        %v1594 = vxor.u32 %v1082, %v1338
        %v1595 = vxor.u32 %v1083, %v1339
        %v1596 = vxor.u32 %v1084, %v1340
        %v1597 = vxor.u32 %v1085, %v1341
        %v1598 = vxor.u32 %v1086, %v1342
        %v1599 = vxor.u32 %v1087, %v1343
        %v1600 = vxor.u32 %v1088, %v1344
        %v1601 = vxor.u32 %v1089, %v1345
        %v1602 = vxor.u32 %v1090, %v1346
        %v1603 = vxor.u32 %v1091, %v1347
        %v1604 = vxor.u32 %v1092, %v1348
        %v1605 = vxor.u32 %v1093, %v1349
        %v1606 = vxor.u32 %v1094, %v1350
        %v1607 = vxor.u32 %v1095, %v1351
        %v1608 = vxor.u32 %v1096, %v1352
        %v1609 = vxor.u32 %v1097, %v1353
        %v1610 = vxor.u32 %v1098, %v1354
        %v1611 = vxor.u32 %v1099, %v1355
        %v1612 = vxor.u32 %v1100, %v1356
        %v1613 = vxor.u32 %v1101, %v1357
        %v1614 = vxor.u32 %v1102, %v1358
        %v1615 = vxor.u32 %v1103, %v1359
        %v1616 = vxor.u32 %v1104, %v1360
        %v1617 = vxor.u32 %v1105, %v1361
        %v1618 = vxor.u32 %v1106, %v1362
        %v1619 = vxor.u32 %v1107, %v1363
        %v1620 = vxor.u32 %v1108, %v1364
        %v1621 = vxor.u32 %v1109, %v1365
        %v1622 = vxor.u32 %v1110, %v1366
        %v1623 = vxor.u32 %v1111, %v1367
        %v1624 = vxor.u32 %v1112, %v1368
        %v1625 = vxor.u32 %v1113, %v1369
        %v1626 = vxor.u32 %v1114, %v1370
        %v1627 = vxor.u32 %v1115, %v1371
        %v1628 = vxor.u32 %v1116, %v1372
        %v1629 = vxor.u32 %v1117, %v1373
        %v1630 = vxor.u32 %v1118, %v1374
        %v1631 = vxor.u32 %v1119, %v1375
        %v1632 = vxor.u32 %v1120, %v1376
        %v1633 = vxor.u32 %v1121, %v1377
        %v1634 = vxor.u32 %v1122, %v1378
        %v1635 = vxor.u32 %v1123, %v1379
        %v1636 = vxor.u32 %v1124, %v1380
        %v1637 = vxor.u32 %v1125, %v1381
        %v1638 = vxor.u32 %v1126, %v1382
        %v1639 = vxor.u32 %v1127, %v1383
        %v1640 = vxor.u32 %v1128, %v1384
        %v1641 = vxor.u32 %v1129, %v1385
        %v1642 = vxor.u32 %v1130, %v1386
        %v1643 = vxor.u32 %v1131, %v1387
        %v1644 = vxor.u32 %v1132, %v1388
        %v1645 = vxor.u32 %v1133, %v1389
        %v1646 = vxor.u32 %v1134, %v1390
        %v1647 = vxor.u32 %v1135, %v1391
        %v1648 = vxor.u32 %v1136, %v1392
        %v1649 = vxor.u32 %v1137, %v1393
        %v1650 = vxor.u32 %v1138, %v1394
        %v1651 = vxor.u32 %v1139, %v1395
        %v1652 = vxor.u32 %v1140, %v1396
        %v1653 = vxor.u32 %v1141, %v1397
        %v1654 = vxor.u32 %v1142, %v1398
        %v1655 = vxor.u32 %v1143, %v1399
        %v1656 = vxor.u32 %v1144, %v1400
        %v1657 = vxor.u32 %v1145, %v1401
        %v1658 = vxor.u32 %v1146, %v1402
        %v1659 = vxor.u32 %v1147, %v1403
        %v1660 = vxor.u32 %v1148, %v1404
        %v1661 = vxor.u32 %v1149, %v1405
        %v1662 = vxor.u32 %v1150, %v1406
        %v1663 = vxor.u32 %v1151, %v1407
        %v1664 = vxor.u32 %v1152, %v1408
        %v1665 = vxor.u32 %v1153, %v1409
        %v1666 = vxor.u32 %v1154, %v1410
        %v1667 = vxor.u32 %v1155, %v1411
        %v1668 = vxor.u32 %v1156, %v1412
        %v1669 = vxor.u32 %v1157, %v1413
        %v1670 = vxor.u32 %v1158, %v1414
        %v1671 = vxor.u32 %v1159, %v1415
        %v1672 = vxor.u32 %v1160, %v1416
        %v1673 = vxor.u32 %v1161, %v1417
        %v1674 = vxor.u32 %v1162, %v1418
        %v1675 = vxor.u32 %v1163, %v1419
        %v1676 = vxor.u32 %v1164, %v1420
        %v1677 = vxor.u32 %v1165, %v1421
        %v1678 = vxor.u32 %v1166, %v1422
        %v1679 = vxor.u32 %v1167, %v1423
        %v1680 = vxor.u32 %v1168, %v1424
        %v1681 = vxor.u32 %v1169, %v1425
        %v1682 = vxor.u32 %v1170, %v1426
        %v1683 = vxor.u32 %v1171, %v1427
        %v1684 = vxor.u32 %v1172, %v1428
        %v1685 = vxor.u32 %v1173, %v1429
        %v1686 = vxor.u32 %v1174, %v1430
        %v1687 = vxor.u32 %v1175, %v1431
        %v1688 = vxor.u32 %v1176, %v1432
        %v1689 = vxor.u32 %v1177, %v1433
        %v1690 = vxor.u32 %v1178, %v1434
        %v1691 = vxor.u32 %v1179, %v1435
        %v1692 = vxor.u32 %v1180, %v1436
        %v1693 = vxor.u32 %v1181, %v1437
        %v1694 = vxor.u32 %v1182, %v1438
        %v1695 = vxor.u32 %v1183, %v1439
        %v1696 = vxor.u32 %v1184, %v1440
        %v1697 = vxor.u32 %v1185, %v1441
        %v1698 = vxor.u32 %v1186, %v1442
        %v1699 = vxor.u32 %v1187, %v1443
        %v1700 = vxor.u32 %v1188, %v1444
        %v1701 = vxor.u32 %v1189, %v1445
        %v1702 = vxor.u32 %v1190, %v1446
        %v1703 = vxor.u32 %v1191, %v1447
        %v1704 = vxor.u32 %v1192, %v1448
        %v1705 = vxor.u32 %v1193, %v1449
        %v1706 = vxor.u32 %v1194, %v1450
        %v1707 = vxor.u32 %v1195, %v1451
        %v1708 = vxor.u32 %v1196, %v1452
        %v1709 = vxor.u32 %v1197, %v1453
        %v1710 = vxor.u32 %v1198, %v1454
        %v1711 = vxor.u32 %v1199, %v1455
        %v1712 = vxor.u32 %v1200, %v1456
        %v1713 = vxor.u32 %v1201, %v1457
        %v1714 = vxor.u32 %v1202, %v1458
        %v1715 = vxor.u32 %v1203, %v1459
        %v1716 = vxor.u32 %v1204, %v1460
        %v1717 = vxor.u32 %v1205, %v1461
        %v1718 = vxor.u32 %v1206, %v1462
        %v1719 = vxor.u32 %v1207, %v1463
        %v1720 = vxor.u32 %v1208, %v1464
        %v1721 = vxor.u32 %v1209, %v1465
        %v1722 = vxor.u32 %v1210, %v1466
        %v1723 = vxor.u32 %v1211, %v1467
        %v1724 = vxor.u32 %v1212, %v1468
        %v1725 = vxor.u32 %v1213, %v1469
        %v1726 = vxor.u32 %v1214, %v1470
        %v1727 = vxor.u32 %v1215, %v1471
        %v1728 = vxor.u32 %v1216, %v1472
        %v1729 = vxor.u32 %v1217, %v1473
        %v1730 = vxor.u32 %v1218, %v1474
        %v1731 = vxor.u32 %v1219, %v1475
        %v1732 = vxor.u32 %v1220, %v1476
        %v1733 = vxor.u32 %v1221, %v1477
        %v1734 = vxor.u32 %v1222, %v1478
        %v1735 = vxor.u32 %v1223, %v1479
        %v1736 = vxor.u32 %v1224, %v1480
        %v1737 = vxor.u32 %v1225, %v1481
        %v1738 = vxor.u32 %v1226, %v1482
        %v1739 = vxor.u32 %v1227, %v1483
        %v1740 = vxor.u32 %v1228, %v1484
        %v1741 = vxor.u32 %v1229, %v1485
        %v1742 = vxor.u32 %v1230, %v1486
        %v1743 = vxor.u32 %v1231, %v1487
        %v1744 = vxor.u32 %v1232, %v1488
        %v1745 = vxor.u32 %v1233, %v1489
        %v1746 = vxor.u32 %v1234, %v1490
        %v1747 = vxor.u32 %v1235, %v1491
        %v1748 = vxor.u32 %v1236, %v1492
        %v1749 = vxor.u32 %v1237, %v1493
        %v1750 = vxor.u32 %v1238, %v1494
        %v1751 = vxor.u32 %v1239, %v1495
        %v1752 = vxor.u32 %v1240, %v1496
        %v1753 = vxor.u32 %v1241, %v1497
        %v1754 = vxor.u32 %v1242, %v1498
        %v1755 = vxor.u32 %v1243, %v1499
        %v1756 = vxor.u32 %v1244, %v1500
        %v1757 = vxor.u32 %v1245, %v1501
        %v1758 = vxor.u32 %v1246, %v1502
        %v1759 = vxor.u32 %v1247, %v1503
        %v1760 = vxor.u32 %v1248, %v1504
        %v1761 = vxor.u32 %v1249, %v1505
        %v1762 = vxor.u32 %v1250, %v1506
        %v1763 = vxor.u32 %v1251, %v1507
        %v1764 = vxor.u32 %v1252, %v1508
        %v1765 = vxor.u32 %v1253, %v1509
        %v1766 = vxor.u32 %v1254, %v1510
        %v1767 = vxor.u32 %v1255, %v1511
        %v1768 = vxor.u32 %v1256, %v1512
        %v1769 = vxor.u32 %v1257, %v1513
        %v1770 = vxor.u32 %v1258, %v1514
        %v1771 = vxor.u32 %v1259, %v1515
        %v1772 = vxor.u32 %v1260, %v1516
        %v1773 = vxor.u32 %v1261, %v1517
        %v1774 = vxor.u32 %v1262, %v1518
        %v1775 = vxor.u32 %v1263, %v1519
        %v1776 = vxor.u32 %v1264, %v1520
        %v1777 = vxor.u32 %v1265, %v1521
        %v1778 = vxor.u32 %v1266, %v1522
        %v1779 = vxor.u32 %v1267, %v1523
        %v1780 = vxor.u32 %v1268, %v1524
        %v1781 = vxor.u32 %v1269, %v1525
        %v1782 = vxor.u32 %v1270, %v1526
        %v1783 = vxor.u32 %v1271, %v1527
        %v1784 = vxor.u32 %v1272, %v1528
        %v1785 = vxor.u32 %v1273, %v1529
        %v1786 = vxor.u32 %v1274, %v1530
        %v1787 = vxor.u32 %v1275, %v1531
        %v1788 = vxor.u32 %v1276, %v1532
        %v1789 = vxor.u32 %v1277, %v1533
        %v1790 = vxor.u32 %v1278, %v1534
        %v1791 = vxor.u32 %v1279, %v1535
        %v1792 = vxor.u32 %v1280, %v1536
        %v1793 = vxor.u32 %v1281, %v1537
        %v1794 = vxor.u32 %v1282, %v1538
        %v1795 = vxor.u32 %v1283, %v1539
        %v1796 = vxor.u32 %v1284, %v1540
        %v1797 = vxor.u32 %v1285, %v1541
        %v1798 = vxor.u32 %v1286, %v1542
        %v1799 = vxor.u32 %v1287, %v1543
        %v1800 = vxor.u32 %v1288, %v1544
        %v1801 = vxor.u32 %v1289, %v1545
        %v1802 = vxor.u32 %v1290, %v1546
        %v1803 = vxor.u32 %v1291, %v1547
        %v1804 = vxor.u32 %v1292, %v1548
        %v1805 = vxor.u32 %v1293, %v1549
        %v1806 = vxor.u32 %v1294, %v1550
        %v1807 = vxor.u32 %v1295, %v1551
        %v1808 = vxor.u32 %v1296, %v1552
        %v1809 = vxor.u32 %v1297, %v1553
        %v1810 = vxor.u32 %v1298, %v1554
        %v1811 = vxor.u32 %v1299, %v1555
        %v1812 = vxor.u32 %v1300, %v1556
        %v1813 = vxor.u32 %v1301, %v1557
        %v1814 = vxor.u32 %v1302, %v1558
        %v1815 = vmul.u32 %v1559, 2146121005
        %v1816 = vmul.u32 %v1560, 2146121005
        %v1817 = vmul.u32 %v1561, 2146121005
        %v1818 = vmul.u32 %v1562, 2146121005
        %v1819 = vmul.u32 %v1563, 2146121005
        %v1820 = vmul.u32 %v1564, 2146121005
        %v1821 = vmul.u32 %v1565, 2146121005
        %v1822 = vmul.u32 %v1566, 2146121005
        %v1823 = vmul.u32 %v1567, 2146121005
        %v1824 = vmul.u32 %v1568, 2146121005
        %v1825 = vmul.u32 %v1569, 2146121005
        %v1826 = vmul.u32 %v1570, 2146121005
        %v1827 = vmul.u32 %v1571, 2146121005
        %v1828 = vmul.u32 %v1572, 2146121005
        %v1829 = vmul.u32 %v1573, 2146121005
        %v1830 = vmul.u32 %v1574, 2146121005
        %v1831 = vmul.u32 %v1575, 2146121005
        %v1832 = vmul.u32 %v1576, 2146121005
        %v1833 = vmul.u32 %v1577, 2146121005
        %v1834 = vmul.u32 %v1578, 2146121005
        %v1835 = vmul.u32 %v1579, 2146121005
        %v1836 = vmul.u32 %v1580, 2146121005
        %v1837 = vmul.u32 %v1581, 2146121005
        %v1838 = vmul.u32 %v1582, 2146121005
        %v1839 = vmul.u32 %v1583, 2146121005
        %v1840 = vmul.u32 %v1584, 2146121005
        %v1841 = vmul.u32 %v1585, 2146121005
        %v1842 = vmul.u32 %v1586, 2146121005
        %v1843 = vmul.u32 %v1587, 2146121005
        %v1844 = vmul.u32 %v1588, 2146121005
        %v1845 = vmul.u32 %v1589, 2146121005
        %v1846 = vmul.u32 %v1590, 2146121005
        %v1847 = vmul.u32 %v1591, 2146121005
        %v1848 = vmul.u32 %v1592, 2146121005
        %v1849 = vmul.u32 %v1593, 2146121005
        %v1850 = vmul.u32 %v1594, 2146121005
        %v1851 = vmul.u32 %v1595, 2146121005
        %v1852 = vmul.u32 %v1596, 2146121005
        %v1853 = vmul.u32 %v1597, 2146121005
        %v1854 = vmul.u32 %v1598, 2146121005
        %v1855 = vmul.u32 %v1599, 2146121005
        %v1856 = vmul.u32 %v1600, 2146121005
        %v1857 = vmul.u32 %v1601, 2146121005
        %v1858 = vmul.u32 %v1602, 2146121005
        %v1859 = vmul.u32 %v1603, 2146121005
        %v1860 = vmul.u32 %v1604, 2146121005
        %v1861 = vmul.u32 %v1605, 2146121005
        %v1862 = vmul.u32 %v1606, 2146121005
        %v1863 = vmul.u32 %v1607, 2146121005
        %v1864 = vmul.u32 %v1608, 2146121005
        %v1865 = vmul.u32 %v1609, 2146121005
        %v1866 = vmul.u32 %v1610, 2146121005
        %v1867 = vmul.u32 %v1611, 2146121005
        %v1868 = vmul.u32 %v1612, 2146121005
        %v1869 = vmul.u32 %v1613, 2146121005
        %v1870 = vmul.u32 %v1614, 2146121005
        %v1871 = vmul.u32 %v1615, 2146121005
        %v1872 = vmul.u32 %v1616, 2146121005
        %v1873 = vmul.u32 %v1617, 2146121005
        %v1874 = vmul.u32 %v1618, 2146121005
        %v1875 = vmul.u32 %v1619, 2146121005
        %v1876 = vmul.u32 %v1620, 2146121005
        %v1877 = vmul.u32 %v1621, 2146121005
        %v1878 = vmul.u32 %v1622, 2146121005
        %v1879 = vmul.u32 %v1623, 2146121005
        %v1880 = vmul.u32 %v1624, 2146121005
        %v1881 = vmul.u32 %v1625, 2146121005
        %v1882 = vmul.u32 %v1626, 2146121005
        %v1883 = vmul.u32 %v1627, 2146121005
        %v1884 = vmul.u32 %v1628, 2146121005
        %v1885 = vmul.u32 %v1629, 2146121005
        %v1886 = vmul.u32 %v1630, 2146121005
        %v1887 = vmul.u32 %v1631, 2146121005
        %v1888 = vmul.u32 %v1632, 2146121005
        %v1889 = vmul.u32 %v1633, 2146121005
        %v1890 = vmul.u32 %v1634, 2146121005
        %v1891 = vmul.u32 %v1635, 2146121005
        %v1892 = vmul.u32 %v1636, 2146121005
        %v1893 = vmul.u32 %v1637, 2146121005
        %v1894 = vmul.u32 %v1638, 2146121005
        %v1895 = vmul.u32 %v1639, 2146121005
        %v1896 = vmul.u32 %v1640, 2146121005
        %v1897 = vmul.u32 %v1641, 2146121005
        %v1898 = vmul.u32 %v1642, 2146121005
        %v1899 = vmul.u32 %v1643, 2146121005
        %v1900 = vmul.u32 %v1644, 2146121005
        %v1901 = vmul.u32 %v1645, 2146121005
        %v1902 = vmul.u32 %v1646, 2146121005
        %v1903 = vmul.u32 %v1647, 2146121005
        %v1904 = vmul.u32 %v1648, 2146121005
        %v1905 = vmul.u32 %v1649, 2146121005
        %v1906 = vmul.u32 %v1650, 2146121005
        %v1907 = vmul.u32 %v1651, 2146121005
        %v1908 = vmul.u32 %v1652, 2146121005
        %v1909 = vmul.u32 %v1653, 2146121005
        %v1910 = vmul.u32 %v1654, 2146121005
        %v1911 = vmul.u32 %v1655, 2146121005
        %v1912 = vmul.u32 %v1656, 2146121005
        %v1913 = vmul.u32 %v1657, 2146121005
        %v1914 = vmul.u32 %v1658, 2146121005
        %v1915 = vmul.u32 %v1659, 2146121005
        %v1916 = vmul.u32 %v1660, 2146121005
        %v1917 = vmul.u32 %v1661, 2146121005
        %v1918 = vmul.u32 %v1662, 2146121005
        %v1919 = vmul.u32 %v1663, 2146121005
        %v1920 = vmul.u32 %v1664, 2146121005
        %v1921 = vmul.u32 %v1665, 2146121005
        %v1922 = vmul.u32 %v1666, 2146121005
        %v1923 = vmul.u32 %v1667, 2146121005
        %v1924 = vmul.u32 %v1668, 2146121005
        %v1925 = vmul.u32 %v1669, 2146121005
        %v1926 = vmul.u32 %v1670, 2146121005
        %v1927 = vmul.u32 %v1671, 2146121005
        %v1928 = vmul.u32 %v1672, 2146121005
        %v1929 = vmul.u32 %v1673, 2146121005
        %v1930 = vmul.u32 %v1674, 2146121005
        %v1931 = vmul.u32 %v1675, 2146121005
        %v1932 = vmul.u32 %v1676, 2146121005
        %v1933 = vmul.u32 %v1677, 2146121005
        %v1934 = vmul.u32 %v1678, 2146121005
        %v1935 = vmul.u32 %v1679, 2146121005
        %v1936 = vmul.u32 %v1680, 2146121005
        %v1937 = vmul.u32 %v1681, 2146121005
        %v1938 = vmul.u32 %v1682, 2146121005
        %v1939 = vmul.u32 %v1683, 2146121005
        %v1940 = vmul.u32 %v1684, 2146121005
        %v1941 = vmul.u32 %v1685, 2146121005
        %v1942 = vmul.u32 %v1686, 2146121005
        %v1943 = vmul.u32 %v1687, 2146121005
        %v1944 = vmul.u32 %v1688, 2146121005
        %v1945 = vmul.u32 %v1689, 2146121005
        %v1946 = vmul.u32 %v1690, 2146121005
        %v1947 = vmul.u32 %v1691, 2146121005
        %v1948 = vmul.u32 %v1692, 2146121005
        %v1949 = vmul.u32 %v1693, 2146121005
        %v1950 = vmul.u32 %v1694, 2146121005
        %v1951 = vmul.u32 %v1695, 2146121005
        %v1952 = vmul.u32 %v1696, 2146121005
        %v1953 = vmul.u32 %v1697, 2146121005
        %v1954 = vmul.u32 %v1698, 2146121005
        %v1955 = vmul.u32 %v1699, 2146121005
        %v1956 = vmul.u32 %v1700, 2146121005
        %v1957 = vmul.u32 %v1701, 2146121005
        %v1958 = vmul.u32 %v1702, 2146121005
        %v1959 = vmul.u32 %v1703, 2146121005
        %v1960 = vmul.u32 %v1704, 2146121005
        %v1961 = vmul.u32 %v1705, 2146121005
        %v1962 = vmul.u32 %v1706, 2146121005
        %v1963 = vmul.u32 %v1707, 2146121005
        %v1964 = vmul.u32 %v1708, 2146121005
        %v1965 = vmul.u32 %v1709, 2146121005
        %v1966 = vmul.u32 %v1710, 2146121005
        %v1967 = vmul.u32 %v1711, 2146121005
        %v1968 = vmul.u32 %v1712, 2146121005
        %v1969 = vmul.u32 %v1713, 2146121005
        %v1970 = vmul.u32 %v1714, 2146121005
        %v1971 = vmul.u32 %v1715, 2146121005
        %v1972 = vmul.u32 %v1716, 2146121005
        %v1973 = vmul.u32 %v1717, 2146121005
        %v1974 = vmul.u32 %v1718, 2146121005
        %v1975 = vmul.u32 %v1719, 2146121005
        %v1976 = vmul.u32 %v1720, 2146121005
        %v1977 = vmul.u32 %v1721, 2146121005
        %v1978 = vmul.u32 %v1722, 2146121005
        %v1979 = vmul.u32 %v1723, 2146121005
        %v1980 = vmul.u32 %v1724, 2146121005
        %v1981 = vmul.u32 %v1725, 2146121005
        %v1982 = vmul.u32 %v1726, 2146121005
        %v1983 = vmul.u32 %v1727, 2146121005
        %v1984 = vmul.u32 %v1728, 2146121005
        %v1985 = vmul.u32 %v1729, 2146121005
        %v1986 = vmul.u32 %v1730, 2146121005
        %v1987 = vmul.u32 %v1731, 2146121005
        %v1988 = vmul.u32 %v1732, 2146121005
        %v1989 = vmul.u32 %v1733, 2146121005
        %v1990 = vmul.u32 %v1734, 2146121005
        %v1991 = vmul.u32 %v1735, 2146121005
        %v1992 = vmul.u32 %v1736, 2146121005
        %v1993 = vmul.u32 %v1737, 2146121005
        %v1994 = vmul.u32 %v1738, 2146121005
        %v1995 = vmul.u32 %v1739, 2146121005
        %v1996 = vmul.u32 %v1740, 2146121005
        %v1997 = vmul.u32 %v1741, 2146121005
        %v1998 = vmul.u32 %v1742, 2146121005
        %v1999 = vmul.u32 %v1743, 2146121005
        %v2000 = vmul.u32 %v1744, 2146121005
        %v2001 = vmul.u32 %v1745, 2146121005
        %v2002 = vmul.u32 %v1746, 2146121005
        %v2003 = vmul.u32 %v1747, 2146121005
        %v2004 = vmul.u32 %v1748, 2146121005
        %v2005 = vmul.u32 %v1749, 2146121005
        %v2006 = vmul.u32 %v1750, 2146121005
        %v2007 = vmul.u32 %v1751, 2146121005
        %v2008 = vmul.u32 %v1752, 2146121005
        %v2009 = vmul.u32 %v1753, 2146121005
        %v2010 = vmul.u32 %v1754, 2146121005
        %v2011 = vmul.u32 %v1755, 2146121005
        %v2012 = vmul.u32 %v1756, 2146121005
        %v2013 = vmul.u32 %v1757, 2146121005
        %v2014 = vmul.u32 %v1758, 2146121005
        %v2015 = vmul.u32 %v1759, 2146121005
        %v2016 = vmul.u32 %v1760, 2146121005
        %v2017 = vmul.u32 %v1761, 2146121005
        %v2018 = vmul.u32 %v1762, 2146121005
        %v2019 = vmul.u32 %v1763, 2146121005
        %v2020 = vmul.u32 %v1764, 2146121005
        %v2021 = vmul.u32 %v1765, 2146121005
        %v2022 = vmul.u32 %v1766, 2146121005
        %v2023 = vmul.u32 %v1767, 2146121005
        %v2024 = vmul.u32 %v1768, 2146121005
        %v2025 = vmul.u32 %v1769, 2146121005
        %v2026 = vmul.u32 %v1770, 2146121005
        %v2027 = vmul.u32 %v1771, 2146121005
        %v2028 = vmul.u32 %v1772, 2146121005
        %v2029 = vmul.u32 %v1773, 2146121005
        %v2030 = vmul.u32 %v1774, 2146121005
        %v2031 = vmul.u32 %v1775, 2146121005
        %v2032 = vmul.u32 %v1776, 2146121005
        %v2033 = vmul.u32 %v1777, 2146121005
        %v2034 = vmul.u32 %v1778, 2146121005
        %v2035 = vmul.u32 %v1779, 2146121005
        %v2036 = vmul.u32 %v1780, 2146121005
        %v2037 = vmul.u32 %v1781, 2146121005
        %v2038 = vmul.u32 %v1782, 2146121005
        %v2039 = vmul.u32 %v1783, 2146121005
        %v2040 = vmul.u32 %v1784, 2146121005
        %v2041 = vmul.u32 %v1785, 2146121005
        %v2042 = vmul.u32 %v1786, 2146121005
        %v2043 = vmul.u32 %v1787, 2146121005
        %v2044 = vmul.u32 %v1788, 2146121005
        %v2045 = vmul.u32 %v1789, 2146121005
        %v2046 = vmul.u32 %v1790, 2146121005
        %v2047 = vmul.u32 %v1791, 2146121005
        %v2048 = vmul.u32 %v1792, 2146121005
        %v2049 = vmul.u32 %v1793, 2146121005
        %v2050 = vmul.u32 %v1794, 2146121005
        %v2051 = vmul.u32 %v1795, 2146121005
        %v2052 = vmul.u32 %v1796, 2146121005
        %v2053 = vmul.u32 %v1797, 2146121005
        %v2054 = vmul.u32 %v1798, 2146121005
        %v2055 = vmul.u32 %v1799, 2146121005
        %v2056 = vmul.u32 %v1800, 2146121005
        %v2057 = vmul.u32 %v1801, 2146121005
        %v2058 = vmul.u32 %v1802, 2146121005
        %v2059 = vmul.u32 %v1803, 2146121005
        %v2060 = vmul.u32 %v1804, 2146121005
        %v2061 = vmul.u32 %v1805, 2146121005
        %v2062 = vmul.u32 %v1806, 2146121005
        %v2063 = vmul.u32 %v1807, 2146121005
        %v2064 = vmul.u32 %v1808, 2146121005
        %v2065 = vmul.u32 %v1809, 2146121005
        %v2066 = vmul.u32 %v1810, 2146121005
        %v2067 = vmul.u32 %v1811, 2146121005
        %v2068 = vmul.u32 %v1812, 2146121005
        %v2069 = vmul.u32 %v1813, 2146121005
        %v2070 = vmul.u32 %v1814, 2146121005
        %v2071 = vshrl.u32 %v1815, 15
        %v2072 = vshrl.u32 %v1816, 15
        %v2073 = vshrl.u32 %v1817, 15
        %v2074 = vshrl.u32 %v1818, 15
        %v2075 = vshrl.u32 %v1819, 15
        %v2076 = vshrl.u32 %v1820, 15
        %v2077 = vshrl.u32 %v1821, 15
        %v2078 = vshrl.u32 %v1822, 15
        %v2079 = vshrl.u32 %v1823, 15
        %v2080 = vshrl.u32 %v1824, 15
        %v2081 = vshrl.u32 %v1825, 15
        %v2082 = vshrl.u32 %v1826, 15
        %v2083 = vshrl.u32 %v1827, 15
        %v2084 = vshrl.u32 %v1828, 15
        %v2085 = vshrl.u32 %v1829, 15
        %v2086 = vshrl.u32 %v1830, 15
        %v2087 = vshrl.u32 %v1831, 15
        %v2088 = vshrl.u32 %v1832, 15
        %v2089 = vshrl.u32 %v1833, 15
        %v2090 = vshrl.u32 %v1834, 15
        %v2091 = vshrl.u32 %v1835, 15
        %v2092 = vshrl.u32 %v1836, 15
        %v2093 = vshrl.u32 %v1837, 15
        %v2094 = vshrl.u32 %v1838, 15
        %v2095 = vshrl.u32 %v1839, 15
        %v2096 = vshrl.u32 %v1840, 15
        %v2097 = vshrl.u32 %v1841, 15
        %v2098 = vshrl.u32 %v1842, 15
        %v2099 = vshrl.u32 %v1843, 15
        %v2100 = vshrl.u32 %v1844, 15
        %v2101 = vshrl.u32 %v1845, 15
        %v2102 = vshrl.u32 %v1846, 15
        %v2103 = vshrl.u32 %v1847, 15
        %v2104 = vshrl.u32 %v1848, 15
        %v2105 = vshrl.u32 %v1849, 15
        %v2106 = vshrl.u32 %v1850, 15
        %v2107 = vshrl.u32 %v1851, 15
        %v2108 = vshrl.u32 %v1852, 15
        %v2109 = vshrl.u32 %v1853, 15
        %v2110 = vshrl.u32 %v1854, 15
        %v2111 = vshrl.u32 %v1855, 15
        %v2112 = vshrl.u32 %v1856, 15
        %v2113 = vshrl.u32 %v1857, 15
        %v2114 = vshrl.u32 %v1858, 15
        %v2115 = vshrl.u32 %v1859, 15
        %v2116 = vshrl.u32 %v1860, 15
        %v2117 = vshrl.u32 %v1861, 15
        %v2118 = vshrl.u32 %v1862, 15
        %v2119 = vshrl.u32 %v1863, 15
        %v2120 = vshrl.u32 %v1864, 15
        %v2121 = vshrl.u32 %v1865, 15
        %v2122 = vshrl.u32 %v1866, 15
        %v2123 = vshrl.u32 %v1867, 15
        %v2124 = vshrl.u32 %v1868, 15
        %v2125 = vshrl.u32 %v1869, 15
        %v2126 = vshrl.u32 %v1870, 15
        %v2127 = vshrl.u32 %v1871, 15
        %v2128 = vshrl.u32 %v1872, 15
        %v2129 = vshrl.u32 %v1873, 15
        %v2130 = vshrl.u32 %v1874, 15
        %v2131 = vshrl.u32 %v1875, 15
        %v2132 = vshrl.u32 %v1876, 15
        %v2133 = vshrl.u32 %v1877, 15
        %v2134 = vshrl.u32 %v1878, 15
        %v2135 = vshrl.u32 %v1879, 15
        %v2136 = vshrl.u32 %v1880, 15
        %v2137 = vshrl.u32 %v1881, 15
        %v2138 = vshrl.u32 %v1882, 15
        %v2139 = vshrl.u32 %v1883, 15
        %v2140 = vshrl.u32 %v1884, 15
        %v2141 = vshrl.u32 %v1885, 15
        %v2142 = vshrl.u32 %v1886, 15
        %v2143 = vshrl.u32 %v1887, 15
        %v2144 = vshrl.u32 %v1888, 15
        %v2145 = vshrl.u32 %v1889, 15
        %v2146 = vshrl.u32 %v1890, 15
        %v2147 = vshrl.u32 %v1891, 15
        %v2148 = vshrl.u32 %v1892, 15
        %v2149 = vshrl.u32 %v1893, 15
        %v2150 = vshrl.u32 %v1894, 15
        %v2151 = vshrl.u32 %v1895, 15
        %v2152 = vshrl.u32 %v1896, 15
        %v2153 = vshrl.u32 %v1897, 15
        %v2154 = vshrl.u32 %v1898, 15
        %v2155 = vshrl.u32 %v1899, 15
        %v2156 = vshrl.u32 %v1900, 15
        %v2157 = vshrl.u32 %v1901, 15
        %v2158 = vshrl.u32 %v1902, 15
        %v2159 = vshrl.u32 %v1903, 15
        %v2160 = vshrl.u32 %v1904, 15
        %v2161 = vshrl.u32 %v1905, 15
        %v2162 = vshrl.u32 %v1906, 15
        %v2163 = vshrl.u32 %v1907, 15
        %v2164 = vshrl.u32 %v1908, 15
        %v2165 = vshrl.u32 %v1909, 15
        %v2166 = vshrl.u32 %v1910, 15
        %v2167 = vshrl.u32 %v1911, 15
        %v2168 = vshrl.u32 %v1912, 15
        %v2169 = vshrl.u32 %v1913, 15
        %v2170 = vshrl.u32 %v1914, 15
        %v2171 = vshrl.u32 %v1915, 15
        %v2172 = vshrl.u32 %v1916, 15
        %v2173 = vshrl.u32 %v1917, 15
        %v2174 = vshrl.u32 %v1918, 15
        %v2175 = vshrl.u32 %v1919, 15
        %v2176 = vshrl.u32 %v1920, 15
        %v2177 = vshrl.u32 %v1921, 15
        %v2178 = vshrl.u32 %v1922, 15
        %v2179 = vshrl.u32 %v1923, 15
        %v2180 = vshrl.u32 %v1924, 15
        %v2181 = vshrl.u32 %v1925, 15
        %v2182 = vshrl.u32 %v1926, 15
        %v2183 = vshrl.u32 %v1927, 15
        %v2184 = vshrl.u32 %v1928, 15
        %v2185 = vshrl.u32 %v1929, 15
        %v2186 = vshrl.u32 %v1930, 15
        %v2187 = vshrl.u32 %v1931, 15
        %v2188 = vshrl.u32 %v1932, 15
        %v2189 = vshrl.u32 %v1933, 15
        %v2190 = vshrl.u32 %v1934, 15
        %v2191 = vshrl.u32 %v1935, 15
        %v2192 = vshrl.u32 %v1936, 15
        %v2193 = vshrl.u32 %v1937, 15
        %v2194 = vshrl.u32 %v1938, 15
        %v2195 = vshrl.u32 %v1939, 15
        %v2196 = vshrl.u32 %v1940, 15
        %v2197 = vshrl.u32 %v1941, 15
        %v2198 = vshrl.u32 %v1942, 15
        %v2199 = vshrl.u32 %v1943, 15
        %v2200 = vshrl.u32 %v1944, 15
        %v2201 = vshrl.u32 %v1945, 15
        %v2202 = vshrl.u32 %v1946, 15
        %v2203 = vshrl.u32 %v1947, 15
        %v2204 = vshrl.u32 %v1948, 15
        %v2205 = vshrl.u32 %v1949, 15
        %v2206 = vshrl.u32 %v1950, 15
        %v2207 = vshrl.u32 %v1951, 15
        %v2208 = vshrl.u32 %v1952, 15
        %v2209 = vshrl.u32 %v1953, 15
        %v2210 = vshrl.u32 %v1954, 15
        %v2211 = vshrl.u32 %v1955, 15
        %v2212 = vshrl.u32 %v1956, 15
        %v2213 = vshrl.u32 %v1957, 15
        %v2214 = vshrl.u32 %v1958, 15
        %v2215 = vshrl.u32 %v1959, 15
        %v2216 = vshrl.u32 %v1960, 15
        %v2217 = vshrl.u32 %v1961, 15
        %v2218 = vshrl.u32 %v1962, 15
        %v2219 = vshrl.u32 %v1963, 15
        %v2220 = vshrl.u32 %v1964, 15
        %v2221 = vshrl.u32 %v1965, 15
        %v2222 = vshrl.u32 %v1966, 15
        %v2223 = vshrl.u32 %v1967, 15
        %v2224 = vshrl.u32 %v1968, 15
        %v2225 = vshrl.u32 %v1969, 15
        %v2226 = vshrl.u32 %v1970, 15
        %v2227 = vshrl.u32 %v1971, 15
        %v2228 = vshrl.u32 %v1972, 15
        %v2229 = vshrl.u32 %v1973, 15
        %v2230 = vshrl.u32 %v1974, 15
        %v2231 = vshrl.u32 %v1975, 15
        %v2232 = vshrl.u32 %v1976, 15
        %v2233 = vshrl.u32 %v1977, 15
        %v2234 = vshrl.u32 %v1978, 15
        %v2235 = vshrl.u32 %v1979, 15
        %v2236 = vshrl.u32 %v1980, 15
        %v2237 = vshrl.u32 %v1981, 15
        %v2238 = vshrl.u32 %v1982, 15
        %v2239 = vshrl.u32 %v1983, 15
        %v2240 = vshrl.u32 %v1984, 15
        %v2241 = vshrl.u32 %v1985, 15
        %v2242 = vshrl.u32 %v1986, 15
        %v2243 = vshrl.u32 %v1987, 15
        %v2244 = vshrl.u32 %v1988, 15
        %v2245 = vshrl.u32 %v1989, 15
        %v2246 = vshrl.u32 %v1990, 15
        %v2247 = vshrl.u32 %v1991, 15
        %v2248 = vshrl.u32 %v1992, 15
        %v2249 = vshrl.u32 %v1993, 15
        %v2250 = vshrl.u32 %v1994, 15
        %v2251 = vshrl.u32 %v1995, 15
        %v2252 = vshrl.u32 %v1996, 15
        %v2253 = vshrl.u32 %v1997, 15
        %v2254 = vshrl.u32 %v1998, 15
        %v2255 = vshrl.u32 %v1999, 15
        %v2256 = vshrl.u32 %v2000, 15
        %v2257 = vshrl.u32 %v2001, 15
        %v2258 = vshrl.u32 %v2002, 15
        %v2259 = vshrl.u32 %v2003, 15
        %v2260 = vshrl.u32 %v2004, 15
        %v2261 = vshrl.u32 %v2005, 15
        %v2262 = vshrl.u32 %v2006, 15
        %v2263 = vshrl.u32 %v2007, 15
        %v2264 = vshrl.u32 %v2008, 15
        %v2265 = vshrl.u32 %v2009, 15
        %v2266 = vshrl.u32 %v2010, 15
        %v2267 = vshrl.u32 %v2011, 15
        %v2268 = vshrl.u32 %v2012, 15
        %v2269 = vshrl.u32 %v2013, 15
        %v2270 = vshrl.u32 %v2014, 15
        %v2271 = vshrl.u32 %v2015, 15
        %v2272 = vshrl.u32 %v2016, 15
        %v2273 = vshrl.u32 %v2017, 15
        %v2274 = vshrl.u32 %v2018, 15
        %v2275 = vshrl.u32 %v2019, 15
        %v2276 = vshrl.u32 %v2020, 15
        %v2277 = vshrl.u32 %v2021, 15
        %v2278 = vshrl.u32 %v2022, 15
        %v2279 = vshrl.u32 %v2023, 15
        %v2280 = vshrl.u32 %v2024, 15
        %v2281 = vshrl.u32 %v2025, 15
        %v2282 = vshrl.u32 %v2026, 15
        %v2283 = vshrl.u32 %v2027, 15
        %v2284 = vshrl.u32 %v2028, 15
        %v2285 = vshrl.u32 %v2029, 15
        %v2286 = vshrl.u32 %v2030, 15
        %v2287 = vshrl.u32 %v2031, 15
        %v2288 = vshrl.u32 %v2032, 15
        %v2289 = vshrl.u32 %v2033, 15
        %v2290 = vshrl.u32 %v2034, 15
        %v2291 = vshrl.u32 %v2035, 15
        %v2292 = vshrl.u32 %v2036, 15
        %v2293 = vshrl.u32 %v2037, 15
        %v2294 = vshrl.u32 %v2038, 15
        %v2295 = vshrl.u32 %v2039, 15
        %v2296 = vshrl.u32 %v2040, 15
        %v2297 = vshrl.u32 %v2041, 15
        %v2298 = vshrl.u32 %v2042, 15
        %v2299 = vshrl.u32 %v2043, 15
        %v2300 = vshrl.u32 %v2044, 15
        %v2301 = vshrl.u32 %v2045, 15
        %v2302 = vshrl.u32 %v2046, 15
        %v2303 = vshrl.u32 %v2047, 15
        %v2304 = vshrl.u32 %v2048, 15
        %v2305 = vshrl.u32 %v2049, 15
        %v2306 = vshrl.u32 %v2050, 15
        %v2307 = vshrl.u32 %v2051, 15
        %v2308 = vshrl.u32 %v2052, 15
        %v2309 = vshrl.u32 %v2053, 15
        %v2310 = vshrl.u32 %v2054, 15
        %v2311 = vshrl.u32 %v2055, 15
        %v2312 = vshrl.u32 %v2056, 15
        %v2313 = vshrl.u32 %v2057, 15
        %v2314 = vshrl.u32 %v2058, 15
        %v2315 = vshrl.u32 %v2059, 15
        %v2316 = vshrl.u32 %v2060, 15
        %v2317 = vshrl.u32 %v2061, 15
        %v2318 = vshrl.u32 %v2062, 15
        %v2319 = vshrl.u32 %v2063, 15
        %v2320 = vshrl.u32 %v2064, 15
        %v2321 = vshrl.u32 %v2065, 15
        %v2322 = vshrl.u32 %v2066, 15
        %v2323 = vshrl.u32 %v2067, 15
        %v2324 = vshrl.u32 %v2068, 15
        %v2325 = vshrl.u32 %v2069, 15
        %v2326 = vshrl.u32 %v2070, 15
        %v2327 = vxor.u32 %v1815, %v2071
        %v2328 = vxor.u32 %v1816, %v2072
        %v2329 = vxor.u32 %v1817, %v2073
        %v2330 = vxor.u32 %v1818, %v2074
        %v2331 = vxor.u32 %v1819, %v2075
        %v2332 = vxor.u32 %v1820, %v2076
        %v2333 = vxor.u32 %v1821, %v2077
        %v2334 = vxor.u32 %v1822, %v2078
        %v2335 = vxor.u32 %v1823, %v2079
        %v2336 = vxor.u32 %v1824, %v2080
        %v2337 = vxor.u32 %v1825, %v2081
        %v2338 = vxor.u32 %v1826, %v2082
        %v2339 = vxor.u32 %v1827, %v2083
        %v2340 = vxor.u32 %v1828, %v2084
        %v2341 = vxor.u32 %v1829, %v2085
        %v2342 = vxor.u32 %v1830, %v2086
        %v2343 = vxor.u32 %v1831, %v2087
        %v2344 = vxor.u32 %v1832, %v2088
        %v2345 = vxor.u32 %v1833, %v2089
        %v2346 = vxor.u32 %v1834, %v2090
        %v2347 = vxor.u32 %v1835, %v2091
        %v2348 = vxor.u32 %v1836, %v2092
        %v2349 = vxor.u32 %v1837, %v2093
        %v2350 = vxor.u32 %v1838, %v2094
        %v2351 = vxor.u32 %v1839, %v2095
        %v2352 = vxor.u32 %v1840, %v2096
        %v2353 = vxor.u32 %v1841, %v2097
        %v2354 = vxor.u32 %v1842, %v2098
        %v2355 = vxor.u32 %v1843, %v2099
        %v2356 = vxor.u32 %v1844, %v2100
        %v2357 = vxor.u32 %v1845, %v2101
        %v2358 = vxor.u32 %v1846, %v2102
        %v2359 = vxor.u32 %v1847, %v2103
        %v2360 = vxor.u32 %v1848, %v2104
        %v2361 = vxor.u32 %v1849, %v2105
        %v2362 = vxor.u32 %v1850, %v2106
        %v2363 = vxor.u32 %v1851, %v2107
        %v2364 = vxor.u32 %v1852, %v2108
        %v2365 = vxor.u32 %v1853, %v2109
        %v2366 = vxor.u32 %v1854, %v2110
        %v2367 = vxor.u32 %v1855, %v2111
        %v2368 = vxor.u32 %v1856, %v2112
        %v2369 = vxor.u32 %v1857, %v2113
        %v2370 = vxor.u32 %v1858, %v2114
        %v2371 = vxor.u32 %v1859, %v2115
        %v2372 = vxor.u32 %v1860, %v2116
        %v2373 = vxor.u32 %v1861, %v2117
        %v2374 = vxor.u32 %v1862, %v2118
        %v2375 = vxor.u32 %v1863, %v2119
        %v2376 = vxor.u32 %v1864, %v2120
        %v2377 = vxor.u32 %v1865, %v2121
        %v2378 = vxor.u32 %v1866, %v2122
        %v2379 = vxor.u32 %v1867, %v2123
        %v2380 = vxor.u32 %v1868, %v2124
        %v2381 = vxor.u32 %v1869, %v2125
        %v2382 = vxor.u32 %v1870, %v2126
        %v2383 = vxor.u32 %v1871, %v2127
        %v2384 = vxor.u32 %v1872, %v2128
        %v2385 = vxor.u32 %v1873, %v2129
        %v2386 = vxor.u32 %v1874, %v2130
        %v2387 = vxor.u32 %v1875, %v2131
        %v2388 = vxor.u32 %v1876, %v2132
        %v2389 = vxor.u32 %v1877, %v2133
        %v2390 = vxor.u32 %v1878, %v2134
        %v2391 = vxor.u32 %v1879, %v2135
        %v2392 = vxor.u32 %v1880, %v2136
        %v2393 = vxor.u32 %v1881, %v2137
        %v2394 = vxor.u32 %v1882, %v2138
        %v2395 = vxor.u32 %v1883, %v2139
        %v2396 = vxor.u32 %v1884, %v2140
        %v2397 = vxor.u32 %v1885, %v2141
        %v2398 = vxor.u32 %v1886, %v2142
        %v2399 = vxor.u32 %v1887, %v2143
        %v2400 = vxor.u32 %v1888, %v2144
        %v2401 = vxor.u32 %v1889, %v2145
        %v2402 = vxor.u32 %v1890, %v2146
        %v2403 = vxor.u32 %v1891, %v2147
        %v2404 = vxor.u32 %v1892, %v2148
        %v2405 = vxor.u32 %v1893, %v2149
        %v2406 = vxor.u32 %v1894, %v2150
        %v2407 = vxor.u32 %v1895, %v2151
        %v2408 = vxor.u32 %v1896, %v2152
        %v2409 = vxor.u32 %v1897, %v2153
        %v2410 = vxor.u32 %v1898, %v2154
        %v2411 = vxor.u32 %v1899, %v2155
        %v2412 = vxor.u32 %v1900, %v2156
        %v2413 = vxor.u32 %v1901, %v2157
        %v2414 = vxor.u32 %v1902, %v2158
        %v2415 = vxor.u32 %v1903, %v2159
        %v2416 = vxor.u32 %v1904, %v2160
        %v2417 = vxor.u32 %v1905, %v2161
        %v2418 = vxor.u32 %v1906, %v2162
        %v2419 = vxor.u32 %v1907, %v2163
        %v2420 = vxor.u32 %v1908, %v2164
        %v2421 = vxor.u32 %v1909, %v2165
        %v2422 = vxor.u32 %v1910, %v2166
        %v2423 = vxor.u32 %v1911, %v2167
        %v2424 = vxor.u32 %v1912, %v2168
        %v2425 = vxor.u32 %v1913, %v2169
        %v2426 = vxor.u32 %v1914, %v2170
        %v2427 = vxor.u32 %v1915, %v2171
        %v2428 = vxor.u32 %v1916, %v2172
        %v2429 = vxor.u32 %v1917, %v2173
        %v2430 = vxor.u32 %v1918, %v2174
        %v2431 = vxor.u32 %v1919, %v2175
        %v2432 = vxor.u32 %v1920, %v2176
        %v2433 = vxor.u32 %v1921, %v2177
        %v2434 = vxor.u32 %v1922, %v2178
        %v2435 = vxor.u32 %v1923, %v2179
        %v2436 = vxor.u32 %v1924, %v2180
        %v2437 = vxor.u32 %v1925, %v2181
        %v2438 = vxor.u32 %v1926, %v2182
        %v2439 = vxor.u32 %v1927, %v2183
        %v2440 = vxor.u32 %v1928, %v2184
        %v2441 = vxor.u32 %v1929, %v2185
        %v2442 = vxor.u32 %v1930, %v2186
        %v2443 = vxor.u32 %v1931, %v2187
        %v2444 = vxor.u32 %v1932, %v2188
        %v2445 = vxor.u32 %v1933, %v2189
        %v2446 = vxor.u32 %v1934, %v2190
        %v2447 = vxor.u32 %v1935, %v2191
        %v2448 = vxor.u32 %v1936, %v2192
        %v2449 = vxor.u32 %v1937, %v2193
        %v2450 = vxor.u32 %v1938, %v2194
        %v2451 = vxor.u32 %v1939, %v2195
        %v2452 = vxor.u32 %v1940, %v2196
        %v2453 = vxor.u32 %v1941, %v2197
        %v2454 = vxor.u32 %v1942, %v2198
        %v2455 = vxor.u32 %v1943, %v2199
        %v2456 = vxor.u32 %v1944, %v2200
        %v2457 = vxor.u32 %v1945, %v2201
        %v2458 = vxor.u32 %v1946, %v2202
        %v2459 = vxor.u32 %v1947, %v2203
        %v2460 = vxor.u32 %v1948, %v2204
        %v2461 = vxor.u32 %v1949, %v2205
        %v2462 = vxor.u32 %v1950, %v2206
        %v2463 = vxor.u32 %v1951, %v2207
        %v2464 = vxor.u32 %v1952, %v2208
        %v2465 = vxor.u32 %v1953, %v2209
        %v2466 = vxor.u32 %v1954, %v2210
        %v2467 = vxor.u32 %v1955, %v2211
        %v2468 = vxor.u32 %v1956, %v2212
        %v2469 = vxor.u32 %v1957, %v2213
        %v2470 = vxor.u32 %v1958, %v2214
        %v2471 = vxor.u32 %v1959, %v2215
        %v2472 = vxor.u32 %v1960, %v2216
        %v2473 = vxor.u32 %v1961, %v2217
        %v2474 = vxor.u32 %v1962, %v2218
        %v2475 = vxor.u32 %v1963, %v2219
        %v2476 = vxor.u32 %v1964, %v2220
        %v2477 = vxor.u32 %v1965, %v2221
        %v2478 = vxor.u32 %v1966, %v2222
        %v2479 = vxor.u32 %v1967, %v2223
        %v2480 = vxor.u32 %v1968, %v2224
        %v2481 = vxor.u32 %v1969, %v2225
        %v2482 = vxor.u32 %v1970, %v2226
        %v2483 = vxor.u32 %v1971, %v2227
        %v2484 = vxor.u32 %v1972, %v2228
        %v2485 = vxor.u32 %v1973, %v2229
        %v2486 = vxor.u32 %v1974, %v2230
        %v2487 = vxor.u32 %v1975, %v2231
        %v2488 = vxor.u32 %v1976, %v2232
        %v2489 = vxor.u32 %v1977, %v2233
        %v2490 = vxor.u32 %v1978, %v2234
        %v2491 = vxor.u32 %v1979, %v2235
        %v2492 = vxor.u32 %v1980, %v2236
        %v2493 = vxor.u32 %v1981, %v2237
        %v2494 = vxor.u32 %v1982, %v2238
        %v2495 = vxor.u32 %v1983, %v2239
        %v2496 = vxor.u32 %v1984, %v2240
        %v2497 = vxor.u32 %v1985, %v2241
        %v2498 = vxor.u32 %v1986, %v2242
        %v2499 = vxor.u32 %v1987, %v2243
        %v2500 = vxor.u32 %v1988, %v2244
        %v2501 = vxor.u32 %v1989, %v2245
        %v2502 = vxor.u32 %v1990, %v2246
        %v2503 = vxor.u32 %v1991, %v2247
        %v2504 = vxor.u32 %v1992, %v2248
        %v2505 = vxor.u32 %v1993, %v2249
        %v2506 = vxor.u32 %v1994, %v2250
        %v2507 = vxor.u32 %v1995, %v2251
        %v2508 = vxor.u32 %v1996, %v2252
        %v2509 = vxor.u32 %v1997, %v2253
        %v2510 = vxor.u32 %v1998, %v2254
        %v2511 = vxor.u32 %v1999, %v2255
        %v2512 = vxor.u32 %v2000, %v2256
        %v2513 = vxor.u32 %v2001, %v2257
        %v2514 = vxor.u32 %v2002, %v2258
        %v2515 = vxor.u32 %v2003, %v2259
        %v2516 = vxor.u32 %v2004, %v2260
        %v2517 = vxor.u32 %v2005, %v2261
        %v2518 = vxor.u32 %v2006, %v2262
        %v2519 = vxor.u32 %v2007, %v2263
        %v2520 = vxor.u32 %v2008, %v2264
        %v2521 = vxor.u32 %v2009, %v2265
        %v2522 = vxor.u32 %v2010, %v2266
        %v2523 = vxor.u32 %v2011, %v2267
        %v2524 = vxor.u32 %v2012, %v2268
        %v2525 = vxor.u32 %v2013, %v2269
        %v2526 = vxor.u32 %v2014, %v2270
        %v2527 = vxor.u32 %v2015, %v2271
        %v2528 = vxor.u32 %v2016, %v2272
        %v2529 = vxor.u32 %v2017, %v2273
        %v2530 = vxor.u32 %v2018, %v2274
        %v2531 = vxor.u32 %v2019, %v2275
        %v2532 = vxor.u32 %v2020, %v2276
        %v2533 = vxor.u32 %v2021, %v2277
        %v2534 = vxor.u32 %v2022, %v2278
        %v2535 = vxor.u32 %v2023, %v2279
        %v2536 = vxor.u32 %v2024, %v2280
        %v2537 = vxor.u32 %v2025, %v2281
        %v2538 = vxor.u32 %v2026, %v2282
        %v2539 = vxor.u32 %v2027, %v2283
        %v2540 = vxor.u32 %v2028, %v2284
        %v2541 = vxor.u32 %v2029, %v2285
        %v2542 = vxor.u32 %v2030, %v2286
        %v2543 = vxor.u32 %v2031, %v2287
        %v2544 = vxor.u32 %v2032, %v2288
        %v2545 = vxor.u32 %v2033, %v2289
        %v2546 = vxor.u32 %v2034, %v2290
        %v2547 = vxor.u32 %v2035, %v2291
        %v2548 = vxor.u32 %v2036, %v2292
        %v2549 = vxor.u32 %v2037, %v2293
        %v2550 = vxor.u32 %v2038, %v2294
        %v2551 = vxor.u32 %v2039, %v2295
        %v2552 = vxor.u32 %v2040, %v2296
        %v2553 = vxor.u32 %v2041, %v2297
        %v2554 = vxor.u32 %v2042, %v2298
        %v2555 = vxor.u32 %v2043, %v2299
        %v2556 = vxor.u32 %v2044, %v2300
        %v2557 = vxor.u32 %v2045, %v2301
        %v2558 = vxor.u32 %v2046, %v2302
        %v2559 = vxor.u32 %v2047, %v2303
        %v2560 = vxor.u32 %v2048, %v2304
        %v2561 = vxor.u32 %v2049, %v2305
        %v2562 = vxor.u32 %v2050, %v2306
        %v2563 = vxor.u32 %v2051, %v2307
        %v2564 = vxor.u32 %v2052, %v2308
        %v2565 = vxor.u32 %v2053, %v2309
        %v2566 = vxor.u32 %v2054, %v2310
        %v2567 = vxor.u32 %v2055, %v2311
        %v2568 = vxor.u32 %v2056, %v2312
        %v2569 = vxor.u32 %v2057, %v2313
        %v2570 = vxor.u32 %v2058, %v2314
        %v2571 = vxor.u32 %v2059, %v2315
        %v2572 = vxor.u32 %v2060, %v2316
        %v2573 = vxor.u32 %v2061, %v2317
        %v2574 = vxor.u32 %v2062, %v2318
        %v2575 = vxor.u32 %v2063, %v2319
        %v2576 = vxor.u32 %v2064, %v2320
        %v2577 = vxor.u32 %v2065, %v2321
        %v2578 = vxor.u32 %v2066, %v2322
        %v2579 = vxor.u32 %v2067, %v2323
        %v2580 = vxor.u32 %v2068, %v2324
        %v2581 = vxor.u32 %v2069, %v2325
        %v2582 = vxor.u32 %v2070, %v2326
        %v2583 = vmul.u32 %v2327, 2221713035
        %v2584 = vmul.u32 %v2328, 2221713035
        %v2585 = vmul.u32 %v2329, 2221713035
        %v2586 = vmul.u32 %v2330, 2221713035
        %v2587 = vmul.u32 %v2331, 2221713035
        %v2588 = vmul.u32 %v2332, 2221713035
        %v2589 = vmul.u32 %v2333, 2221713035
        %v2590 = vmul.u32 %v2334, 2221713035
        %v2591 = vmul.u32 %v2335, 2221713035
        %v2592 = vmul.u32 %v2336, 2221713035
        %v2593 = vmul.u32 %v2337, 2221713035
        %v2594 = vmul.u32 %v2338, 2221713035
        %v2595 = vmul.u32 %v2339, 2221713035
        %v2596 = vmul.u32 %v2340, 2221713035
        %v2597 = vmul.u32 %v2341, 2221713035
        %v2598 = vmul.u32 %v2342, 2221713035
        %v2599 = vmul.u32 %v2343, 2221713035
        %v2600 = vmul.u32 %v2344, 2221713035
        %v2601 = vmul.u32 %v2345, 2221713035
        %v2602 = vmul.u32 %v2346, 2221713035
        %v2603 = vmul.u32 %v2347, 2221713035
        %v2604 = vmul.u32 %v2348, 2221713035
        %v2605 = vmul.u32 %v2349, 2221713035
        %v2606 = vmul.u32 %v2350, 2221713035
        %v2607 = vmul.u32 %v2351, 2221713035
        %v2608 = vmul.u32 %v2352, 2221713035
        %v2609 = vmul.u32 %v2353, 2221713035
        %v2610 = vmul.u32 %v2354, 2221713035
        %v2611 = vmul.u32 %v2355, 2221713035
        %v2612 = vmul.u32 %v2356, 2221713035
        %v2613 = vmul.u32 %v2357, 2221713035
        %v2614 = vmul.u32 %v2358, 2221713035
        %v2615 = vmul.u32 %v2359, 2221713035
        %v2616 = vmul.u32 %v2360, 2221713035
        %v2617 = vmul.u32 %v2361, 2221713035
        %v2618 = vmul.u32 %v2362, 2221713035
        %v2619 = vmul.u32 %v2363, 2221713035
        %v2620 = vmul.u32 %v2364, 2221713035
        %v2621 = vmul.u32 %v2365, 2221713035
        %v2622 = vmul.u32 %v2366, 2221713035
        %v2623 = vmul.u32 %v2367, 2221713035
        %v2624 = vmul.u32 %v2368, 2221713035
        %v2625 = vmul.u32 %v2369, 2221713035
        %v2626 = vmul.u32 %v2370, 2221713035
        %v2627 = vmul.u32 %v2371, 2221713035
        %v2628 = vmul.u32 %v2372, 2221713035
        %v2629 = vmul.u32 %v2373, 2221713035
        %v2630 = vmul.u32 %v2374, 2221713035
        %v2631 = vmul.u32 %v2375, 2221713035
        %v2632 = vmul.u32 %v2376, 2221713035
        %v2633 = vmul.u32 %v2377, 2221713035
        %v2634 = vmul.u32 %v2378, 2221713035
        %v2635 = vmul.u32 %v2379, 2221713035
        %v2636 = vmul.u32 %v2380, 2221713035
        %v2637 = vmul.u32 %v2381, 2221713035
        %v2638 = vmul.u32 %v2382, 2221713035
        %v2639 = vmul.u32 %v2383, 2221713035
        %v2640 = vmul.u32 %v2384, 2221713035
        %v2641 = vmul.u32 %v2385, 2221713035
        %v2642 = vmul.u32 %v2386, 2221713035
        %v2643 = vmul.u32 %v2387, 2221713035
        %v2644 = vmul.u32 %v2388, 2221713035
        %v2645 = vmul.u32 %v2389, 2221713035
        %v2646 = vmul.u32 %v2390, 2221713035
        %v2647 = vmul.u32 %v2391, 2221713035
        %v2648 = vmul.u32 %v2392, 2221713035
        %v2649 = vmul.u32 %v2393, 2221713035
        %v2650 = vmul.u32 %v2394, 2221713035
        %v2651 = vmul.u32 %v2395, 2221713035
        %v2652 = vmul.u32 %v2396, 2221713035
        %v2653 = vmul.u32 %v2397, 2221713035
        %v2654 = vmul.u32 %v2398, 2221713035
        %v2655 = vmul.u32 %v2399, 2221713035
        %v2656 = vmul.u32 %v2400, 2221713035
        %v2657 = vmul.u32 %v2401, 2221713035
        %v2658 = vmul.u32 %v2402, 2221713035
        %v2659 = vmul.u32 %v2403, 2221713035
        %v2660 = vmul.u32 %v2404, 2221713035
        %v2661 = vmul.u32 %v2405, 2221713035
        %v2662 = vmul.u32 %v2406, 2221713035
        %v2663 = vmul.u32 %v2407, 2221713035
        %v2664 = vmul.u32 %v2408, 2221713035
        %v2665 = vmul.u32 %v2409, 2221713035
        %v2666 = vmul.u32 %v2410, 2221713035
        %v2667 = vmul.u32 %v2411, 2221713035
        %v2668 = vmul.u32 %v2412, 2221713035
        %v2669 = vmul.u32 %v2413, 2221713035
        %v2670 = vmul.u32 %v2414, 2221713035
        %v2671 = vmul.u32 %v2415, 2221713035
        %v2672 = vmul.u32 %v2416, 2221713035
        %v2673 = vmul.u32 %v2417, 2221713035
        %v2674 = vmul.u32 %v2418, 2221713035
        %v2675 = vmul.u32 %v2419, 2221713035
        %v2676 = vmul.u32 %v2420, 2221713035
        %v2677 = vmul.u32 %v2421, 2221713035
        %v2678 = vmul.u32 %v2422, 2221713035
        %v2679 = vmul.u32 %v2423, 2221713035
        %v2680 = vmul.u32 %v2424, 2221713035
        %v2681 = vmul.u32 %v2425, 2221713035
        %v2682 = vmul.u32 %v2426, 2221713035
        %v2683 = vmul.u32 %v2427, 2221713035
        %v2684 = vmul.u32 %v2428, 2221713035
        %v2685 = vmul.u32 %v2429, 2221713035
        %v2686 = vmul.u32 %v2430, 2221713035
        %v2687 = vmul.u32 %v2431, 2221713035
        %v2688 = vmul.u32 %v2432, 2221713035
        %v2689 = vmul.u32 %v2433, 2221713035
        %v2690 = vmul.u32 %v2434, 2221713035
        %v2691 = vmul.u32 %v2435, 2221713035
        %v2692 = vmul.u32 %v2436, 2221713035
        %v2693 = vmul.u32 %v2437, 2221713035
        %v2694 = vmul.u32 %v2438, 2221713035
        %v2695 = vmul.u32 %v2439, 2221713035
        %v2696 = vmul.u32 %v2440, 2221713035
        %v2697 = vmul.u32 %v2441, 2221713035
        %v2698 = vmul.u32 %v2442, 2221713035
        %v2699 = vmul.u32 %v2443, 2221713035
        %v2700 = vmul.u32 %v2444, 2221713035
        %v2701 = vmul.u32 %v2445, 2221713035
        %v2702 = vmul.u32 %v2446, 2221713035
        %v2703 = vmul.u32 %v2447, 2221713035
        %v2704 = vmul.u32 %v2448, 2221713035
        %v2705 = vmul.u32 %v2449, 2221713035
        %v2706 = vmul.u32 %v2450, 2221713035
        %v2707 = vmul.u32 %v2451, 2221713035
        %v2708 = vmul.u32 %v2452, 2221713035
        %v2709 = vmul.u32 %v2453, 2221713035
        %v2710 = vmul.u32 %v2454, 2221713035
        %v2711 = vmul.u32 %v2455, 2221713035
        %v2712 = vmul.u32 %v2456, 2221713035
        %v2713 = vmul.u32 %v2457, 2221713035
        %v2714 = vmul.u32 %v2458, 2221713035
        %v2715 = vmul.u32 %v2459, 2221713035
        %v2716 = vmul.u32 %v2460, 2221713035
        %v2717 = vmul.u32 %v2461, 2221713035
        %v2718 = vmul.u32 %v2462, 2221713035
        %v2719 = vmul.u32 %v2463, 2221713035
        %v2720 = vmul.u32 %v2464, 2221713035
        %v2721 = vmul.u32 %v2465, 2221713035
        %v2722 = vmul.u32 %v2466, 2221713035
        %v2723 = vmul.u32 %v2467, 2221713035
        %v2724 = vmul.u32 %v2468, 2221713035
        %v2725 = vmul.u32 %v2469, 2221713035
        %v2726 = vmul.u32 %v2470, 2221713035
        %v2727 = vmul.u32 %v2471, 2221713035
        %v2728 = vmul.u32 %v2472, 2221713035
        %v2729 = vmul.u32 %v2473, 2221713035
        %v2730 = vmul.u32 %v2474, 2221713035
        %v2731 = vmul.u32 %v2475, 2221713035
        %v2732 = vmul.u32 %v2476, 2221713035
        %v2733 = vmul.u32 %v2477, 2221713035
        %v2734 = vmul.u32 %v2478, 2221713035
        %v2735 = vmul.u32 %v2479, 2221713035
        %v2736 = vmul.u32 %v2480, 2221713035
        %v2737 = vmul.u32 %v2481, 2221713035
        %v2738 = vmul.u32 %v2482, 2221713035
        %v2739 = vmul.u32 %v2483, 2221713035
        %v2740 = vmul.u32 %v2484, 2221713035
        %v2741 = vmul.u32 %v2485, 2221713035
        %v2742 = vmul.u32 %v2486, 2221713035
        %v2743 = vmul.u32 %v2487, 2221713035
        %v2744 = vmul.u32 %v2488, 2221713035
        %v2745 = vmul.u32 %v2489, 2221713035
        %v2746 = vmul.u32 %v2490, 2221713035
        %v2747 = vmul.u32 %v2491, 2221713035
        %v2748 = vmul.u32 %v2492, 2221713035
        %v2749 = vmul.u32 %v2493, 2221713035
        %v2750 = vmul.u32 %v2494, 2221713035
        %v2751 = vmul.u32 %v2495, 2221713035
        %v2752 = vmul.u32 %v2496, 2221713035
        %v2753 = vmul.u32 %v2497, 2221713035
        %v2754 = vmul.u32 %v2498, 2221713035
        %v2755 = vmul.u32 %v2499, 2221713035
        %v2756 = vmul.u32 %v2500, 2221713035
        %v2757 = vmul.u32 %v2501, 2221713035
        %v2758 = vmul.u32 %v2502, 2221713035
        %v2759 = vmul.u32 %v2503, 2221713035
        %v2760 = vmul.u32 %v2504, 2221713035
        %v2761 = vmul.u32 %v2505, 2221713035
        %v2762 = vmul.u32 %v2506, 2221713035
        %v2763 = vmul.u32 %v2507, 2221713035
        %v2764 = vmul.u32 %v2508, 2221713035
        %v2765 = vmul.u32 %v2509, 2221713035
        %v2766 = vmul.u32 %v2510, 2221713035
        %v2767 = vmul.u32 %v2511, 2221713035
        %v2768 = vmul.u32 %v2512, 2221713035
        %v2769 = vmul.u32 %v2513, 2221713035
        %v2770 = vmul.u32 %v2514, 2221713035
        %v2771 = vmul.u32 %v2515, 2221713035
        %v2772 = vmul.u32 %v2516, 2221713035
        %v2773 = vmul.u32 %v2517, 2221713035
        %v2774 = vmul.u32 %v2518, 2221713035
        %v2775 = vmul.u32 %v2519, 2221713035
        %v2776 = vmul.u32 %v2520, 2221713035
        %v2777 = vmul.u32 %v2521, 2221713035
        %v2778 = vmul.u32 %v2522, 2221713035
        %v2779 = vmul.u32 %v2523, 2221713035
        %v2780 = vmul.u32 %v2524, 2221713035
        %v2781 = vmul.u32 %v2525, 2221713035
        %v2782 = vmul.u32 %v2526, 2221713035
        %v2783 = vmul.u32 %v2527, 2221713035
        %v2784 = vmul.u32 %v2528, 2221713035
        %v2785 = vmul.u32 %v2529, 2221713035
        %v2786 = vmul.u32 %v2530, 2221713035
        %v2787 = vmul.u32 %v2531, 2221713035
        %v2788 = vmul.u32 %v2532, 2221713035
        %v2789 = vmul.u32 %v2533, 2221713035
        %v2790 = vmul.u32 %v2534, 2221713035
        %v2791 = vmul.u32 %v2535, 2221713035
        %v2792 = vmul.u32 %v2536, 2221713035
        %v2793 = vmul.u32 %v2537, 2221713035
        %v2794 = vmul.u32 %v2538, 2221713035
        %v2795 = vmul.u32 %v2539, 2221713035
        %v2796 = vmul.u32 %v2540, 2221713035
        %v2797 = vmul.u32 %v2541, 2221713035
        %v2798 = vmul.u32 %v2542, 2221713035
        %v2799 = vmul.u32 %v2543, 2221713035
        %v2800 = vmul.u32 %v2544, 2221713035
        %v2801 = vmul.u32 %v2545, 2221713035
        %v2802 = vmul.u32 %v2546, 2221713035
        %v2803 = vmul.u32 %v2547, 2221713035
        %v2804 = vmul.u32 %v2548, 2221713035
        %v2805 = vmul.u32 %v2549, 2221713035
        %v2806 = vmul.u32 %v2550, 2221713035
        %v2807 = vmul.u32 %v2551, 2221713035
        %v2808 = vmul.u32 %v2552, 2221713035
        %v2809 = vmul.u32 %v2553, 2221713035
        %v2810 = vmul.u32 %v2554, 2221713035
        %v2811 = vmul.u32 %v2555, 2221713035
        %v2812 = vmul.u32 %v2556, 2221713035
        %v2813 = vmul.u32 %v2557, 2221713035
        %v2814 = vmul.u32 %v2558, 2221713035
        %v2815 = vmul.u32 %v2559, 2221713035
        %v2816 = vmul.u32 %v2560, 2221713035
        %v2817 = vmul.u32 %v2561, 2221713035
        %v2818 = vmul.u32 %v2562, 2221713035
        %v2819 = vmul.u32 %v2563, 2221713035
        %v2820 = vmul.u32 %v2564, 2221713035
        %v2821 = vmul.u32 %v2565, 2221713035
        %v2822 = vmul.u32 %v2566, 2221713035
        %v2823 = vmul.u32 %v2567, 2221713035
        %v2824 = vmul.u32 %v2568, 2221713035
        %v2825 = vmul.u32 %v2569, 2221713035
        %v2826 = vmul.u32 %v2570, 2221713035
        %v2827 = vmul.u32 %v2571, 2221713035
        %v2828 = vmul.u32 %v2572, 2221713035
        %v2829 = vmul.u32 %v2573, 2221713035
        %v2830 = vmul.u32 %v2574, 2221713035
        %v2831 = vmul.u32 %v2575, 2221713035
        %v2832 = vmul.u32 %v2576, 2221713035
        %v2833 = vmul.u32 %v2577, 2221713035
        %v2834 = vmul.u32 %v2578, 2221713035
        %v2835 = vmul.u32 %v2579, 2221713035
        %v2836 = vmul.u32 %v2580, 2221713035
        %v2837 = vmul.u32 %v2581, 2221713035
        %v2838 = vmul.u32 %v2582, 2221713035
        %v2839 = vshrl.u32 %v2583, 16
        %v2840 = vshrl.u32 %v2584, 16
        %v2841 = vshrl.u32 %v2585, 16
        %v2842 = vshrl.u32 %v2586, 16
        %v2843 = vshrl.u32 %v2587, 16
        %v2844 = vshrl.u32 %v2588, 16
        %v2845 = vshrl.u32 %v2589, 16
        %v2846 = vshrl.u32 %v2590, 16
        %v2847 = vshrl.u32 %v2591, 16
        %v2848 = vshrl.u32 %v2592, 16
        %v2849 = vshrl.u32 %v2593, 16
        %v2850 = vshrl.u32 %v2594, 16
        %v2851 = vshrl.u32 %v2595, 16
        %v2852 = vshrl.u32 %v2596, 16
        %v2853 = vshrl.u32 %v2597, 16
        %v2854 = vshrl.u32 %v2598, 16
        %v2855 = vshrl.u32 %v2599, 16
        %v2856 = vshrl.u32 %v2600, 16
        %v2857 = vshrl.u32 %v2601, 16
        %v2858 = vshrl.u32 %v2602, 16
        %v2859 = vshrl.u32 %v2603, 16
        %v2860 = vshrl.u32 %v2604, 16
        %v2861 = vshrl.u32 %v2605, 16
        %v2862 = vshrl.u32 %v2606, 16
        %v2863 = vshrl.u32 %v2607, 16
        %v2864 = vshrl.u32 %v2608, 16
        %v2865 = vshrl.u32 %v2609, 16
        %v2866 = vshrl.u32 %v2610, 16
        %v2867 = vshrl.u32 %v2611, 16
        %v2868 = vshrl.u32 %v2612, 16
        %v2869 = vshrl.u32 %v2613, 16
        %v2870 = vshrl.u32 %v2614, 16
        %v2871 = vshrl.u32 %v2615, 16
        %v2872 = vshrl.u32 %v2616, 16
        %v2873 = vshrl.u32 %v2617, 16
        %v2874 = vshrl.u32 %v2618, 16
        %v2875 = vshrl.u32 %v2619, 16
        %v2876 = vshrl.u32 %v2620, 16
        %v2877 = vshrl.u32 %v2621, 16
        %v2878 = vshrl.u32 %v2622, 16
        %v2879 = vshrl.u32 %v2623, 16
        %v2880 = vshrl.u32 %v2624, 16
        %v2881 = vshrl.u32 %v2625, 16
        %v2882 = vshrl.u32 %v2626, 16
        %v2883 = vshrl.u32 %v2627, 16
        %v2884 = vshrl.u32 %v2628, 16
        %v2885 = vshrl.u32 %v2629, 16
        %v2886 = vshrl.u32 %v2630, 16
        %v2887 = vshrl.u32 %v2631, 16
        %v2888 = vshrl.u32 %v2632, 16
        %v2889 = vshrl.u32 %v2633, 16
        %v2890 = vshrl.u32 %v2634, 16
        %v2891 = vshrl.u32 %v2635, 16
        %v2892 = vshrl.u32 %v2636, 16
        %v2893 = vshrl.u32 %v2637, 16
        %v2894 = vshrl.u32 %v2638, 16
        %v2895 = vshrl.u32 %v2639, 16
        %v2896 = vshrl.u32 %v2640, 16
        %v2897 = vshrl.u32 %v2641, 16
        %v2898 = vshrl.u32 %v2642, 16
        %v2899 = vshrl.u32 %v2643, 16
        %v2900 = vshrl.u32 %v2644, 16
        %v2901 = vshrl.u32 %v2645, 16
        %v2902 = vshrl.u32 %v2646, 16
        %v2903 = vshrl.u32 %v2647, 16
        %v2904 = vshrl.u32 %v2648, 16
        %v2905 = vshrl.u32 %v2649, 16
        %v2906 = vshrl.u32 %v2650, 16
        %v2907 = vshrl.u32 %v2651, 16
        %v2908 = vshrl.u32 %v2652, 16
        %v2909 = vshrl.u32 %v2653, 16
        %v2910 = vshrl.u32 %v2654, 16
        %v2911 = vshrl.u32 %v2655, 16
        %v2912 = vshrl.u32 %v2656, 16
        %v2913 = vshrl.u32 %v2657, 16
        %v2914 = vshrl.u32 %v2658, 16
        %v2915 = vshrl.u32 %v2659, 16
        %v2916 = vshrl.u32 %v2660, 16
        %v2917 = vshrl.u32 %v2661, 16
        %v2918 = vshrl.u32 %v2662, 16
        %v2919 = vshrl.u32 %v2663, 16
        %v2920 = vshrl.u32 %v2664, 16
        %v2921 = vshrl.u32 %v2665, 16
        %v2922 = vshrl.u32 %v2666, 16
        %v2923 = vshrl.u32 %v2667, 16
        %v2924 = vshrl.u32 %v2668, 16
        %v2925 = vshrl.u32 %v2669, 16
        %v2926 = vshrl.u32 %v2670, 16
        %v2927 = vshrl.u32 %v2671, 16
        %v2928 = vshrl.u32 %v2672, 16
        %v2929 = vshrl.u32 %v2673, 16
        %v2930 = vshrl.u32 %v2674, 16
        %v2931 = vshrl.u32 %v2675, 16
        %v2932 = vshrl.u32 %v2676, 16
        %v2933 = vshrl.u32 %v2677, 16
        %v2934 = vshrl.u32 %v2678, 16
        %v2935 = vshrl.u32 %v2679, 16
        %v2936 = vshrl.u32 %v2680, 16
        %v2937 = vshrl.u32 %v2681, 16
        %v2938 = vshrl.u32 %v2682, 16
        %v2939 = vshrl.u32 %v2683, 16
        %v2940 = vshrl.u32 %v2684, 16
        %v2941 = vshrl.u32 %v2685, 16
        %v2942 = vshrl.u32 %v2686, 16
        %v2943 = vshrl.u32 %v2687, 16
        %v2944 = vshrl.u32 %v2688, 16
        %v2945 = vshrl.u32 %v2689, 16
        %v2946 = vshrl.u32 %v2690, 16
        %v2947 = vshrl.u32 %v2691, 16
        %v2948 = vshrl.u32 %v2692, 16
        %v2949 = vshrl.u32 %v2693, 16
        %v2950 = vshrl.u32 %v2694, 16
        %v2951 = vshrl.u32 %v2695, 16
        %v2952 = vshrl.u32 %v2696, 16
        %v2953 = vshrl.u32 %v2697, 16
        %v2954 = vshrl.u32 %v2698, 16
        %v2955 = vshrl.u32 %v2699, 16
        %v2956 = vshrl.u32 %v2700, 16
        %v2957 = vshrl.u32 %v2701, 16
        %v2958 = vshrl.u32 %v2702, 16
        %v2959 = vshrl.u32 %v2703, 16
        %v2960 = vshrl.u32 %v2704, 16
        %v2961 = vshrl.u32 %v2705, 16
        %v2962 = vshrl.u32 %v2706, 16
        %v2963 = vshrl.u32 %v2707, 16
        %v2964 = vshrl.u32 %v2708, 16
        %v2965 = vshrl.u32 %v2709, 16
        %v2966 = vshrl.u32 %v2710, 16
        %v2967 = vshrl.u32 %v2711, 16
        %v2968 = vshrl.u32 %v2712, 16
        %v2969 = vshrl.u32 %v2713, 16
        %v2970 = vshrl.u32 %v2714, 16
        %v2971 = vshrl.u32 %v2715, 16
        %v2972 = vshrl.u32 %v2716, 16
        %v2973 = vshrl.u32 %v2717, 16
        %v2974 = vshrl.u32 %v2718, 16
        %v2975 = vshrl.u32 %v2719, 16
        %v2976 = vshrl.u32 %v2720, 16
        %v2977 = vshrl.u32 %v2721, 16
        %v2978 = vshrl.u32 %v2722, 16
        %v2979 = vshrl.u32 %v2723, 16
        %v2980 = vshrl.u32 %v2724, 16
        %v2981 = vshrl.u32 %v2725, 16
        %v2982 = vshrl.u32 %v2726, 16
        %v2983 = vshrl.u32 %v2727, 16
        %v2984 = vshrl.u32 %v2728, 16
        %v2985 = vshrl.u32 %v2729, 16
        %v2986 = vshrl.u32 %v2730, 16
        %v2987 = vshrl.u32 %v2731, 16
        %v2988 = vshrl.u32 %v2732, 16
        %v2989 = vshrl.u32 %v2733, 16
        %v2990 = vshrl.u32 %v2734, 16
        %v2991 = vshrl.u32 %v2735, 16
        %v2992 = vshrl.u32 %v2736, 16
        %v2993 = vshrl.u32 %v2737, 16
        %v2994 = vshrl.u32 %v2738, 16
        %v2995 = vshrl.u32 %v2739, 16
        %v2996 = vshrl.u32 %v2740, 16
        %v2997 = vshrl.u32 %v2741, 16
        %v2998 = vshrl.u32 %v2742, 16
        %v2999 = vshrl.u32 %v2743, 16
        %v3000 = vshrl.u32 %v2744, 16
        %v3001 = vshrl.u32 %v2745, 16
        %v3002 = vshrl.u32 %v2746, 16
        %v3003 = vshrl.u32 %v2747, 16
        %v3004 = vshrl.u32 %v2748, 16
        %v3005 = vshrl.u32 %v2749, 16
        %v3006 = vshrl.u32 %v2750, 16
        %v3007 = vshrl.u32 %v2751, 16
        %v3008 = vshrl.u32 %v2752, 16
        %v3009 = vshrl.u32 %v2753, 16
        %v3010 = vshrl.u32 %v2754, 16
        %v3011 = vshrl.u32 %v2755, 16
        %v3012 = vshrl.u32 %v2756, 16
        %v3013 = vshrl.u32 %v2757, 16
        %v3014 = vshrl.u32 %v2758, 16
        %v3015 = vshrl.u32 %v2759, 16
        %v3016 = vshrl.u32 %v2760, 16
        %v3017 = vshrl.u32 %v2761, 16
        %v3018 = vshrl.u32 %v2762, 16
        %v3019 = vshrl.u32 %v2763, 16
        %v3020 = vshrl.u32 %v2764, 16
        %v3021 = vshrl.u32 %v2765, 16
        %v3022 = vshrl.u32 %v2766, 16
        %v3023 = vshrl.u32 %v2767, 16
        %v3024 = vshrl.u32 %v2768, 16
        %v3025 = vshrl.u32 %v2769, 16
        %v3026 = vshrl.u32 %v2770, 16
        %v3027 = vshrl.u32 %v2771, 16
        %v3028 = vshrl.u32 %v2772, 16
        %v3029 = vshrl.u32 %v2773, 16
        %v3030 = vshrl.u32 %v2774, 16
        %v3031 = vshrl.u32 %v2775, 16
        %v3032 = vshrl.u32 %v2776, 16
        %v3033 = vshrl.u32 %v2777, 16
        %v3034 = vshrl.u32 %v2778, 16
        %v3035 = vshrl.u32 %v2779, 16
        %v3036 = vshrl.u32 %v2780, 16
        %v3037 = vshrl.u32 %v2781, 16
        %v3038 = vshrl.u32 %v2782, 16
        %v3039 = vshrl.u32 %v2783, 16
        %v3040 = vshrl.u32 %v2784, 16
        %v3041 = vshrl.u32 %v2785, 16
        %v3042 = vshrl.u32 %v2786, 16
        %v3043 = vshrl.u32 %v2787, 16
        %v3044 = vshrl.u32 %v2788, 16
        %v3045 = vshrl.u32 %v2789, 16
        %v3046 = vshrl.u32 %v2790, 16
        %v3047 = vshrl.u32 %v2791, 16
        %v3048 = vshrl.u32 %v2792, 16
        %v3049 = vshrl.u32 %v2793, 16
        %v3050 = vshrl.u32 %v2794, 16
        %v3051 = vshrl.u32 %v2795, 16
        %v3052 = vshrl.u32 %v2796, 16
        %v3053 = vshrl.u32 %v2797, 16
        %v3054 = vshrl.u32 %v2798, 16
        %v3055 = vshrl.u32 %v2799, 16
        %v3056 = vshrl.u32 %v2800, 16
        %v3057 = vshrl.u32 %v2801, 16
        %v3058 = vshrl.u32 %v2802, 16
        %v3059 = vshrl.u32 %v2803, 16
        %v3060 = vshrl.u32 %v2804, 16
        %v3061 = vshrl.u32 %v2805, 16
        %v3062 = vshrl.u32 %v2806, 16
        %v3063 = vshrl.u32 %v2807, 16
        %v3064 = vshrl.u32 %v2808, 16
        %v3065 = vshrl.u32 %v2809, 16
        %v3066 = vshrl.u32 %v2810, 16
        %v3067 = vshrl.u32 %v2811, 16
        %v3068 = vshrl.u32 %v2812, 16
        %v3069 = vshrl.u32 %v2813, 16
        %v3070 = vshrl.u32 %v2814, 16
        %v3071 = vshrl.u32 %v2815, 16
        %v3072 = vshrl.u32 %v2816, 16
        %v3073 = vshrl.u32 %v2817, 16
        %v3074 = vshrl.u32 %v2818, 16
        %v3075 = vshrl.u32 %v2819, 16
        %v3076 = vshrl.u32 %v2820, 16
        %v3077 = vshrl.u32 %v2821, 16
        %v3078 = vshrl.u32 %v2822, 16
        %v3079 = vshrl.u32 %v2823, 16
        %v3080 = vshrl.u32 %v2824, 16
        %v3081 = vshrl.u32 %v2825, 16
        %v3082 = vshrl.u32 %v2826, 16
        %v3083 = vshrl.u32 %v2827, 16
        %v3084 = vshrl.u32 %v2828, 16
        %v3085 = vshrl.u32 %v2829, 16
        %v3086 = vshrl.u32 %v2830, 16
        %v3087 = vshrl.u32 %v2831, 16
        %v3088 = vshrl.u32 %v2832, 16
        %v3089 = vshrl.u32 %v2833, 16
        %v3090 = vshrl.u32 %v2834, 16
        %v3091 = vshrl.u32 %v2835, 16
        %v3092 = vshrl.u32 %v2836, 16
        %v3093 = vshrl.u32 %v2837, 16
        %v3094 = vshrl.u32 %v2838, 16
        %v3095 = vxor.u32 %v2583, %v2839
        %v3096 = vxor.u32 %v2584, %v2840
        %v3097 = vxor.u32 %v2585, %v2841
        %v3098 = vxor.u32 %v2586, %v2842
        %v3099 = vxor.u32 %v2587, %v2843
        %v3100 = vxor.u32 %v2588, %v2844
        %v3101 = vxor.u32 %v2589, %v2845
        %v3102 = vxor.u32 %v2590, %v2846
        %v3103 = vxor.u32 %v2591, %v2847
        %v3104 = vxor.u32 %v2592, %v2848
        %v3105 = vxor.u32 %v2593, %v2849
        %v3106 = vxor.u32 %v2594, %v2850
        %v3107 = vxor.u32 %v2595, %v2851
        %v3108 = vxor.u32 %v2596, %v2852
        %v3109 = vxor.u32 %v2597, %v2853
        %v3110 = vxor.u32 %v2598, %v2854
        %v3111 = vxor.u32 %v2599, %v2855
        %v3112 = vxor.u32 %v2600, %v2856
        %v3113 = vxor.u32 %v2601, %v2857
        %v3114 = vxor.u32 %v2602, %v2858
        %v3115 = vxor.u32 %v2603, %v2859
        %v3116 = vxor.u32 %v2604, %v2860
        %v3117 = vxor.u32 %v2605, %v2861
        %v3118 = vxor.u32 %v2606, %v2862
        %v3119 = vxor.u32 %v2607, %v2863
        %v3120 = vxor.u32 %v2608, %v2864
        %v3121 = vxor.u32 %v2609, %v2865
        %v3122 = vxor.u32 %v2610, %v2866
        %v3123 = vxor.u32 %v2611, %v2867
        %v3124 = vxor.u32 %v2612, %v2868
        %v3125 = vxor.u32 %v2613, %v2869
        %v3126 = vxor.u32 %v2614, %v2870
        %v3127 = vxor.u32 %v2615, %v2871
        %v3128 = vxor.u32 %v2616, %v2872
        %v3129 = vxor.u32 %v2617, %v2873
        %v3130 = vxor.u32 %v2618, %v2874
        %v3131 = vxor.u32 %v2619, %v2875
        %v3132 = vxor.u32 %v2620, %v2876
        %v3133 = vxor.u32 %v2621, %v2877
        %v3134 = vxor.u32 %v2622, %v2878
        %v3135 = vxor.u32 %v2623, %v2879
        %v3136 = vxor.u32 %v2624, %v2880
        %v3137 = vxor.u32 %v2625, %v2881
        %v3138 = vxor.u32 %v2626, %v2882
        %v3139 = vxor.u32 %v2627, %v2883
        %v3140 = vxor.u32 %v2628, %v2884
        %v3141 = vxor.u32 %v2629, %v2885
        %v3142 = vxor.u32 %v2630, %v2886
        %v3143 = vxor.u32 %v2631, %v2887
        %v3144 = vxor.u32 %v2632, %v2888
        %v3145 = vxor.u32 %v2633, %v2889
        %v3146 = vxor.u32 %v2634, %v2890
        %v3147 = vxor.u32 %v2635, %v2891
        %v3148 = vxor.u32 %v2636, %v2892
        %v3149 = vxor.u32 %v2637, %v2893
        %v3150 = vxor.u32 %v2638, %v2894
        %v3151 = vxor.u32 %v2639, %v2895
        %v3152 = vxor.u32 %v2640, %v2896
        %v3153 = vxor.u32 %v2641, %v2897
        %v3154 = vxor.u32 %v2642, %v2898
        %v3155 = vxor.u32 %v2643, %v2899
        %v3156 = vxor.u32 %v2644, %v2900
        %v3157 = vxor.u32 %v2645, %v2901
        %v3158 = vxor.u32 %v2646, %v2902
        %v3159 = vxor.u32 %v2647, %v2903
        %v3160 = vxor.u32 %v2648, %v2904
        %v3161 = vxor.u32 %v2649, %v2905
        %v3162 = vxor.u32 %v2650, %v2906
        %v3163 = vxor.u32 %v2651, %v2907
        %v3164 = vxor.u32 %v2652, %v2908
        %v3165 = vxor.u32 %v2653, %v2909
        %v3166 = vxor.u32 %v2654, %v2910
        %v3167 = vxor.u32 %v2655, %v2911
        %v3168 = vxor.u32 %v2656, %v2912
        %v3169 = vxor.u32 %v2657, %v2913
        %v3170 = vxor.u32 %v2658, %v2914
        %v3171 = vxor.u32 %v2659, %v2915
        %v3172 = vxor.u32 %v2660, %v2916
        %v3173 = vxor.u32 %v2661, %v2917
        %v3174 = vxor.u32 %v2662, %v2918
        %v3175 = vxor.u32 %v2663, %v2919
        %v3176 = vxor.u32 %v2664, %v2920
        %v3177 = vxor.u32 %v2665, %v2921
        %v3178 = vxor.u32 %v2666, %v2922
        %v3179 = vxor.u32 %v2667, %v2923
        %v3180 = vxor.u32 %v2668, %v2924
        %v3181 = vxor.u32 %v2669, %v2925
        %v3182 = vxor.u32 %v2670, %v2926
        %v3183 = vxor.u32 %v2671, %v2927
        %v3184 = vxor.u32 %v2672, %v2928
        %v3185 = vxor.u32 %v2673, %v2929
        %v3186 = vxor.u32 %v2674, %v2930
        %v3187 = vxor.u32 %v2675, %v2931
        %v3188 = vxor.u32 %v2676, %v2932
        %v3189 = vxor.u32 %v2677, %v2933
        %v3190 = vxor.u32 %v2678, %v2934
        %v3191 = vxor.u32 %v2679, %v2935
        %v3192 = vxor.u32 %v2680, %v2936
        %v3193 = vxor.u32 %v2681, %v2937
        %v3194 = vxor.u32 %v2682, %v2938
        %v3195 = vxor.u32 %v2683, %v2939
        %v3196 = vxor.u32 %v2684, %v2940
        %v3197 = vxor.u32 %v2685, %v2941
        %v3198 = vxor.u32 %v2686, %v2942
        %v3199 = vxor.u32 %v2687, %v2943
        %v3200 = vxor.u32 %v2688, %v2944
        %v3201 = vxor.u32 %v2689, %v2945
        %v3202 = vxor.u32 %v2690, %v2946
        %v3203 = vxor.u32 %v2691, %v2947
        %v3204 = vxor.u32 %v2692, %v2948
        %v3205 = vxor.u32 %v2693, %v2949
        %v3206 = vxor.u32 %v2694, %v2950
        %v3207 = vxor.u32 %v2695, %v2951
        %v3208 = vxor.u32 %v2696, %v2952
        %v3209 = vxor.u32 %v2697, %v2953
        %v3210 = vxor.u32 %v2698, %v2954
        %v3211 = vxor.u32 %v2699, %v2955
        %v3212 = vxor.u32 %v2700, %v2956
        %v3213 = vxor.u32 %v2701, %v2957
        %v3214 = vxor.u32 %v2702, %v2958
        %v3215 = vxor.u32 %v2703, %v2959
        %v3216 = vxor.u32 %v2704, %v2960
        %v3217 = vxor.u32 %v2705, %v2961
        %v3218 = vxor.u32 %v2706, %v2962
        %v3219 = vxor.u32 %v2707, %v2963
        %v3220 = vxor.u32 %v2708, %v2964
        %v3221 = vxor.u32 %v2709, %v2965
        %v3222 = vxor.u32 %v2710, %v2966
        %v3223 = vxor.u32 %v2711, %v2967
        %v3224 = vxor.u32 %v2712, %v2968
        %v3225 = vxor.u32 %v2713, %v2969
        %v3226 = vxor.u32 %v2714, %v2970
        %v3227 = vxor.u32 %v2715, %v2971
        %v3228 = vxor.u32 %v2716, %v2972
        %v3229 = vxor.u32 %v2717, %v2973
        %v3230 = vxor.u32 %v2718, %v2974
        %v3231 = vxor.u32 %v2719, %v2975
        %v3232 = vxor.u32 %v2720, %v2976
        %v3233 = vxor.u32 %v2721, %v2977
        %v3234 = vxor.u32 %v2722, %v2978
        %v3235 = vxor.u32 %v2723, %v2979
        %v3236 = vxor.u32 %v2724, %v2980
        %v3237 = vxor.u32 %v2725, %v2981
        %v3238 = vxor.u32 %v2726, %v2982
        %v3239 = vxor.u32 %v2727, %v2983
        %v3240 = vxor.u32 %v2728, %v2984
        %v3241 = vxor.u32 %v2729, %v2985
        %v3242 = vxor.u32 %v2730, %v2986
        %v3243 = vxor.u32 %v2731, %v2987
        %v3244 = vxor.u32 %v2732, %v2988
        %v3245 = vxor.u32 %v2733, %v2989
        %v3246 = vxor.u32 %v2734, %v2990
        %v3247 = vxor.u32 %v2735, %v2991
        %v3248 = vxor.u32 %v2736, %v2992
        %v3249 = vxor.u32 %v2737, %v2993
        %v3250 = vxor.u32 %v2738, %v2994
        %v3251 = vxor.u32 %v2739, %v2995
        %v3252 = vxor.u32 %v2740, %v2996
        %v3253 = vxor.u32 %v2741, %v2997
        %v3254 = vxor.u32 %v2742, %v2998
        %v3255 = vxor.u32 %v2743, %v2999
        %v3256 = vxor.u32 %v2744, %v3000
        %v3257 = vxor.u32 %v2745, %v3001
        %v3258 = vxor.u32 %v2746, %v3002
        %v3259 = vxor.u32 %v2747, %v3003
        %v3260 = vxor.u32 %v2748, %v3004
        %v3261 = vxor.u32 %v2749, %v3005
        %v3262 = vxor.u32 %v2750, %v3006
        %v3263 = vxor.u32 %v2751, %v3007
        %v3264 = vxor.u32 %v2752, %v3008
        %v3265 = vxor.u32 %v2753, %v3009
        %v3266 = vxor.u32 %v2754, %v3010
        %v3267 = vxor.u32 %v2755, %v3011
        %v3268 = vxor.u32 %v2756, %v3012
        %v3269 = vxor.u32 %v2757, %v3013
        %v3270 = vxor.u32 %v2758, %v3014
        %v3271 = vxor.u32 %v2759, %v3015
        %v3272 = vxor.u32 %v2760, %v3016
        %v3273 = vxor.u32 %v2761, %v3017
        %v3274 = vxor.u32 %v2762, %v3018
        %v3275 = vxor.u32 %v2763, %v3019
        %v3276 = vxor.u32 %v2764, %v3020
        %v3277 = vxor.u32 %v2765, %v3021
        %v3278 = vxor.u32 %v2766, %v3022
        %v3279 = vxor.u32 %v2767, %v3023
        %v3280 = vxor.u32 %v2768, %v3024
        %v3281 = vxor.u32 %v2769, %v3025
        %v3282 = vxor.u32 %v2770, %v3026
        %v3283 = vxor.u32 %v2771, %v3027
        %v3284 = vxor.u32 %v2772, %v3028
        %v3285 = vxor.u32 %v2773, %v3029
        %v3286 = vxor.u32 %v2774, %v3030
        %v3287 = vxor.u32 %v2775, %v3031
        %v3288 = vxor.u32 %v2776, %v3032
        %v3289 = vxor.u32 %v2777, %v3033
        %v3290 = vxor.u32 %v2778, %v3034
        %v3291 = vxor.u32 %v2779, %v3035
        %v3292 = vxor.u32 %v2780, %v3036
        %v3293 = vxor.u32 %v2781, %v3037
        %v3294 = vxor.u32 %v2782, %v3038
        %v3295 = vxor.u32 %v2783, %v3039
        %v3296 = vxor.u32 %v2784, %v3040
        %v3297 = vxor.u32 %v2785, %v3041
        %v3298 = vxor.u32 %v2786, %v3042
        %v3299 = vxor.u32 %v2787, %v3043
        %v3300 = vxor.u32 %v2788, %v3044
        %v3301 = vxor.u32 %v2789, %v3045
        %v3302 = vxor.u32 %v2790, %v3046
        %v3303 = vxor.u32 %v2791, %v3047
        %v3304 = vxor.u32 %v2792, %v3048
        %v3305 = vxor.u32 %v2793, %v3049
        %v3306 = vxor.u32 %v2794, %v3050
        %v3307 = vxor.u32 %v2795, %v3051
        %v3308 = vxor.u32 %v2796, %v3052
        %v3309 = vxor.u32 %v2797, %v3053
        %v3310 = vxor.u32 %v2798, %v3054
        %v3311 = vxor.u32 %v2799, %v3055
        %v3312 = vxor.u32 %v2800, %v3056
        %v3313 = vxor.u32 %v2801, %v3057
        %v3314 = vxor.u32 %v2802, %v3058
        %v3315 = vxor.u32 %v2803, %v3059
        %v3316 = vxor.u32 %v2804, %v3060
        %v3317 = vxor.u32 %v2805, %v3061
        %v3318 = vxor.u32 %v2806, %v3062
        %v3319 = vxor.u32 %v2807, %v3063
        %v3320 = vxor.u32 %v2808, %v3064
        %v3321 = vxor.u32 %v2809, %v3065
        %v3322 = vxor.u32 %v2810, %v3066
        %v3323 = vxor.u32 %v2811, %v3067
        %v3324 = vxor.u32 %v2812, %v3068
        %v3325 = vxor.u32 %v2813, %v3069
        %v3326 = vxor.u32 %v2814, %v3070
        %v3327 = vxor.u32 %v2815, %v3071
        %v3328 = vxor.u32 %v2816, %v3072
        %v3329 = vxor.u32 %v2817, %v3073
        %v3330 = vxor.u32 %v2818, %v3074
        %v3331 = vxor.u32 %v2819, %v3075
        %v3332 = vxor.u32 %v2820, %v3076
        %v3333 = vxor.u32 %v2821, %v3077
        %v3334 = vxor.u32 %v2822, %v3078
        %v3335 = vxor.u32 %v2823, %v3079
        %v3336 = vxor.u32 %v2824, %v3080
        %v3337 = vxor.u32 %v2825, %v3081
        %v3338 = vxor.u32 %v2826, %v3082
        %v3339 = vxor.u32 %v2827, %v3083
        %v3340 = vxor.u32 %v2828, %v3084
        %v3341 = vxor.u32 %v2829, %v3085
        %v3342 = vxor.u32 %v2830, %v3086
        %v3343 = vxor.u32 %v2831, %v3087
        %v3344 = vxor.u32 %v2832, %v3088
        %v3345 = vxor.u32 %v2833, %v3089
        %v3346 = vxor.u32 %v2834, %v3090
        %v3347 = vxor.u32 %v2835, %v3091
        %v3348 = vxor.u32 %v2836, %v3092
        %v3349 = vxor.u32 %v2837, %v3093
        %v3350 = vxor.u32 %v2838, %v3094
        %v3351 = vand.u32 %v3095, 3
        %v3352 = vand.u32 %v3096, 3
        %v3353 = vand.u32 %v3097, 3
        %v3354 = vand.u32 %v3098, 3
        %v3355 = vand.u32 %v3099, 3
        %v3356 = vand.u32 %v3100, 3
        %v3357 = vand.u32 %v3101, 3
        %v3358 = vand.u32 %v3102, 3
        %v3359 = vand.u32 %v3103, 3
        %v3360 = vand.u32 %v3104, 3
        %v3361 = vand.u32 %v3105, 3
        %v3362 = vand.u32 %v3106, 3
        %v3363 = vand.u32 %v3107, 3
        %v3364 = vand.u32 %v3108, 3
        %v3365 = vand.u32 %v3109, 3
        %v3366 = vand.u32 %v3110, 3
        %v3367 = vand.u32 %v3111, 3
        %v3368 = vand.u32 %v3112, 3
        %v3369 = vand.u32 %v3113, 3
        %v3370 = vand.u32 %v3114, 3
        %v3371 = vand.u32 %v3115, 3
        %v3372 = vand.u32 %v3116, 3
        %v3373 = vand.u32 %v3117, 3
        %v3374 = vand.u32 %v3118, 3
        %v3375 = vand.u32 %v3119, 3
        %v3376 = vand.u32 %v3120, 3
        %v3377 = vand.u32 %v3121, 3
        %v3378 = vand.u32 %v3122, 3
        %v3379 = vand.u32 %v3123, 3
        %v3380 = vand.u32 %v3124, 3
        %v3381 = vand.u32 %v3125, 3
        %v3382 = vand.u32 %v3126, 3
        %v3383 = vand.u32 %v3127, 3
        %v3384 = vand.u32 %v3128, 3
        %v3385 = vand.u32 %v3129, 3
        %v3386 = vand.u32 %v3130, 3
        %v3387 = vand.u32 %v3131, 3
        %v3388 = vand.u32 %v3132, 3
        %v3389 = vand.u32 %v3133, 3
        %v3390 = vand.u32 %v3134, 3
        %v3391 = vand.u32 %v3135, 3
        %v3392 = vand.u32 %v3136, 3
        %v3393 = vand.u32 %v3137, 3
        %v3394 = vand.u32 %v3138, 3
        %v3395 = vand.u32 %v3139, 3
        %v3396 = vand.u32 %v3140, 3
        %v3397 = vand.u32 %v3141, 3
        %v3398 = vand.u32 %v3142, 3
        %v3399 = vand.u32 %v3143, 3
        %v3400 = vand.u32 %v3144, 3
        %v3401 = vand.u32 %v3145, 3
        %v3402 = vand.u32 %v3146, 3
        %v3403 = vand.u32 %v3147, 3
        %v3404 = vand.u32 %v3148, 3
        %v3405 = vand.u32 %v3149, 3
        %v3406 = vand.u32 %v3150, 3
        %v3407 = vand.u32 %v3151, 3
        %v3408 = vand.u32 %v3152, 3
        %v3409 = vand.u32 %v3153, 3
        %v3410 = vand.u32 %v3154, 3
        %v3411 = vand.u32 %v3155, 3
        %v3412 = vand.u32 %v3156, 3
        %v3413 = vand.u32 %v3157, 3
        %v3414 = vand.u32 %v3158, 3
        %v3415 = vand.u32 %v3159, 3
        %v3416 = vand.u32 %v3160, 3
        %v3417 = vand.u32 %v3161, 3
        %v3418 = vand.u32 %v3162, 3
        %v3419 = vand.u32 %v3163, 3
        %v3420 = vand.u32 %v3164, 3
        %v3421 = vand.u32 %v3165, 3
        %v3422 = vand.u32 %v3166, 3
        %v3423 = vand.u32 %v3167, 3
        %v3424 = vand.u32 %v3168, 3
        %v3425 = vand.u32 %v3169, 3
        %v3426 = vand.u32 %v3170, 3
        %v3427 = vand.u32 %v3171, 3
        %v3428 = vand.u32 %v3172, 3
        %v3429 = vand.u32 %v3173, 3
        %v3430 = vand.u32 %v3174, 3
        %v3431 = vand.u32 %v3175, 3
        %v3432 = vand.u32 %v3176, 3
        %v3433 = vand.u32 %v3177, 3
        %v3434 = vand.u32 %v3178, 3
        %v3435 = vand.u32 %v3179, 3
        %v3436 = vand.u32 %v3180, 3
        %v3437 = vand.u32 %v3181, 3
        %v3438 = vand.u32 %v3182, 3
        %v3439 = vand.u32 %v3183, 3
        %v3440 = vand.u32 %v3184, 3
        %v3441 = vand.u32 %v3185, 3
        %v3442 = vand.u32 %v3186, 3
        %v3443 = vand.u32 %v3187, 3
        %v3444 = vand.u32 %v3188, 3
        %v3445 = vand.u32 %v3189, 3
        %v3446 = vand.u32 %v3190, 3
        %v3447 = vand.u32 %v3191, 3
        %v3448 = vand.u32 %v3192, 3
        %v3449 = vand.u32 %v3193, 3
        %v3450 = vand.u32 %v3194, 3
        %v3451 = vand.u32 %v3195, 3
        %v3452 = vand.u32 %v3196, 3
        %v3453 = vand.u32 %v3197, 3
        %v3454 = vand.u32 %v3198, 3
        %v3455 = vand.u32 %v3199, 3
        %v3456 = vand.u32 %v3200, 3
        %v3457 = vand.u32 %v3201, 3
        %v3458 = vand.u32 %v3202, 3
        %v3459 = vand.u32 %v3203, 3
        %v3460 = vand.u32 %v3204, 3
        %v3461 = vand.u32 %v3205, 3
        %v3462 = vand.u32 %v3206, 3
        %v3463 = vand.u32 %v3207, 3
        %v3464 = vand.u32 %v3208, 3
        %v3465 = vand.u32 %v3209, 3
        %v3466 = vand.u32 %v3210, 3
        %v3467 = vand.u32 %v3211, 3
        %v3468 = vand.u32 %v3212, 3
        %v3469 = vand.u32 %v3213, 3
        %v3470 = vand.u32 %v3214, 3
        %v3471 = vand.u32 %v3215, 3
        %v3472 = vand.u32 %v3216, 3
        %v3473 = vand.u32 %v3217, 3
        %v3474 = vand.u32 %v3218, 3
        %v3475 = vand.u32 %v3219, 3
        %v3476 = vand.u32 %v3220, 3
        %v3477 = vand.u32 %v3221, 3
        %v3478 = vand.u32 %v3222, 3
        %v3479 = vand.u32 %v3223, 3
        %v3480 = vand.u32 %v3224, 3
        %v3481 = vand.u32 %v3225, 3
        %v3482 = vand.u32 %v3226, 3
        %v3483 = vand.u32 %v3227, 3
        %v3484 = vand.u32 %v3228, 3
        %v3485 = vand.u32 %v3229, 3
        %v3486 = vand.u32 %v3230, 3
        %v3487 = vand.u32 %v3231, 3
        %v3488 = vand.u32 %v3232, 3
        %v3489 = vand.u32 %v3233, 3
        %v3490 = vand.u32 %v3234, 3
        %v3491 = vand.u32 %v3235, 3
        %v3492 = vand.u32 %v3236, 3
        %v3493 = vand.u32 %v3237, 3
        %v3494 = vand.u32 %v3238, 3
        %v3495 = vand.u32 %v3239, 3
        %v3496 = vand.u32 %v3240, 3
        %v3497 = vand.u32 %v3241, 3
        %v3498 = vand.u32 %v3242, 3
        %v3499 = vand.u32 %v3243, 3
        %v3500 = vand.u32 %v3244, 3
        %v3501 = vand.u32 %v3245, 3
        %v3502 = vand.u32 %v3246, 3
        %v3503 = vand.u32 %v3247, 3
        %v3504 = vand.u32 %v3248, 3
        %v3505 = vand.u32 %v3249, 3
        %v3506 = vand.u32 %v3250, 3
        %v3507 = vand.u32 %v3251, 3
        %v3508 = vand.u32 %v3252, 3
        %v3509 = vand.u32 %v3253, 3
        %v3510 = vand.u32 %v3254, 3
        %v3511 = vand.u32 %v3255, 3
        %v3512 = vand.u32 %v3256, 3
        %v3513 = vand.u32 %v3257, 3
        %v3514 = vand.u32 %v3258, 3
        %v3515 = vand.u32 %v3259, 3
        %v3516 = vand.u32 %v3260, 3
        %v3517 = vand.u32 %v3261, 3
        %v3518 = vand.u32 %v3262, 3
        %v3519 = vand.u32 %v3263, 3
        %v3520 = vand.u32 %v3264, 3
        %v3521 = vand.u32 %v3265, 3
        %v3522 = vand.u32 %v3266, 3
        %v3523 = vand.u32 %v3267, 3
        %v3524 = vand.u32 %v3268, 3
        %v3525 = vand.u32 %v3269, 3
        %v3526 = vand.u32 %v3270, 3
        %v3527 = vand.u32 %v3271, 3
        %v3528 = vand.u32 %v3272, 3
        %v3529 = vand.u32 %v3273, 3
        %v3530 = vand.u32 %v3274, 3
        %v3531 = vand.u32 %v3275, 3
        %v3532 = vand.u32 %v3276, 3
        %v3533 = vand.u32 %v3277, 3
        %v3534 = vand.u32 %v3278, 3
        %v3535 = vand.u32 %v3279, 3
        %v3536 = vand.u32 %v3280, 3
        %v3537 = vand.u32 %v3281, 3
        %v3538 = vand.u32 %v3282, 3
        %v3539 = vand.u32 %v3283, 3
        %v3540 = vand.u32 %v3284, 3
        %v3541 = vand.u32 %v3285, 3
        %v3542 = vand.u32 %v3286, 3
        %v3543 = vand.u32 %v3287, 3
        %v3544 = vand.u32 %v3288, 3
        %v3545 = vand.u32 %v3289, 3
        %v3546 = vand.u32 %v3290, 3
        %v3547 = vand.u32 %v3291, 3
        %v3548 = vand.u32 %v3292, 3
        %v3549 = vand.u32 %v3293, 3
        %v3550 = vand.u32 %v3294, 3
        %v3551 = vand.u32 %v3295, 3
        %v3552 = vand.u32 %v3296, 3
        %v3553 = vand.u32 %v3297, 3
        %v3554 = vand.u32 %v3298, 3
        %v3555 = vand.u32 %v3299, 3
        %v3556 = vand.u32 %v3300, 3
        %v3557 = vand.u32 %v3301, 3
        %v3558 = vand.u32 %v3302, 3
        %v3559 = vand.u32 %v3303, 3
        %v3560 = vand.u32 %v3304, 3
        %v3561 = vand.u32 %v3305, 3
        %v3562 = vand.u32 %v3306, 3
        %v3563 = vand.u32 %v3307, 3
        %v3564 = vand.u32 %v3308, 3
        %v3565 = vand.u32 %v3309, 3
        %v3566 = vand.u32 %v3310, 3
        %v3567 = vand.u32 %v3311, 3
        %v3568 = vand.u32 %v3312, 3
        %v3569 = vand.u32 %v3313, 3
        %v3570 = vand.u32 %v3314, 3
        %v3571 = vand.u32 %v3315, 3
        %v3572 = vand.u32 %v3316, 3
        %v3573 = vand.u32 %v3317, 3
        %v3574 = vand.u32 %v3318, 3
        %v3575 = vand.u32 %v3319, 3
        %v3576 = vand.u32 %v3320, 3
        %v3577 = vand.u32 %v3321, 3
        %v3578 = vand.u32 %v3322, 3
        %v3579 = vand.u32 %v3323, 3
        %v3580 = vand.u32 %v3324, 3
        %v3581 = vand.u32 %v3325, 3
        %v3582 = vand.u32 %v3326, 3
        %v3583 = vand.u32 %v3327, 3
        %v3584 = vand.u32 %v3328, 3
        %v3585 = vand.u32 %v3329, 3
        %v3586 = vand.u32 %v3330, 3
        %v3587 = vand.u32 %v3331, 3
        %v3588 = vand.u32 %v3332, 3
        %v3589 = vand.u32 %v3333, 3
        %v3590 = vand.u32 %v3334, 3
        %v3591 = vand.u32 %v3335, 3
        %v3592 = vand.u32 %v3336, 3
        %v3593 = vand.u32 %v3337, 3
        %v3594 = vand.u32 %v3338, 3
        %v3595 = vand.u32 %v3339, 3
        %v3596 = vand.u32 %v3340, 3
        %v3597 = vand.u32 %v3341, 3
        %v3598 = vand.u32 %v3342, 3
        %v3599 = vand.u32 %v3343, 3
        %v3600 = vand.u32 %v3344, 3
        %v3601 = vand.u32 %v3345, 3
        %v3602 = vand.u32 %v3346, 3
        %v3603 = vand.u32 %v3347, 3
        %v3604 = vand.u32 %v3348, 3
        %v3605 = vand.u32 %v3349, 3
        %v3606 = vand.u32 %v3350, 3
        %vm3607 = vcmp.eq.s32.totalorder %v3351, 3
        %vm3608 = vcmp.eq.s32.totalorder %v3352, 3
        %vm3609 = vcmp.eq.s32.totalorder %v3353, 3
        %vm3610 = vcmp.eq.s32.totalorder %v3354, 3
        %vm3611 = vcmp.eq.s32.totalorder %v3355, 3
        %vm3612 = vcmp.eq.s32.totalorder %v3356, 3
        %vm3613 = vcmp.eq.s32.totalorder %v3357, 3
        %vm3614 = vcmp.eq.s32.totalorder %v3358, 3
        %vm3615 = vcmp.eq.s32.totalorder %v3359, 3
        %vm3616 = vcmp.eq.s32.totalorder %v3360, 3
        %vm3617 = vcmp.eq.s32.totalorder %v3361, 3
        %vm3618 = vcmp.eq.s32.totalorder %v3362, 3
        %vm3619 = vcmp.eq.s32.totalorder %v3363, 3
        %vm3620 = vcmp.eq.s32.totalorder %v3364, 3
        %vm3621 = vcmp.eq.s32.totalorder %v3365, 3
        %vm3622 = vcmp.eq.s32.totalorder %v3366, 3
        %vm3623 = vcmp.eq.s32.totalorder %v3367, 3
        %vm3624 = vcmp.eq.s32.totalorder %v3368, 3
        %vm3625 = vcmp.eq.s32.totalorder %v3369, 3
        %vm3626 = vcmp.eq.s32.totalorder %v3370, 3
        %vm3627 = vcmp.eq.s32.totalorder %v3371, 3
        %vm3628 = vcmp.eq.s32.totalorder %v3372, 3
        %vm3629 = vcmp.eq.s32.totalorder %v3373, 3
        %vm3630 = vcmp.eq.s32.totalorder %v3374, 3
        %vm3631 = vcmp.eq.s32.totalorder %v3375, 3
        %vm3632 = vcmp.eq.s32.totalorder %v3376, 3
        %vm3633 = vcmp.eq.s32.totalorder %v3377, 3
        %vm3634 = vcmp.eq.s32.totalorder %v3378, 3
        %vm3635 = vcmp.eq.s32.totalorder %v3379, 3
        %vm3636 = vcmp.eq.s32.totalorder %v3380, 3
        %vm3637 = vcmp.eq.s32.totalorder %v3381, 3
        %vm3638 = vcmp.eq.s32.totalorder %v3382, 3
        %vm3639 = vcmp.eq.s32.totalorder %v3383, 3
        %vm3640 = vcmp.eq.s32.totalorder %v3384, 3
        %vm3641 = vcmp.eq.s32.totalorder %v3385, 3
        %vm3642 = vcmp.eq.s32.totalorder %v3386, 3
        %vm3643 = vcmp.eq.s32.totalorder %v3387, 3
        %vm3644 = vcmp.eq.s32.totalorder %v3388, 3
        %vm3645 = vcmp.eq.s32.totalorder %v3389, 3
        %vm3646 = vcmp.eq.s32.totalorder %v3390, 3
        %vm3647 = vcmp.eq.s32.totalorder %v3391, 3
        %vm3648 = vcmp.eq.s32.totalorder %v3392, 3
        %vm3649 = vcmp.eq.s32.totalorder %v3393, 3
        %vm3650 = vcmp.eq.s32.totalorder %v3394, 3
        %vm3651 = vcmp.eq.s32.totalorder %v3395, 3
        %vm3652 = vcmp.eq.s32.totalorder %v3396, 3
        %vm3653 = vcmp.eq.s32.totalorder %v3397, 3
        %vm3654 = vcmp.eq.s32.totalorder %v3398, 3
        %vm3655 = vcmp.eq.s32.totalorder %v3399, 3
        %vm3656 = vcmp.eq.s32.totalorder %v3400, 3
        %vm3657 = vcmp.eq.s32.totalorder %v3401, 3
        %vm3658 = vcmp.eq.s32.totalorder %v3402, 3
        %vm3659 = vcmp.eq.s32.totalorder %v3403, 3
        %vm3660 = vcmp.eq.s32.totalorder %v3404, 3
        %vm3661 = vcmp.eq.s32.totalorder %v3405, 3
        %vm3662 = vcmp.eq.s32.totalorder %v3406, 3
        %vm3663 = vcmp.eq.s32.totalorder %v3407, 3
        %vm3664 = vcmp.eq.s32.totalorder %v3408, 3
        %vm3665 = vcmp.eq.s32.totalorder %v3409, 3
        %vm3666 = vcmp.eq.s32.totalorder %v3410, 3
        %vm3667 = vcmp.eq.s32.totalorder %v3411, 3
        %vm3668 = vcmp.eq.s32.totalorder %v3412, 3
        %vm3669 = vcmp.eq.s32.totalorder %v3413, 3
        %vm3670 = vcmp.eq.s32.totalorder %v3414, 3
        %vm3671 = vcmp.eq.s32.totalorder %v3415, 3
        %vm3672 = vcmp.eq.s32.totalorder %v3416, 3
        %vm3673 = vcmp.eq.s32.totalorder %v3417, 3
        %vm3674 = vcmp.eq.s32.totalorder %v3418, 3
        %vm3675 = vcmp.eq.s32.totalorder %v3419, 3
        %vm3676 = vcmp.eq.s32.totalorder %v3420, 3
        %vm3677 = vcmp.eq.s32.totalorder %v3421, 3
        %vm3678 = vcmp.eq.s32.totalorder %v3422, 3
        %vm3679 = vcmp.eq.s32.totalorder %v3423, 3
        %vm3680 = vcmp.eq.s32.totalorder %v3424, 3
        %vm3681 = vcmp.eq.s32.totalorder %v3425, 3
        %vm3682 = vcmp.eq.s32.totalorder %v3426, 3
        %vm3683 = vcmp.eq.s32.totalorder %v3427, 3
        %vm3684 = vcmp.eq.s32.totalorder %v3428, 3
        %vm3685 = vcmp.eq.s32.totalorder %v3429, 3
        %vm3686 = vcmp.eq.s32.totalorder %v3430, 3
        %vm3687 = vcmp.eq.s32.totalorder %v3431, 3
        %vm3688 = vcmp.eq.s32.totalorder %v3432, 3
        %vm3689 = vcmp.eq.s32.totalorder %v3433, 3
        %vm3690 = vcmp.eq.s32.totalorder %v3434, 3
        %vm3691 = vcmp.eq.s32.totalorder %v3435, 3
        %vm3692 = vcmp.eq.s32.totalorder %v3436, 3
        %vm3693 = vcmp.eq.s32.totalorder %v3437, 3
        %vm3694 = vcmp.eq.s32.totalorder %v3438, 3
        %vm3695 = vcmp.eq.s32.totalorder %v3439, 3
        %vm3696 = vcmp.eq.s32.totalorder %v3440, 3
        %vm3697 = vcmp.eq.s32.totalorder %v3441, 3
        %vm3698 = vcmp.eq.s32.totalorder %v3442, 3
        %vm3699 = vcmp.eq.s32.totalorder %v3443, 3
        %vm3700 = vcmp.eq.s32.totalorder %v3444, 3
        %vm3701 = vcmp.eq.s32.totalorder %v3445, 3
        %vm3702 = vcmp.eq.s32.totalorder %v3446, 3
        %vm3703 = vcmp.eq.s32.totalorder %v3447, 3
        %vm3704 = vcmp.eq.s32.totalorder %v3448, 3
        %vm3705 = vcmp.eq.s32.totalorder %v3449, 3
        %vm3706 = vcmp.eq.s32.totalorder %v3450, 3
        %vm3707 = vcmp.eq.s32.totalorder %v3451, 3
        %vm3708 = vcmp.eq.s32.totalorder %v3452, 3
        %vm3709 = vcmp.eq.s32.totalorder %v3453, 3
        %vm3710 = vcmp.eq.s32.totalorder %v3454, 3
        %vm3711 = vcmp.eq.s32.totalorder %v3455, 3
        %vm3712 = vcmp.eq.s32.totalorder %v3456, 3
        %vm3713 = vcmp.eq.s32.totalorder %v3457, 3
        %vm3714 = vcmp.eq.s32.totalorder %v3458, 3
        %vm3715 = vcmp.eq.s32.totalorder %v3459, 3
        %vm3716 = vcmp.eq.s32.totalorder %v3460, 3
        %vm3717 = vcmp.eq.s32.totalorder %v3461, 3
        %vm3718 = vcmp.eq.s32.totalorder %v3462, 3
        %vm3719 = vcmp.eq.s32.totalorder %v3463, 3
        %vm3720 = vcmp.eq.s32.totalorder %v3464, 3
        %vm3721 = vcmp.eq.s32.totalorder %v3465, 3
        %vm3722 = vcmp.eq.s32.totalorder %v3466, 3
        %vm3723 = vcmp.eq.s32.totalorder %v3467, 3
        %vm3724 = vcmp.eq.s32.totalorder %v3468, 3
        %vm3725 = vcmp.eq.s32.totalorder %v3469, 3
        %vm3726 = vcmp.eq.s32.totalorder %v3470, 3
        %vm3727 = vcmp.eq.s32.totalorder %v3471, 3
        %vm3728 = vcmp.eq.s32.totalorder %v3472, 3
        %vm3729 = vcmp.eq.s32.totalorder %v3473, 3
        %vm3730 = vcmp.eq.s32.totalorder %v3474, 3
        %vm3731 = vcmp.eq.s32.totalorder %v3475, 3
        %vm3732 = vcmp.eq.s32.totalorder %v3476, 3
        %vm3733 = vcmp.eq.s32.totalorder %v3477, 3
        %vm3734 = vcmp.eq.s32.totalorder %v3478, 3
        %vm3735 = vcmp.eq.s32.totalorder %v3479, 3
        %vm3736 = vcmp.eq.s32.totalorder %v3480, 3
        %vm3737 = vcmp.eq.s32.totalorder %v3481, 3
        %vm3738 = vcmp.eq.s32.totalorder %v3482, 3
        %vm3739 = vcmp.eq.s32.totalorder %v3483, 3
        %vm3740 = vcmp.eq.s32.totalorder %v3484, 3
        %vm3741 = vcmp.eq.s32.totalorder %v3485, 3
        %vm3742 = vcmp.eq.s32.totalorder %v3486, 3
        %vm3743 = vcmp.eq.s32.totalorder %v3487, 3
        %vm3744 = vcmp.eq.s32.totalorder %v3488, 3
        %vm3745 = vcmp.eq.s32.totalorder %v3489, 3
        %vm3746 = vcmp.eq.s32.totalorder %v3490, 3
        %vm3747 = vcmp.eq.s32.totalorder %v3491, 3
        %vm3748 = vcmp.eq.s32.totalorder %v3492, 3
        %vm3749 = vcmp.eq.s32.totalorder %v3493, 3
        %vm3750 = vcmp.eq.s32.totalorder %v3494, 3
        %vm3751 = vcmp.eq.s32.totalorder %v3495, 3
        %vm3752 = vcmp.eq.s32.totalorder %v3496, 3
        %vm3753 = vcmp.eq.s32.totalorder %v3497, 3
        %vm3754 = vcmp.eq.s32.totalorder %v3498, 3
        %vm3755 = vcmp.eq.s32.totalorder %v3499, 3
        %vm3756 = vcmp.eq.s32.totalorder %v3500, 3
        %vm3757 = vcmp.eq.s32.totalorder %v3501, 3
        %vm3758 = vcmp.eq.s32.totalorder %v3502, 3
        %vm3759 = vcmp.eq.s32.totalorder %v3503, 3
        %vm3760 = vcmp.eq.s32.totalorder %v3504, 3
        %vm3761 = vcmp.eq.s32.totalorder %v3505, 3
        %vm3762 = vcmp.eq.s32.totalorder %v3506, 3
        %vm3763 = vcmp.eq.s32.totalorder %v3507, 3
        %vm3764 = vcmp.eq.s32.totalorder %v3508, 3
        %vm3765 = vcmp.eq.s32.totalorder %v3509, 3
        %vm3766 = vcmp.eq.s32.totalorder %v3510, 3
        %vm3767 = vcmp.eq.s32.totalorder %v3511, 3
        %vm3768 = vcmp.eq.s32.totalorder %v3512, 3
        %vm3769 = vcmp.eq.s32.totalorder %v3513, 3
        %vm3770 = vcmp.eq.s32.totalorder %v3514, 3
        %vm3771 = vcmp.eq.s32.totalorder %v3515, 3
        %vm3772 = vcmp.eq.s32.totalorder %v3516, 3
        %vm3773 = vcmp.eq.s32.totalorder %v3517, 3
        %vm3774 = vcmp.eq.s32.totalorder %v3518, 3
        %vm3775 = vcmp.eq.s32.totalorder %v3519, 3
        %vm3776 = vcmp.eq.s32.totalorder %v3520, 3
        %vm3777 = vcmp.eq.s32.totalorder %v3521, 3
        %vm3778 = vcmp.eq.s32.totalorder %v3522, 3
        %vm3779 = vcmp.eq.s32.totalorder %v3523, 3
        %vm3780 = vcmp.eq.s32.totalorder %v3524, 3
        %vm3781 = vcmp.eq.s32.totalorder %v3525, 3
        %vm3782 = vcmp.eq.s32.totalorder %v3526, 3
        %vm3783 = vcmp.eq.s32.totalorder %v3527, 3
        %vm3784 = vcmp.eq.s32.totalorder %v3528, 3
        %vm3785 = vcmp.eq.s32.totalorder %v3529, 3
        %vm3786 = vcmp.eq.s32.totalorder %v3530, 3
        %vm3787 = vcmp.eq.s32.totalorder %v3531, 3
        %vm3788 = vcmp.eq.s32.totalorder %v3532, 3
        %vm3789 = vcmp.eq.s32.totalorder %v3533, 3
        %vm3790 = vcmp.eq.s32.totalorder %v3534, 3
        %vm3791 = vcmp.eq.s32.totalorder %v3535, 3
        %vm3792 = vcmp.eq.s32.totalorder %v3536, 3
        %vm3793 = vcmp.eq.s32.totalorder %v3537, 3
        %vm3794 = vcmp.eq.s32.totalorder %v3538, 3
        %vm3795 = vcmp.eq.s32.totalorder %v3539, 3
        %vm3796 = vcmp.eq.s32.totalorder %v3540, 3
        %vm3797 = vcmp.eq.s32.totalorder %v3541, 3
        %vm3798 = vcmp.eq.s32.totalorder %v3542, 3
        %vm3799 = vcmp.eq.s32.totalorder %v3543, 3
        %vm3800 = vcmp.eq.s32.totalorder %v3544, 3
        %vm3801 = vcmp.eq.s32.totalorder %v3545, 3
        %vm3802 = vcmp.eq.s32.totalorder %v3546, 3
        %vm3803 = vcmp.eq.s32.totalorder %v3547, 3
        %vm3804 = vcmp.eq.s32.totalorder %v3548, 3
        %vm3805 = vcmp.eq.s32.totalorder %v3549, 3
        %vm3806 = vcmp.eq.s32.totalorder %v3550, 3
        %vm3807 = vcmp.eq.s32.totalorder %v3551, 3
        %vm3808 = vcmp.eq.s32.totalorder %v3552, 3
        %vm3809 = vcmp.eq.s32.totalorder %v3553, 3
        %vm3810 = vcmp.eq.s32.totalorder %v3554, 3
        %vm3811 = vcmp.eq.s32.totalorder %v3555, 3
        %vm3812 = vcmp.eq.s32.totalorder %v3556, 3
        %vm3813 = vcmp.eq.s32.totalorder %v3557, 3
        %vm3814 = vcmp.eq.s32.totalorder %v3558, 3
        %vm3815 = vcmp.eq.s32.totalorder %v3559, 3
        %vm3816 = vcmp.eq.s32.totalorder %v3560, 3
        %vm3817 = vcmp.eq.s32.totalorder %v3561, 3
        %vm3818 = vcmp.eq.s32.totalorder %v3562, 3
        %vm3819 = vcmp.eq.s32.totalorder %v3563, 3
        %vm3820 = vcmp.eq.s32.totalorder %v3564, 3
        %vm3821 = vcmp.eq.s32.totalorder %v3565, 3
        %vm3822 = vcmp.eq.s32.totalorder %v3566, 3
        %vm3823 = vcmp.eq.s32.totalorder %v3567, 3
        %vm3824 = vcmp.eq.s32.totalorder %v3568, 3
        %vm3825 = vcmp.eq.s32.totalorder %v3569, 3
        %vm3826 = vcmp.eq.s32.totalorder %v3570, 3
        %vm3827 = vcmp.eq.s32.totalorder %v3571, 3
        %vm3828 = vcmp.eq.s32.totalorder %v3572, 3
        %vm3829 = vcmp.eq.s32.totalorder %v3573, 3
        %vm3830 = vcmp.eq.s32.totalorder %v3574, 3
        %vm3831 = vcmp.eq.s32.totalorder %v3575, 3
        %vm3832 = vcmp.eq.s32.totalorder %v3576, 3
        %vm3833 = vcmp.eq.s32.totalorder %v3577, 3
        %vm3834 = vcmp.eq.s32.totalorder %v3578, 3
        %vm3835 = vcmp.eq.s32.totalorder %v3579, 3
        %vm3836 = vcmp.eq.s32.totalorder %v3580, 3
        %vm3837 = vcmp.eq.s32.totalorder %v3581, 3
        %vm3838 = vcmp.eq.s32.totalorder %v3582, 3
        %vm3839 = vcmp.eq.s32.totalorder %v3583, 3
        %vm3840 = vcmp.eq.s32.totalorder %v3584, 3
        %vm3841 = vcmp.eq.s32.totalorder %v3585, 3
        %vm3842 = vcmp.eq.s32.totalorder %v3586, 3
        %vm3843 = vcmp.eq.s32.totalorder %v3587, 3
        %vm3844 = vcmp.eq.s32.totalorder %v3588, 3
        %vm3845 = vcmp.eq.s32.totalorder %v3589, 3
        %vm3846 = vcmp.eq.s32.totalorder %v3590, 3
        %vm3847 = vcmp.eq.s32.totalorder %v3591, 3
        %vm3848 = vcmp.eq.s32.totalorder %v3592, 3
        %vm3849 = vcmp.eq.s32.totalorder %v3593, 3
        %vm3850 = vcmp.eq.s32.totalorder %v3594, 3
        %vm3851 = vcmp.eq.s32.totalorder %v3595, 3
        %vm3852 = vcmp.eq.s32.totalorder %v3596, 3
        %vm3853 = vcmp.eq.s32.totalorder %v3597, 3
        %vm3854 = vcmp.eq.s32.totalorder %v3598, 3
        %vm3855 = vcmp.eq.s32.totalorder %v3599, 3
        %vm3856 = vcmp.eq.s32.totalorder %v3600, 3
        %vm3857 = vcmp.eq.s32.totalorder %v3601, 3
        %vm3858 = vcmp.eq.s32.totalorder %v3602, 3
        %vm3859 = vcmp.eq.s32.totalorder %v3603, 3
        %vm3860 = vcmp.eq.s32.totalorder %v3604, 3
        %vm3861 = vcmp.eq.s32.totalorder %v3605, 3
        %vm3862 = vcmp.eq.s32.totalorder %v3606, 3
        %v3863 = vmul.f32 %v142, 4.0
        %v3864 = vmul.f32 %v143, 4.0
        %v3865 = vmul.f32 %v144, 4.0
        %v3866 = vmul.f32 %v145, 4.0
        %v3867 = vmul.f32 %v146, 4.0
        %v3868 = vmul.f32 %v147, 4.0
        %v3869 = vmul.f32 %v148, 4.0
        %v3870 = vmul.f32 %v149, 4.0
        %v3871 = vmul.f32 %v150, 4.0
        %v3872 = vmul.f32 %v151, 4.0
        %v3873 = vmul.f32 %v152, 4.0
        %v3874 = vmul.f32 %v153, 4.0
        %v3875 = vmul.f32 %v154, 4.0
        %v3876 = vmul.f32 %v155, 4.0
        %v3877 = vmul.f32 %v156, 4.0
        %v3878 = vmul.f32 %v157, 4.0
        %v3879 = vmul.f32 %v158, 4.0
        %v3880 = vmul.f32 %v159, 4.0
        %v3881 = vmul.f32 %v160, 4.0
        %v3882 = vmul.f32 %v161, 4.0
        %v3883 = vmul.f32 %v162, 4.0
        %v3884 = vmul.f32 %v163, 4.0
        %v3885 = vmul.f32 %v164, 4.0
        %v3886 = vmul.f32 %v165, 4.0
        %v3887 = vmul.f32 %v166, 4.0
        %v3888 = vmul.f32 %v167, 4.0
        %v3889 = vmul.f32 %v168, 4.0
        %v3890 = vmul.f32 %v169, 4.0
        %v3891 = vmul.f32 %v170, 4.0
        %v3892 = vmul.f32 %v171, 4.0
        %v3893 = vmul.f32 %v172, 4.0
        %v3894 = vmul.f32 %v173, 4.0
        %v3895 = vmul.f32 %v174, 4.0
        %v3896 = vmul.f32 %v175, 4.0
        %v3897 = vmul.f32 %v176, 4.0
        %v3898 = vmul.f32 %v177, 4.0
        %v3899 = vmul.f32 %v178, 4.0
        %v3900 = vmul.f32 %v179, 4.0
        %v3901 = vmul.f32 %v180, 4.0
        %v3902 = vmul.f32 %v181, 4.0
        %v3903 = vmul.f32 %v182, 4.0
        %v3904 = vmul.f32 %v183, 4.0
        %v3905 = vmul.f32 %v184, 4.0
        %v3906 = vmul.f32 %v185, 4.0
        %v3907 = vmul.f32 %v186, 4.0
        %v3908 = vmul.f32 %v187, 4.0
        %v3909 = vmul.f32 %v188, 4.0
        %v3910 = vmul.f32 %v189, 4.0
        %v3911 = vmul.f32 %v190, 4.0
        %v3912 = vmul.f32 %v191, 4.0
        %v3913 = vmul.f32 %v192, 4.0
        %v3914 = vmul.f32 %v193, 4.0
        %v3915 = vmul.f32 %v194, 4.0
        %v3916 = vmul.f32 %v195, 4.0
        %v3917 = vmul.f32 %v196, 4.0
        %v3918 = vmul.f32 %v197, 4.0
        %v3919 = vmul.f32 %v198, 4.0
        %v3920 = vmul.f32 %v199, 4.0
        %v3921 = vmul.f32 %v200, 4.0
        %v3922 = vmul.f32 %v201, 4.0
        %v3923 = vmul.f32 %v202, 4.0
        %v3924 = vmul.f32 %v203, 4.0
        %v3925 = vmul.f32 %v204, 4.0
        %v3926 = vmul.f32 %v205, 4.0
        %v3927 = vmul.f32 %v206, 4.0
        %v3928 = vmul.f32 %v207, 4.0
        %v3929 = vmul.f32 %v208, 4.0
        %v3930 = vmul.f32 %v209, 4.0
        %v3931 = vmul.f32 %v210, 4.0
        %v3932 = vmul.f32 %v211, 4.0
        %v3933 = vmul.f32 %v212, 4.0
        %v3934 = vmul.f32 %v213, 4.0
        %v3935 = vmul.f32 %v214, 4.0
        %v3936 = vmul.f32 %v215, 4.0
        %v3937 = vmul.f32 %v216, 4.0
        %v3938 = vmul.f32 %v217, 4.0
        %v3939 = vmul.f32 %v218, 4.0
        %v3940 = vmul.f32 %v219, 4.0
        %v3941 = vmul.f32 %v220, 4.0
        %v3942 = vmul.f32 %v221, 4.0
        %v3943 = vmul.f32 %v222, 4.0
        %v3944 = vmul.f32 %v223, 4.0
        %v3945 = vmul.f32 %v224, 4.0
        %v3946 = vmul.f32 %v225, 4.0
        %v3947 = vmul.f32 %v226, 4.0
        %v3948 = vmul.f32 %v227, 4.0
        %v3949 = vmul.f32 %v228, 4.0
        %v3950 = vmul.f32 %v229, 4.0
        %v3951 = vmul.f32 %v230, 4.0
        %v3952 = vmul.f32 %v231, 4.0
        %v3953 = vmul.f32 %v232, 4.0
        %v3954 = vmul.f32 %v233, 4.0
        %v3955 = vmul.f32 %v234, 4.0
        %v3956 = vmul.f32 %v235, 4.0
        %v3957 = vmul.f32 %v236, 4.0
        %v3958 = vmul.f32 %v237, 4.0
        %v3959 = vmul.f32 %v238, 4.0
        %v3960 = vmul.f32 %v239, 4.0
        %v3961 = vmul.f32 %v240, 4.0
        %v3962 = vmul.f32 %v241, 4.0
        %v3963 = vmul.f32 %v242, 4.0
        %v3964 = vmul.f32 %v243, 4.0
        %v3965 = vmul.f32 %v244, 4.0
        %v3966 = vmul.f32 %v245, 4.0
        %v3967 = vmul.f32 %v246, 4.0
        %v3968 = vmul.f32 %v247, 4.0
        %v3969 = vmul.f32 %v248, 4.0
        %v3970 = vmul.f32 %v249, 4.0
        %v3971 = vmul.f32 %v250, 4.0
        %v3972 = vmul.f32 %v251, 4.0
        %v3973 = vmul.f32 %v252, 4.0
        %v3974 = vmul.f32 %v253, 4.0
        %v3975 = vmul.f32 %v254, 4.0
        %v3976 = vmul.f32 %v255, 4.0
        %v3977 = vmul.f32 %v256, 4.0
        %v3978 = vmul.f32 %v257, 4.0
        %v3979 = vmul.f32 %v258, 4.0
        %v3980 = vmul.f32 %v259, 4.0
        %v3981 = vmul.f32 %v260, 4.0
        %v3982 = vmul.f32 %v261, 4.0
        %v3983 = vmul.f32 %v262, 4.0
        %v3984 = vmul.f32 %v263, 4.0
        %v3985 = vmul.f32 %v264, 4.0
        %v3986 = vmul.f32 %v265, 4.0
        %v3987 = vmul.f32 %v266, 4.0
        %v3988 = vmul.f32 %v267, 4.0
        %v3989 = vmul.f32 %v268, 4.0
        %v3990 = vmul.f32 %v269, 4.0
        %v3991 = vmul.f32 %v270, 4.0
        %v3992 = vmul.f32 %v271, 4.0
        %v3993 = vmul.f32 %v272, 4.0
        %v3994 = vmul.f32 %v273, 4.0
        %v3995 = vmul.f32 %v274, 4.0
        %v3996 = vmul.f32 %v275, 4.0
        %v3997 = vmul.f32 %v276, 4.0
        %v3998 = vmul.f32 %v277, 4.0
        %v3999 = vmul.f32 %v278, 4.0
        %v4000 = vmul.f32 %v279, 4.0
        %v4001 = vmul.f32 %v280, 4.0
        %v4002 = vmul.f32 %v281, 4.0
        %v4003 = vmul.f32 %v282, 4.0
        %v4004 = vmul.f32 %v283, 4.0
        %v4005 = vmul.f32 %v284, 4.0
        %v4006 = vmul.f32 %v285, 4.0
        %v4007 = vmul.f32 %v286, 4.0
        %v4008 = vmul.f32 %v287, 4.0
        %v4009 = vmul.f32 %v288, 4.0
        %v4010 = vmul.f32 %v289, 4.0
        %v4011 = vmul.f32 %v290, 4.0
        %v4012 = vmul.f32 %v291, 4.0
        %v4013 = vmul.f32 %v292, 4.0
        %v4014 = vmul.f32 %v293, 4.0
        %v4015 = vmul.f32 %v294, 4.0
        %v4016 = vmul.f32 %v295, 4.0
        %v4017 = vmul.f32 %v296, 4.0
        %v4018 = vmul.f32 %v297, 4.0
        %v4019 = vmul.f32 %v298, 4.0
        %v4020 = vmul.f32 %v299, 4.0
        %v4021 = vmul.f32 %v300, 4.0
        %v4022 = vmul.f32 %v301, 4.0
        %v4023 = vmul.f32 %v302, 4.0
        %v4024 = vmul.f32 %v303, 4.0
        %v4025 = vmul.f32 %v304, 4.0
        %v4026 = vmul.f32 %v305, 4.0
        %v4027 = vmul.f32 %v306, 4.0
        %v4028 = vmul.f32 %v307, 4.0
        %v4029 = vmul.f32 %v308, 4.0
        %v4030 = vmul.f32 %v309, 4.0
        %v4031 = vmul.f32 %v310, 4.0
        %v4032 = vmul.f32 %v311, 4.0
        %v4033 = vmul.f32 %v312, 4.0
        %v4034 = vmul.f32 %v313, 4.0
        %v4035 = vmul.f32 %v314, 4.0
        %v4036 = vmul.f32 %v315, 4.0
        %v4037 = vmul.f32 %v316, 4.0
        %v4038 = vmul.f32 %v317, 4.0
        %v4039 = vmul.f32 %v318, 4.0
        %v4040 = vmul.f32 %v319, 4.0
        %v4041 = vmul.f32 %v320, 4.0
        %v4042 = vmul.f32 %v321, 4.0
        %v4043 = vmul.f32 %v322, 4.0
        %v4044 = vmul.f32 %v323, 4.0
        %v4045 = vmul.f32 %v324, 4.0
        %v4046 = vmul.f32 %v325, 4.0
        %v4047 = vmul.f32 %v326, 4.0
        %v4048 = vmul.f32 %v327, 4.0
        %v4049 = vmul.f32 %v328, 4.0
        %v4050 = vmul.f32 %v329, 4.0
        %v4051 = vmul.f32 %v330, 4.0
        %v4052 = vmul.f32 %v331, 4.0
        %v4053 = vmul.f32 %v332, 4.0
        %v4054 = vmul.f32 %v333, 4.0
        %v4055 = vmul.f32 %v334, 4.0
        %v4056 = vmul.f32 %v335, 4.0
        %v4057 = vmul.f32 %v336, 4.0
        %v4058 = vmul.f32 %v337, 4.0
        %v4059 = vmul.f32 %v338, 4.0
        %v4060 = vmul.f32 %v339, 4.0
        %v4061 = vmul.f32 %v340, 4.0
        %v4062 = vmul.f32 %v341, 4.0
        %v4063 = vmul.f32 %v342, 4.0
        %v4064 = vmul.f32 %v343, 4.0
        %v4065 = vmul.f32 %v344, 4.0
        %v4066 = vmul.f32 %v345, 4.0
        %v4067 = vmul.f32 %v346, 4.0
        %v4068 = vmul.f32 %v347, 4.0
        %v4069 = vmul.f32 %v348, 4.0
        %v4070 = vmul.f32 %v349, 4.0
        %v4071 = vmul.f32 %v350, 4.0
        %v4072 = vmul.f32 %v351, 4.0
        %v4073 = vmul.f32 %v352, 4.0
        %v4074 = vmul.f32 %v353, 4.0
        %v4075 = vmul.f32 %v354, 4.0
        %v4076 = vmul.f32 %v355, 4.0
        %v4077 = vmul.f32 %v356, 4.0
        %v4078 = vmul.f32 %v357, 4.0
        %v4079 = vmul.f32 %v358, 4.0
        %v4080 = vmul.f32 %v359, 4.0
        %v4081 = vmul.f32 %v360, 4.0
        %v4082 = vmul.f32 %v361, 4.0
        %v4083 = vmul.f32 %v362, 4.0
        %v4084 = vmul.f32 %v363, 4.0
        %v4085 = vmul.f32 %v364, 4.0
        %v4086 = vmul.f32 %v365, 4.0
        %v4087 = vmul.f32 %v366, 4.0
        %v4088 = vmul.f32 %v367, 4.0
        %v4089 = vmul.f32 %v368, 4.0
        %v4090 = vmul.f32 %v369, 4.0
        %v4091 = vmul.f32 %v370, 4.0
        %v4092 = vmul.f32 %v371, 4.0
        %v4093 = vmul.f32 %v372, 4.0
        %v4094 = vmul.f32 %v373, 4.0
        %v4095 = vmul.f32 %v374, 4.0
        %v4096 = vmul.f32 %v375, 4.0
        %v4097 = vmul.f32 %v376, 4.0
        %v4098 = vmul.f32 %v377, 4.0
        %v4099 = vmul.f32 %v378, 4.0
        %v4100 = vmul.f32 %v379, 4.0
        %v4101 = vmul.f32 %v380, 4.0
        %v4102 = vmul.f32 %v381, 4.0
        %v4103 = vmul.f32 %v382, 4.0
        %v4104 = vmul.f32 %v383, 4.0
        %v4105 = vmul.f32 %v384, 4.0
        %v4106 = vmul.f32 %v385, 4.0
        %v4107 = vmul.f32 %v386, 4.0
        %v4108 = vmul.f32 %v387, 4.0
        %v4109 = vmul.f32 %v388, 4.0
        %v4110 = vmul.f32 %v389, 4.0
        %v4111 = vmul.f32 %v390, 4.0
        %v4112 = vmul.f32 %v391, 4.0
        %v4113 = vmul.f32 %v392, 4.0
        %v4114 = vmul.f32 %v393, 4.0
        %v4115 = vmul.f32 %v394, 4.0
        %v4116 = vmul.f32 %v395, 4.0
        %v4117 = vmul.f32 %v396, 4.0
        %v4118 = vmul.f32 %v397, 4.0
        %v4119 = vsel %vm3607, %v3863, 0.0
        %v4120 = vsel %vm3608, %v3864, 0.0
        %v4121 = vsel %vm3609, %v3865, 0.0
        %v4122 = vsel %vm3610, %v3866, 0.0
        %v4123 = vsel %vm3611, %v3867, 0.0
        %v4124 = vsel %vm3612, %v3868, 0.0
        %v4125 = vsel %vm3613, %v3869, 0.0
        %v4126 = vsel %vm3614, %v3870, 0.0
        %v4127 = vsel %vm3615, %v3871, 0.0
        %v4128 = vsel %vm3616, %v3872, 0.0
        %v4129 = vsel %vm3617, %v3873, 0.0
        %v4130 = vsel %vm3618, %v3874, 0.0
        %v4131 = vsel %vm3619, %v3875, 0.0
        %v4132 = vsel %vm3620, %v3876, 0.0
        %v4133 = vsel %vm3621, %v3877, 0.0
        %v4134 = vsel %vm3622, %v3878, 0.0
        %v4135 = vsel %vm3623, %v3879, 0.0
        %v4136 = vsel %vm3624, %v3880, 0.0
        %v4137 = vsel %vm3625, %v3881, 0.0
        %v4138 = vsel %vm3626, %v3882, 0.0
        %v4139 = vsel %vm3627, %v3883, 0.0
        %v4140 = vsel %vm3628, %v3884, 0.0
        %v4141 = vsel %vm3629, %v3885, 0.0
        %v4142 = vsel %vm3630, %v3886, 0.0
        %v4143 = vsel %vm3631, %v3887, 0.0
        %v4144 = vsel %vm3632, %v3888, 0.0
        %v4145 = vsel %vm3633, %v3889, 0.0
        %v4146 = vsel %vm3634, %v3890, 0.0
        %v4147 = vsel %vm3635, %v3891, 0.0
        %v4148 = vsel %vm3636, %v3892, 0.0
        %v4149 = vsel %vm3637, %v3893, 0.0
        %v4150 = vsel %vm3638, %v3894, 0.0
        %v4151 = vsel %vm3639, %v3895, 0.0
        %v4152 = vsel %vm3640, %v3896, 0.0
        %v4153 = vsel %vm3641, %v3897, 0.0
        %v4154 = vsel %vm3642, %v3898, 0.0
        %v4155 = vsel %vm3643, %v3899, 0.0
        %v4156 = vsel %vm3644, %v3900, 0.0
        %v4157 = vsel %vm3645, %v3901, 0.0
        %v4158 = vsel %vm3646, %v3902, 0.0
        %v4159 = vsel %vm3647, %v3903, 0.0
        %v4160 = vsel %vm3648, %v3904, 0.0
        %v4161 = vsel %vm3649, %v3905, 0.0
        %v4162 = vsel %vm3650, %v3906, 0.0
        %v4163 = vsel %vm3651, %v3907, 0.0
        %v4164 = vsel %vm3652, %v3908, 0.0
        %v4165 = vsel %vm3653, %v3909, 0.0
        %v4166 = vsel %vm3654, %v3910, 0.0
        %v4167 = vsel %vm3655, %v3911, 0.0
        %v4168 = vsel %vm3656, %v3912, 0.0
        %v4169 = vsel %vm3657, %v3913, 0.0
        %v4170 = vsel %vm3658, %v3914, 0.0
        %v4171 = vsel %vm3659, %v3915, 0.0
        %v4172 = vsel %vm3660, %v3916, 0.0
        %v4173 = vsel %vm3661, %v3917, 0.0
        %v4174 = vsel %vm3662, %v3918, 0.0
        %v4175 = vsel %vm3663, %v3919, 0.0
        %v4176 = vsel %vm3664, %v3920, 0.0
        %v4177 = vsel %vm3665, %v3921, 0.0
        %v4178 = vsel %vm3666, %v3922, 0.0
        %v4179 = vsel %vm3667, %v3923, 0.0
        %v4180 = vsel %vm3668, %v3924, 0.0
        %v4181 = vsel %vm3669, %v3925, 0.0
        %v4182 = vsel %vm3670, %v3926, 0.0
        %v4183 = vsel %vm3671, %v3927, 0.0
        %v4184 = vsel %vm3672, %v3928, 0.0
        %v4185 = vsel %vm3673, %v3929, 0.0
        %v4186 = vsel %vm3674, %v3930, 0.0
        %v4187 = vsel %vm3675, %v3931, 0.0
        %v4188 = vsel %vm3676, %v3932, 0.0
        %v4189 = vsel %vm3677, %v3933, 0.0
        %v4190 = vsel %vm3678, %v3934, 0.0
        %v4191 = vsel %vm3679, %v3935, 0.0
        %v4192 = vsel %vm3680, %v3936, 0.0
        %v4193 = vsel %vm3681, %v3937, 0.0
        %v4194 = vsel %vm3682, %v3938, 0.0
        %v4195 = vsel %vm3683, %v3939, 0.0
        %v4196 = vsel %vm3684, %v3940, 0.0
        %v4197 = vsel %vm3685, %v3941, 0.0
        %v4198 = vsel %vm3686, %v3942, 0.0
        %v4199 = vsel %vm3687, %v3943, 0.0
        %v4200 = vsel %vm3688, %v3944, 0.0
        %v4201 = vsel %vm3689, %v3945, 0.0
        %v4202 = vsel %vm3690, %v3946, 0.0
        %v4203 = vsel %vm3691, %v3947, 0.0
        %v4204 = vsel %vm3692, %v3948, 0.0
        %v4205 = vsel %vm3693, %v3949, 0.0
        %v4206 = vsel %vm3694, %v3950, 0.0
        %v4207 = vsel %vm3695, %v3951, 0.0
        %v4208 = vsel %vm3696, %v3952, 0.0
        %v4209 = vsel %vm3697, %v3953, 0.0
        %v4210 = vsel %vm3698, %v3954, 0.0
        %v4211 = vsel %vm3699, %v3955, 0.0
        %v4212 = vsel %vm3700, %v3956, 0.0
        %v4213 = vsel %vm3701, %v3957, 0.0
        %v4214 = vsel %vm3702, %v3958, 0.0
        %v4215 = vsel %vm3703, %v3959, 0.0
        %v4216 = vsel %vm3704, %v3960, 0.0
        %v4217 = vsel %vm3705, %v3961, 0.0
        %v4218 = vsel %vm3706, %v3962, 0.0
        %v4219 = vsel %vm3707, %v3963, 0.0
        %v4220 = vsel %vm3708, %v3964, 0.0
        %v4221 = vsel %vm3709, %v3965, 0.0
        %v4222 = vsel %vm3710, %v3966, 0.0
        %v4223 = vsel %vm3711, %v3967, 0.0
        %v4224 = vsel %vm3712, %v3968, 0.0
        %v4225 = vsel %vm3713, %v3969, 0.0
        %v4226 = vsel %vm3714, %v3970, 0.0
        %v4227 = vsel %vm3715, %v3971, 0.0
        %v4228 = vsel %vm3716, %v3972, 0.0
        %v4229 = vsel %vm3717, %v3973, 0.0
        %v4230 = vsel %vm3718, %v3974, 0.0
        %v4231 = vsel %vm3719, %v3975, 0.0
        %v4232 = vsel %vm3720, %v3976, 0.0
        %v4233 = vsel %vm3721, %v3977, 0.0
        %v4234 = vsel %vm3722, %v3978, 0.0
        %v4235 = vsel %vm3723, %v3979, 0.0
        %v4236 = vsel %vm3724, %v3980, 0.0
        %v4237 = vsel %vm3725, %v3981, 0.0
        %v4238 = vsel %vm3726, %v3982, 0.0
        %v4239 = vsel %vm3727, %v3983, 0.0
        %v4240 = vsel %vm3728, %v3984, 0.0
        %v4241 = vsel %vm3729, %v3985, 0.0
        %v4242 = vsel %vm3730, %v3986, 0.0
        %v4243 = vsel %vm3731, %v3987, 0.0
        %v4244 = vsel %vm3732, %v3988, 0.0
        %v4245 = vsel %vm3733, %v3989, 0.0
        %v4246 = vsel %vm3734, %v3990, 0.0
        %v4247 = vsel %vm3735, %v3991, 0.0
        %v4248 = vsel %vm3736, %v3992, 0.0
        %v4249 = vsel %vm3737, %v3993, 0.0
        %v4250 = vsel %vm3738, %v3994, 0.0
        %v4251 = vsel %vm3739, %v3995, 0.0
        %v4252 = vsel %vm3740, %v3996, 0.0
        %v4253 = vsel %vm3741, %v3997, 0.0
        %v4254 = vsel %vm3742, %v3998, 0.0
        %v4255 = vsel %vm3743, %v3999, 0.0
        %v4256 = vsel %vm3744, %v4000, 0.0
        %v4257 = vsel %vm3745, %v4001, 0.0
        %v4258 = vsel %vm3746, %v4002, 0.0
        %v4259 = vsel %vm3747, %v4003, 0.0
        %v4260 = vsel %vm3748, %v4004, 0.0
        %v4261 = vsel %vm3749, %v4005, 0.0
        %v4262 = vsel %vm3750, %v4006, 0.0
        %v4263 = vsel %vm3751, %v4007, 0.0
        %v4264 = vsel %vm3752, %v4008, 0.0
        %v4265 = vsel %vm3753, %v4009, 0.0
        %v4266 = vsel %vm3754, %v4010, 0.0
        %v4267 = vsel %vm3755, %v4011, 0.0
        %v4268 = vsel %vm3756, %v4012, 0.0
        %v4269 = vsel %vm3757, %v4013, 0.0
        %v4270 = vsel %vm3758, %v4014, 0.0
        %v4271 = vsel %vm3759, %v4015, 0.0
        %v4272 = vsel %vm3760, %v4016, 0.0
        %v4273 = vsel %vm3761, %v4017, 0.0
        %v4274 = vsel %vm3762, %v4018, 0.0
        %v4275 = vsel %vm3763, %v4019, 0.0
        %v4276 = vsel %vm3764, %v4020, 0.0
        %v4277 = vsel %vm3765, %v4021, 0.0
        %v4278 = vsel %vm3766, %v4022, 0.0
        %v4279 = vsel %vm3767, %v4023, 0.0
        %v4280 = vsel %vm3768, %v4024, 0.0
        %v4281 = vsel %vm3769, %v4025, 0.0
        %v4282 = vsel %vm3770, %v4026, 0.0
        %v4283 = vsel %vm3771, %v4027, 0.0
        %v4284 = vsel %vm3772, %v4028, 0.0
        %v4285 = vsel %vm3773, %v4029, 0.0
        %v4286 = vsel %vm3774, %v4030, 0.0
        %v4287 = vsel %vm3775, %v4031, 0.0
        %v4288 = vsel %vm3776, %v4032, 0.0
        %v4289 = vsel %vm3777, %v4033, 0.0
        %v4290 = vsel %vm3778, %v4034, 0.0
        %v4291 = vsel %vm3779, %v4035, 0.0
        %v4292 = vsel %vm3780, %v4036, 0.0
        %v4293 = vsel %vm3781, %v4037, 0.0
        %v4294 = vsel %vm3782, %v4038, 0.0
        %v4295 = vsel %vm3783, %v4039, 0.0
        %v4296 = vsel %vm3784, %v4040, 0.0
        %v4297 = vsel %vm3785, %v4041, 0.0
        %v4298 = vsel %vm3786, %v4042, 0.0
        %v4299 = vsel %vm3787, %v4043, 0.0
        %v4300 = vsel %vm3788, %v4044, 0.0
        %v4301 = vsel %vm3789, %v4045, 0.0
        %v4302 = vsel %vm3790, %v4046, 0.0
        %v4303 = vsel %vm3791, %v4047, 0.0
        %v4304 = vsel %vm3792, %v4048, 0.0
        %v4305 = vsel %vm3793, %v4049, 0.0
        %v4306 = vsel %vm3794, %v4050, 0.0
        %v4307 = vsel %vm3795, %v4051, 0.0
        %v4308 = vsel %vm3796, %v4052, 0.0
        %v4309 = vsel %vm3797, %v4053, 0.0
        %v4310 = vsel %vm3798, %v4054, 0.0
        %v4311 = vsel %vm3799, %v4055, 0.0
        %v4312 = vsel %vm3800, %v4056, 0.0
        %v4313 = vsel %vm3801, %v4057, 0.0
        %v4314 = vsel %vm3802, %v4058, 0.0
        %v4315 = vsel %vm3803, %v4059, 0.0
        %v4316 = vsel %vm3804, %v4060, 0.0
        %v4317 = vsel %vm3805, %v4061, 0.0
        %v4318 = vsel %vm3806, %v4062, 0.0
        %v4319 = vsel %vm3807, %v4063, 0.0
        %v4320 = vsel %vm3808, %v4064, 0.0
        %v4321 = vsel %vm3809, %v4065, 0.0
        %v4322 = vsel %vm3810, %v4066, 0.0
        %v4323 = vsel %vm3811, %v4067, 0.0
        %v4324 = vsel %vm3812, %v4068, 0.0
        %v4325 = vsel %vm3813, %v4069, 0.0
        %v4326 = vsel %vm3814, %v4070, 0.0
        %v4327 = vsel %vm3815, %v4071, 0.0
        %v4328 = vsel %vm3816, %v4072, 0.0
        %v4329 = vsel %vm3817, %v4073, 0.0
        %v4330 = vsel %vm3818, %v4074, 0.0
        %v4331 = vsel %vm3819, %v4075, 0.0
        %v4332 = vsel %vm3820, %v4076, 0.0
        %v4333 = vsel %vm3821, %v4077, 0.0
        %v4334 = vsel %vm3822, %v4078, 0.0
        %v4335 = vsel %vm3823, %v4079, 0.0
        %v4336 = vsel %vm3824, %v4080, 0.0
        %v4337 = vsel %vm3825, %v4081, 0.0
        %v4338 = vsel %vm3826, %v4082, 0.0
        %v4339 = vsel %vm3827, %v4083, 0.0
        %v4340 = vsel %vm3828, %v4084, 0.0
        %v4341 = vsel %vm3829, %v4085, 0.0
        %v4342 = vsel %vm3830, %v4086, 0.0
        %v4343 = vsel %vm3831, %v4087, 0.0
        %v4344 = vsel %vm3832, %v4088, 0.0
        %v4345 = vsel %vm3833, %v4089, 0.0
        %v4346 = vsel %vm3834, %v4090, 0.0
        %v4347 = vsel %vm3835, %v4091, 0.0
        %v4348 = vsel %vm3836, %v4092, 0.0
        %v4349 = vsel %vm3837, %v4093, 0.0
        %v4350 = vsel %vm3838, %v4094, 0.0
        %v4351 = vsel %vm3839, %v4095, 0.0
        %v4352 = vsel %vm3840, %v4096, 0.0
        %v4353 = vsel %vm3841, %v4097, 0.0
        %v4354 = vsel %vm3842, %v4098, 0.0
        %v4355 = vsel %vm3843, %v4099, 0.0
        %v4356 = vsel %vm3844, %v4100, 0.0
        %v4357 = vsel %vm3845, %v4101, 0.0
        %v4358 = vsel %vm3846, %v4102, 0.0
        %v4359 = vsel %vm3847, %v4103, 0.0
        %v4360 = vsel %vm3848, %v4104, 0.0
        %v4361 = vsel %vm3849, %v4105, 0.0
        %v4362 = vsel %vm3850, %v4106, 0.0
        %v4363 = vsel %vm3851, %v4107, 0.0
        %v4364 = vsel %vm3852, %v4108, 0.0
        %v4365 = vsel %vm3853, %v4109, 0.0
        %v4366 = vsel %vm3854, %v4110, 0.0
        %v4367 = vsel %vm3855, %v4111, 0.0
        %v4368 = vsel %vm3856, %v4112, 0.0
        %v4369 = vsel %vm3857, %v4113, 0.0
        %v4370 = vsel %vm3858, %v4114, 0.0
        %v4371 = vsel %vm3859, %v4115, 0.0
        %v4372 = vsel %vm3860, %v4116, 0.0
        %v4373 = vsel %vm3861, %v4117, 0.0
        %v4374 = vsel %vm3862, %v4118, 0.0
        %4375 = vst [vmem:[%s139] sm:$0xff] %v4119
        %4376 = vst [vmem:[%s139 + $0x8] sm:$0xff] %v4120
        %4377 = vst [vmem:[%s139 + $0x10] sm:$0xff] %v4121
        %4378 = vst [vmem:[%s139 + $0x18] sm:$0xff] %v4122
        %4379 = vst [vmem:[%s139 + $0x20] sm:$0xff] %v4123
        %4380 = vst [vmem:[%s139 + $0x28] sm:$0xff] %v4124
        %4381 = vst [vmem:[%s139 + $0x30] sm:$0xff] %v4125
        %4382 = vst [vmem:[%s139 + $0x38] sm:$0xff] %v4126
        %4383 = vst [vmem:[%s139 + $0x40] sm:$0xff] %v4127
        %4384 = vst [vmem:[%s139 + $0x48] sm:$0xff] %v4128
        %4385 = vst [vmem:[%s139 + $0x50] sm:$0xff] %v4129
        %4386 = vst [vmem:[%s139 + $0x58] sm:$0xff] %v4130
        %4387 = vst [vmem:[%s139 + $0x60] sm:$0xff] %v4131
        %4388 = vst [vmem:[%s139 + $0x68] sm:$0xff] %v4132
        %4389 = vst [vmem:[%s139 + $0x70] sm:$0xff] %v4133
        %4390 = vst [vmem:[%s139 + $0x78] sm:$0xff] %v4134
        %4391 = vst [vmem:[%s139 + $0x80] sm:$0xff] %v4135
        %4392 = vst [vmem:[%s139 + $0x88] sm:$0xff] %v4136
        %4393 = vst [vmem:[%s139 + $0x90] sm:$0xff] %v4137
        %4394 = vst [vmem:[%s139 + $0x98] sm:$0xff] %v4138
        %4395 = vst [vmem:[%s139 + $0xa0] sm:$0xff] %v4139
        %4396 = vst [vmem:[%s139 + $0xa8] sm:$0xff] %v4140
        %4397 = vst [vmem:[%s139 + $0xb0] sm:$0xff] %v4141
        %4398 = vst [vmem:[%s139 + $0xb8] sm:$0xff] %v4142
        %4399 = vst [vmem:[%s139 + $0xc0] sm:$0xff] %v4143
        %4400 = vst [vmem:[%s139 + $0xc8] sm:$0xff] %v4144
        %4401 = vst [vmem:[%s139 + $0xd0] sm:$0xff] %v4145
        %4402 = vst [vmem:[%s139 + $0xd8] sm:$0xff] %v4146
        %4403 = vst [vmem:[%s139 + $0xe0] sm:$0xff] %v4147
        %4404 = vst [vmem:[%s139 + $0xe8] sm:$0xff] %v4148
        %4405 = vst [vmem:[%s139 + $0xf0] sm:$0xff] %v4149
        %4406 = vst [vmem:[%s139 + $0xf8] sm:$0xff] %v4150
        %4407 = vst [vmem:[%s139 + $0x100] sm:$0xff] %v4151
        %4408 = vst [vmem:[%s139 + $0x108] sm:$0xff] %v4152
        %4409 = vst [vmem:[%s139 + $0x110] sm:$0xff] %v4153
        %4410 = vst [vmem:[%s139 + $0x118] sm:$0xff] %v4154
        %4411 = vst [vmem:[%s139 + $0x120] sm:$0xff] %v4155
        %4412 = vst [vmem:[%s139 + $0x128] sm:$0xff] %v4156
        %4413 = vst [vmem:[%s139 + $0x130] sm:$0xff] %v4157
        %4414 = vst [vmem:[%s139 + $0x138] sm:$0xff] %v4158
        %4415 = vst [vmem:[%s139 + $0x140] sm:$0xff] %v4159
        %4416 = vst [vmem:[%s139 + $0x148] sm:$0xff] %v4160
        %4417 = vst [vmem:[%s139 + $0x150] sm:$0xff] %v4161
        %4418 = vst [vmem:[%s139 + $0x158] sm:$0xff] %v4162
        %4419 = vst [vmem:[%s139 + $0x160] sm:$0xff] %v4163
        %4420 = vst [vmem:[%s139 + $0x168] sm:$0xff] %v4164
        %4421 = vst [vmem:[%s139 + $0x170] sm:$0xff] %v4165
        %4422 = vst [vmem:[%s139 + $0x178] sm:$0xff] %v4166
        %4423 = vst [vmem:[%s139 + $0x180] sm:$0xff] %v4167
        %4424 = vst [vmem:[%s139 + $0x188] sm:$0xff] %v4168
        %4425 = vst [vmem:[%s139 + $0x190] sm:$0xff] %v4169
        %4426 = vst [vmem:[%s139 + $0x198] sm:$0xff] %v4170
        %4427 = vst [vmem:[%s139 + $0x1a0] sm:$0xff] %v4171
        %4428 = vst [vmem:[%s139 + $0x1a8] sm:$0xff] %v4172
        %4429 = vst [vmem:[%s139 + $0x1b0] sm:$0xff] %v4173
        %4430 = vst [vmem:[%s139 + $0x1b8] sm:$0xff] %v4174
        %4431 = vst [vmem:[%s139 + $0x1c0] sm:$0xff] %v4175
        %4432 = vst [vmem:[%s139 + $0x1c8] sm:$0xff] %v4176
        %4433 = vst [vmem:[%s139 + $0x1d0] sm:$0xff] %v4177
        %4434 = vst [vmem:[%s139 + $0x1d8] sm:$0xff] %v4178
        %4435 = vst [vmem:[%s139 + $0x1e0] sm:$0xff] %v4179
        %4436 = vst [vmem:[%s139 + $0x1e8] sm:$0xff] %v4180
        %4437 = vst [vmem:[%s139 + $0x1f0] sm:$0xff] %v4181
        %4438 = vst [vmem:[%s139 + $0x1f8] sm:$0xff] %v4182
        %4439 = vst [vmem:[%s139 + $0x200] sm:$0xff] %v4183
        %4440 = vst [vmem:[%s139 + $0x208] sm:$0xff] %v4184
        %4441 = vst [vmem:[%s139 + $0x210] sm:$0xff] %v4185
        %4442 = vst [vmem:[%s139 + $0x218] sm:$0xff] %v4186
        %4443 = vst [vmem:[%s139 + $0x220] sm:$0xff] %v4187
        %4444 = vst [vmem:[%s139 + $0x228] sm:$0xff] %v4188
        %4445 = vst [vmem:[%s139 + $0x230] sm:$0xff] %v4189
        %4446 = vst [vmem:[%s139 + $0x238] sm:$0xff] %v4190
        %4447 = vst [vmem:[%s139 + $0x240] sm:$0xff] %v4191
        %4448 = vst [vmem:[%s139 + $0x248] sm:$0xff] %v4192
        %4449 = vst [vmem:[%s139 + $0x250] sm:$0xff] %v4193
        %4450 = vst [vmem:[%s139 + $0x258] sm:$0xff] %v4194
        %4451 = vst [vmem:[%s139 + $0x260] sm:$0xff] %v4195
        %4452 = vst [vmem:[%s139 + $0x268] sm:$0xff] %v4196
        %4453 = vst [vmem:[%s139 + $0x270] sm:$0xff] %v4197
        %4454 = vst [vmem:[%s139 + $0x278] sm:$0xff] %v4198
        %4455 = vst [vmem:[%s139 + $0x280] sm:$0xff] %v4199
        %4456 = vst [vmem:[%s139 + $0x288] sm:$0xff] %v4200
        %4457 = vst [vmem:[%s139 + $0x290] sm:$0xff] %v4201
        %4458 = vst [vmem:[%s139 + $0x298] sm:$0xff] %v4202
        %4459 = vst [vmem:[%s139 + $0x2a0] sm:$0xff] %v4203
        %4460 = vst [vmem:[%s139 + $0x2a8] sm:$0xff] %v4204
        %4461 = vst [vmem:[%s139 + $0x2b0] sm:$0xff] %v4205
        %4462 = vst [vmem:[%s139 + $0x2b8] sm:$0xff] %v4206
        %4463 = vst [vmem:[%s139 + $0x2c0] sm:$0xff] %v4207
        %4464 = vst [vmem:[%s139 + $0x2c8] sm:$0xff] %v4208
        %4465 = vst [vmem:[%s139 + $0x2d0] sm:$0xff] %v4209
        %4466 = vst [vmem:[%s139 + $0x2d8] sm:$0xff] %v4210
        %4467 = vst [vmem:[%s139 + $0x2e0] sm:$0xff] %v4211
        %4468 = vst [vmem:[%s139 + $0x2e8] sm:$0xff] %v4212
        %4469 = vst [vmem:[%s139 + $0x2f0] sm:$0xff] %v4213
        %4470 = vst [vmem:[%s139 + $0x2f8] sm:$0xff] %v4214
        %4471 = vst [vmem:[%s139 + $0x300] sm:$0xff] %v4215
        %4472 = vst [vmem:[%s139 + $0x308] sm:$0xff] %v4216
        %4473 = vst [vmem:[%s139 + $0x310] sm:$0xff] %v4217
        %4474 = vst [vmem:[%s139 + $0x318] sm:$0xff] %v4218
        %4475 = vst [vmem:[%s139 + $0x320] sm:$0xff] %v4219
        %4476 = vst [vmem:[%s139 + $0x328] sm:$0xff] %v4220
        %4477 = vst [vmem:[%s139 + $0x330] sm:$0xff] %v4221
        %4478 = vst [vmem:[%s139 + $0x338] sm:$0xff] %v4222
        %4479 = vst [vmem:[%s139 + $0x340] sm:$0xff] %v4223
        %4480 = vst [vmem:[%s139 + $0x348] sm:$0xff] %v4224
        %4481 = vst [vmem:[%s139 + $0x350] sm:$0xff] %v4225
        %4482 = vst [vmem:[%s139 + $0x358] sm:$0xff] %v4226
        %4483 = vst [vmem:[%s139 + $0x360] sm:$0xff] %v4227
        %4484 = vst [vmem:[%s139 + $0x368] sm:$0xff] %v4228
        %4485 = vst [vmem:[%s139 + $0x370] sm:$0xff] %v4229
        %4486 = vst [vmem:[%s139 + $0x378] sm:$0xff] %v4230
        %4487 = vst [vmem:[%s139 + $0x380] sm:$0xff] %v4231
        %4488 = vst [vmem:[%s139 + $0x388] sm:$0xff] %v4232
        %4489 = vst [vmem:[%s139 + $0x390] sm:$0xff] %v4233
        %4490 = vst [vmem:[%s139 + $0x398] sm:$0xff] %v4234
        %4491 = vst [vmem:[%s139 + $0x3a0] sm:$0xff] %v4235
        %4492 = vst [vmem:[%s139 + $0x3a8] sm:$0xff] %v4236
        %4493 = vst [vmem:[%s139 + $0x3b0] sm:$0xff] %v4237
        %4494 = vst [vmem:[%s139 + $0x3b8] sm:$0xff] %v4238
        %4495 = vst [vmem:[%s139 + $0x3c0] sm:$0xff] %v4239
        %4496 = vst [vmem:[%s139 + $0x3c8] sm:$0xff] %v4240
        %4497 = vst [vmem:[%s139 + $0x3d0] sm:$0xff] %v4241
        %4498 = vst [vmem:[%s139 + $0x3d8] sm:$0xff] %v4242
        %4499 = vst [vmem:[%s139 + $0x3e0] sm:$0xff] %v4243
        %4500 = vst [vmem:[%s139 + $0x3e8] sm:$0xff] %v4244
        %4501 = vst [vmem:[%s139 + $0x3f0] sm:$0xff] %v4245
        %4502 = vst [vmem:[%s139 + $0x3f8] sm:$0xff] %v4246
        %4503 = vst [vmem:[%s139 + $0x400] sm:$0xff] %v4247
        %4504 = vst [vmem:[%s139 + $0x408] sm:$0xff] %v4248
        %4505 = vst [vmem:[%s139 + $0x410] sm:$0xff] %v4249
        %4506 = vst [vmem:[%s139 + $0x418] sm:$0xff] %v4250
        %4507 = vst [vmem:[%s139 + $0x420] sm:$0xff] %v4251
        %4508 = vst [vmem:[%s139 + $0x428] sm:$0xff] %v4252
        %4509 = vst [vmem:[%s139 + $0x430] sm:$0xff] %v4253
        %4510 = vst [vmem:[%s139 + $0x438] sm:$0xff] %v4254
        %4511 = vst [vmem:[%s139 + $0x440] sm:$0xff] %v4255
        %4512 = vst [vmem:[%s139 + $0x448] sm:$0xff] %v4256
        %4513 = vst [vmem:[%s139 + $0x450] sm:$0xff] %v4257
        %4514 = vst [vmem:[%s139 + $0x458] sm:$0xff] %v4258
        %4515 = vst [vmem:[%s139 + $0x460] sm:$0xff] %v4259
        %4516 = vst [vmem:[%s139 + $0x468] sm:$0xff] %v4260
        %4517 = vst [vmem:[%s139 + $0x470] sm:$0xff] %v4261
        %4518 = vst [vmem:[%s139 + $0x478] sm:$0xff] %v4262
        %4519 = vst [vmem:[%s139 + $0x480] sm:$0xff] %v4263
        %4520 = vst [vmem:[%s139 + $0x488] sm:$0xff] %v4264
        %4521 = vst [vmem:[%s139 + $0x490] sm:$0xff] %v4265
        %4522 = vst [vmem:[%s139 + $0x498] sm:$0xff] %v4266
        %4523 = vst [vmem:[%s139 + $0x4a0] sm:$0xff] %v4267
        %4524 = vst [vmem:[%s139 + $0x4a8] sm:$0xff] %v4268
        %4525 = vst [vmem:[%s139 + $0x4b0] sm:$0xff] %v4269
        %4526 = vst [vmem:[%s139 + $0x4b8] sm:$0xff] %v4270
        %4527 = vst [vmem:[%s139 + $0x4c0] sm:$0xff] %v4271
        %4528 = vst [vmem:[%s139 + $0x4c8] sm:$0xff] %v4272
        %4529 = vst [vmem:[%s139 + $0x4d0] sm:$0xff] %v4273
        %4530 = vst [vmem:[%s139 + $0x4d8] sm:$0xff] %v4274
        %4531 = vst [vmem:[%s139 + $0x4e0] sm:$0xff] %v4275
        %4532 = vst [vmem:[%s139 + $0x4e8] sm:$0xff] %v4276
        %4533 = vst [vmem:[%s139 + $0x4f0] sm:$0xff] %v4277
        %4534 = vst [vmem:[%s139 + $0x4f8] sm:$0xff] %v4278
        %4535 = vst [vmem:[%s139 + $0x500] sm:$0xff] %v4279
        %4536 = vst [vmem:[%s139 + $0x508] sm:$0xff] %v4280
        %4537 = vst [vmem:[%s139 + $0x510] sm:$0xff] %v4281
        %4538 = vst [vmem:[%s139 + $0x518] sm:$0xff] %v4282
        %4539 = vst [vmem:[%s139 + $0x520] sm:$0xff] %v4283
        %4540 = vst [vmem:[%s139 + $0x528] sm:$0xff] %v4284
        %4541 = vst [vmem:[%s139 + $0x530] sm:$0xff] %v4285
        %4542 = vst [vmem:[%s139 + $0x538] sm:$0xff] %v4286
        %4543 = vst [vmem:[%s139 + $0x540] sm:$0xff] %v4287
        %4544 = vst [vmem:[%s139 + $0x548] sm:$0xff] %v4288
        %4545 = vst [vmem:[%s139 + $0x550] sm:$0xff] %v4289
        %4546 = vst [vmem:[%s139 + $0x558] sm:$0xff] %v4290
        %4547 = vst [vmem:[%s139 + $0x560] sm:$0xff] %v4291
        %4548 = vst [vmem:[%s139 + $0x568] sm:$0xff] %v4292
        %4549 = vst [vmem:[%s139 + $0x570] sm:$0xff] %v4293
        %4550 = vst [vmem:[%s139 + $0x578] sm:$0xff] %v4294
        %4551 = vst [vmem:[%s139 + $0x580] sm:$0xff] %v4295
        %4552 = vst [vmem:[%s139 + $0x588] sm:$0xff] %v4296
        %4553 = vst [vmem:[%s139 + $0x590] sm:$0xff] %v4297
        %4554 = vst [vmem:[%s139 + $0x598] sm:$0xff] %v4298
        %4555 = vst [vmem:[%s139 + $0x5a0] sm:$0xff] %v4299
        %4556 = vst [vmem:[%s139 + $0x5a8] sm:$0xff] %v4300
        %4557 = vst [vmem:[%s139 + $0x5b0] sm:$0xff] %v4301
        %4558 = vst [vmem:[%s139 + $0x5b8] sm:$0xff] %v4302
        %4559 = vst [vmem:[%s139 + $0x5c0] sm:$0xff] %v4303
        %4560 = vst [vmem:[%s139 + $0x5c8] sm:$0xff] %v4304
        %4561 = vst [vmem:[%s139 + $0x5d0] sm:$0xff] %v4305
        %4562 = vst [vmem:[%s139 + $0x5d8] sm:$0xff] %v4306
        %4563 = vst [vmem:[%s139 + $0x5e0] sm:$0xff] %v4307
        %4564 = vst [vmem:[%s139 + $0x5e8] sm:$0xff] %v4308
        %4565 = vst [vmem:[%s139 + $0x5f0] sm:$0xff] %v4309
        %4566 = vst [vmem:[%s139 + $0x5f8] sm:$0xff] %v4310
        %4567 = vst [vmem:[%s139 + $0x600] sm:$0xff] %v4311
        %4568 = vst [vmem:[%s139 + $0x608] sm:$0xff] %v4312
        %4569 = vst [vmem:[%s139 + $0x610] sm:$0xff] %v4313
        %4570 = vst [vmem:[%s139 + $0x618] sm:$0xff] %v4314
        %4571 = vst [vmem:[%s139 + $0x620] sm:$0xff] %v4315
        %4572 = vst [vmem:[%s139 + $0x628] sm:$0xff] %v4316
        %4573 = vst [vmem:[%s139 + $0x630] sm:$0xff] %v4317
        %4574 = vst [vmem:[%s139 + $0x638] sm:$0xff] %v4318
        %4575 = vst [vmem:[%s139 + $0x640] sm:$0xff] %v4319
        %4576 = vst [vmem:[%s139 + $0x648] sm:$0xff] %v4320
        %4577 = vst [vmem:[%s139 + $0x650] sm:$0xff] %v4321
        %4578 = vst [vmem:[%s139 + $0x658] sm:$0xff] %v4322
        %4579 = vst [vmem:[%s139 + $0x660] sm:$0xff] %v4323
        %4580 = vst [vmem:[%s139 + $0x668] sm:$0xff] %v4324
        %4581 = vst [vmem:[%s139 + $0x670] sm:$0xff] %v4325
        %4582 = vst [vmem:[%s139 + $0x678] sm:$0xff] %v4326
        %4583 = vst [vmem:[%s139 + $0x680] sm:$0xff] %v4327
        %4584 = vst [vmem:[%s139 + $0x688] sm:$0xff] %v4328
        %4585 = vst [vmem:[%s139 + $0x690] sm:$0xff] %v4329
        %4586 = vst [vmem:[%s139 + $0x698] sm:$0xff] %v4330
        %4587 = vst [vmem:[%s139 + $0x6a0] sm:$0xff] %v4331
        %4588 = vst [vmem:[%s139 + $0x6a8] sm:$0xff] %v4332
        %4589 = vst [vmem:[%s139 + $0x6b0] sm:$0xff] %v4333
        %4590 = vst [vmem:[%s139 + $0x6b8] sm:$0xff] %v4334
        %4591 = vst [vmem:[%s139 + $0x6c0] sm:$0xff] %v4335
        %4592 = vst [vmem:[%s139 + $0x6c8] sm:$0xff] %v4336
        %4593 = vst [vmem:[%s139 + $0x6d0] sm:$0xff] %v4337
        %4594 = vst [vmem:[%s139 + $0x6d8] sm:$0xff] %v4338
        %4595 = vst [vmem:[%s139 + $0x6e0] sm:$0xff] %v4339
        %4596 = vst [vmem:[%s139 + $0x6e8] sm:$0xff] %v4340
        %4597 = vst [vmem:[%s139 + $0x6f0] sm:$0xff] %v4341
        %4598 = vst [vmem:[%s139 + $0x6f8] sm:$0xff] %v4342
        %4599 = vst [vmem:[%s139 + $0x700] sm:$0xff] %v4343
        %4600 = vst [vmem:[%s139 + $0x708] sm:$0xff] %v4344
        %4601 = vst [vmem:[%s139 + $0x710] sm:$0xff] %v4345
        %4602 = vst [vmem:[%s139 + $0x718] sm:$0xff] %v4346
        %4603 = vst [vmem:[%s139 + $0x720] sm:$0xff] %v4347
        %4604 = vst [vmem:[%s139 + $0x728] sm:$0xff] %v4348
        %4605 = vst [vmem:[%s139 + $0x730] sm:$0xff] %v4349
        %4606 = vst [vmem:[%s139 + $0x738] sm:$0xff] %v4350
        %4607 = vst [vmem:[%s139 + $0x740] sm:$0xff] %v4351
        %4608 = vst [vmem:[%s139 + $0x748] sm:$0xff] %v4352
        %4609 = vst [vmem:[%s139 + $0x750] sm:$0xff] %v4353
        %4610 = vst [vmem:[%s139 + $0x758] sm:$0xff] %v4354
        %4611 = vst [vmem:[%s139 + $0x760] sm:$0xff] %v4355
        %4612 = vst [vmem:[%s139 + $0x768] sm:$0xff] %v4356
        %4613 = vst [vmem:[%s139 + $0x770] sm:$0xff] %v4357
        %4614 = vst [vmem:[%s139 + $0x778] sm:$0xff] %v4358
        %4615 = vst [vmem:[%s139 + $0x780] sm:$0xff] %v4359
        %4616 = vst [vmem:[%s139 + $0x788] sm:$0xff] %v4360
        %4617 = vst [vmem:[%s139 + $0x790] sm:$0xff] %v4361
        %4618 = vst [vmem:[%s139 + $0x798] sm:$0xff] %v4362
        %4619 = vst [vmem:[%s139 + $0x7a0] sm:$0xff] %v4363
        %4620 = vst [vmem:[%s139 + $0x7a8] sm:$0xff] %v4364
        %4621 = vst [vmem:[%s139 + $0x7b0] sm:$0xff] %v4365
        %4622 = vst [vmem:[%s139 + $0x7b8] sm:$0xff] %v4366
        %4623 = vst [vmem:[%s139 + $0x7c0] sm:$0xff] %v4367
        %4624 = vst [vmem:[%s139 + $0x7c8] sm:$0xff] %v4368
        %4625 = vst [vmem:[%s139 + $0x7d0] sm:$0xff] %v4369
        %4626 = vst [vmem:[%s139 + $0x7d8] sm:$0xff] %v4370
        %4627 = vst [vmem:[%s139 + $0x7e0] sm:$0xff] %v4371
        %4628 = vst [vmem:[%s139 + $0x7e8] sm:$0xff] %v4372
        %4629 = vst [vmem:[%s139 + $0x7f0] sm:$0xff] %v4373
        %4630 = vst [vmem:[%s139 + $0x7f8] sm:$0xff] %v4374
        %s4631 = sand.u32 %s54, 1
        %s4632 = scalar_lea.sflag [#allocation6], %s4631
        %s4633 = sand.u32 %s54, 1
        %s4634 = smul.addr %s4633, 2048
        %s4635 = scalar_lea.vmem [#allocation7], %s4634
        // Predicated region
        $region29: #{tpu_custom_call.1} parent=23 // pred_check
          %p4636 = pneg %p64
        $region30: #{tpu_custom_call.1} parent=23 // pred_check_branch
          %4638 = sbr.rel (%p4636) target = $region32
        $region31: #{tpu_custom_call.1} parent=23 // pred_region
          %s4639 = smul.u32 128, %s20
          %4641 = vsyncadd %s4632, 0
          %s4642 = smul.addr %s4639, 2
          %s4643 = smul.addr %s4642, 8
          %s4644 = scalar_lea.hbm %s2, %s4643
          %s4645 = sshll.u32 %s4635, 4
          %s4646 = int_to_ptr.vmem [resolvable:$true] %s4645
          %s4647 = sshll.u32 %s4644, 4
          %s4648 = int_to_ptr.hbm [resolvable:$true] %s4647
          %4653 = dma.vmem_to_hbm [thread:$0]  %s4646, 32768, %s4648, %s4632, 256, 256, 16
        $region32: #{tpu_custom_call.1} parent=23 // pred_fallthru
          _
      $region24: #{tpu_custom_call.1} parent=5 // pred_fallthru
        _
      %p4654 = scmp.le.s32.totalorder 2, %s15
      // Predicated region
      $region33: #{tpu_custom_call.1} parent=5 // pred_check
        %p4655 = pneg %p4654
      $region34: #{tpu_custom_call.1} parent=5 // pred_check_branch
        %4657 = sbr.rel (%p4655) target = $region36
      $region35: #{tpu_custom_call.1} parent=5 // pred_region
        %s4658 = ssub.s32 %s15, 2
        // Predicated region
        $region37: #{tpu_custom_call.1} parent=35 // pred_check
          %p4659 = pneg %p70
        $region38: #{tpu_custom_call.1} parent=35 // pred_check_branch
          %4661 = sbr.rel (%p4659) target = $region40
        $region39: #{tpu_custom_call.1} parent=35 // pred_region
          %s4662 = sand.u32 %s55, 1
          %s4663 = scalar_lea.sflag [#allocation6], %s4662
          %s4664 = sand.u32 %s55, 1
          %s4665 = smul.addr %s4664, 2048
          %s4666 = scalar_lea.vmem [#allocation7], %s4665
          %4668 = dma.done %s4663, 32768
        $region40: #{tpu_custom_call.1} parent=35 // pred_fallthru
          _
      $region36: #{tpu_custom_call.1} parent=5 // pred_fallthru
        _
    $region6: #{tpu_custom_call.1} parent=1 // loop_footer
      %s19 = sadd.s32 1, %s15
    $region7: #{tpu_custom_call.1} parent=1 // loop_footer_branch
      %14 = sbr.rel target = $region3
    $region8: #{tpu_custom_call.1} parent=1 // loop_exit
      _
    %4669 = vsyncpa [#allocation5], 1
    %s4670 = scalar_lea.sflag [#allocation5], 1
    %4671 = vsyncpa %s4670, 1
    %4672 = vsyncpa [#allocation6], 1
    %s4673 = scalar_lea.sflag [#allocation6], 1
    %4674 = vsyncpa %s4673, 1

</llo_original>
